<compile_context>
chip_gen: v5e
topology: v5e:2x2
jax: 0.10.0
libtpu: 0.0.40
codegen_flags: <defaults>
</compile_context>

<pallas_src>
import jax
import jax.numpy as jnp
from jax.experimental import pallas as pl
from jax.experimental.pallas import tpu as pltpu

LANES = 128                 # points mapped to the 128-lane axis
POINTS_PER_BLOCK = 32768    # 256 sublane rows x 128 lanes per grid step
_SUB_ALIGN = 16             # sublane multiple valid for both f32 (8) and bf16 (16) tiling


def _round_up(x, m):
    return ((x + m - 1) // m) * m


def _gaussian_kernel(mod_ref, params_ref, out_ref):
    # mod_ref:    (1,) f32 in SMEM  -- scaling_modifier (runtime scalar)
    # params_ref: (8, SUB, 128)  rows: 0-2 log-scale, 3-6 quat(w,x,y,z), 7 opacity logit
    # out_ref:    (14, SUB, 128) rows: 0-5 cov(xx,xy,xz,yy,yz,zz), 6-8 scale,
    #                                  9-12 quat, 13 opacity
    f32 = jnp.float32
    odt = out_ref.dtype

    # Load + upcast once; all math runs in f32 regardless of the HBM I/O dtype.
    sx_log = params_ref[0].astype(f32)
    sy_log = params_ref[1].astype(f32)
    sz_log = params_ref[2].astype(f32)
    qw = params_ref[3].astype(f32)
    qx = params_ref[4].astype(f32)
    qy = params_ref[5].astype(f32)
    qz = params_ref[6].astype(f32)
    op = params_ref[7].astype(f32)

    # scaling_activation = exp ; opacity_activation = sigmoid
    sx = jnp.exp(sx_log)
    sy = jnp.exp(sy_log)
    sz = jnp.exp(sz_log)
    opac = jax.nn.sigmoid(op)

    # rotation_activation = F.normalize (eps-clamped like torch; also guards
    # all-zero padded rows against inf/NaN from rsqrt(0)).
    sumsq = qw * qw + qx * qx + qy * qy + qz * qz
    inv_norm = jax.lax.rsqrt(jnp.maximum(sumsq, 1e-24))
    qw = qw * inv_norm
    qx = qx * inv_norm
    qy = qy * inv_norm
    qz = qz * inv_norm

    # Pass-through outputs stored as soon as they're ready: ends their live
    # ranges before the covariance chain (lower vreg pressure); vst slots have
    # slack because the kernel is DMA-bound, so these stores are free.
    out_ref[6] = sx.astype(odt)
    out_ref[7] = sy.astype(odt)
    out_ref[8] = sz.astype(odt)
    out_ref[9] = qw.astype(odt)
    out_ref[10] = qx.astype(odt)
    out_ref[11] = qy.astype(odt)
    out_ref[12] = qz.astype(odt)
    out_ref[13] = opac.astype(odt)

    # R = build_rotation(q)   (each element is a full (SUB, 128) vreg block)
    R00 = 1.0 - 2.0 * (qy * qy + qz * qz)
    R01 = 2.0 * (qx * qy - qw * qz)
    R02 = 2.0 * (qx * qz + qw * qy)
    R10 = 2.0 * (qx * qy + qw * qz)
    R11 = 1.0 - 2.0 * (qx * qx + qz * qz)
    R12 = 2.0 * (qy * qz - qw * qx)
    R20 = 2.0 * (qx * qz - qw * qy)
    R21 = 2.0 * (qy * qz + qw * qx)
    R22 = 1.0 - 2.0 * (qx * qx + qy * qy)

    # L = R @ diag(scaling_modifier * exp(scaling)); modifier is a runtime
    # scalar -> 3 extra VPU muls, fully hidden under the HBM roofline.
    mod = mod_ref[0]
    msx = sx * mod
    msy = sy * mod
    msz = sz * mod
    L00 = R00 * msx; L01 = R01 * msy; L02 = R02 * msz
    L10 = R10 * msx; L11 = R11 * msy; L12 = R12 * msz
    L20 = R20 * msx; L21 = R21 * msy; L22 = R22 * msz

    # Sigma = L @ L^T ; strip_symmetric -> (xx, xy, xz, yy, yz, zz)
    out_ref[0] = (L00 * L00 + L01 * L01 + L02 * L02).astype(odt)
    out_ref[1] = (L00 * L10 + L01 * L11 + L02 * L12).astype(odt)
    out_ref[2] = (L00 * L20 + L01 * L21 + L02 * L22).astype(odt)
    out_ref[3] = (L10 * L10 + L11 * L11 + L12 * L12).astype(odt)
    out_ref[4] = (L10 * L20 + L11 * L21 + L12 * L22).astype(odt)
    out_ref[5] = (L20 * L20 + L21 * L21 + L22 * L22).astype(odt)


def gaussian_forward(params, scaling_modifier=1.0, *,
                     points_per_block=POINTS_PER_BLOCK, return_padded=False):
    """Activations + covariance for all gaussians.

    params: (8, N) float32 or bfloat16, attribute-major packed:
        rows 0-2 log-scaling, rows 3-6 quaternion (w,x,y,z), row 7 opacity logit.
    Returns (14, N) in the same dtype:
        rows 0-5 covariance (xx,xy,xz,yy,yz,zz), rows 6-8 exp(scaling),
        rows 9-12 normalized quaternion, row 13 sigmoid(opacity).
    Compute is always f32 internally; only HBM I/O uses the input dtype.
    """
    C, N = params.shape
    assert C == 8
    if params.dtype not in (jnp.float32, jnp.bfloat16):
        params = params.astype(jnp.float32)
    io_dtype = params.dtype

    # Points fill the (sublane, lane) plane: N -> (rows_of_128, 128).
    rows = pl.cdiv(N, LANES)
    max_rows = max(_SUB_ALIGN, (points_per_block // LANES) // _SUB_ALIGN * _SUB_ALIGN)
    if rows <= max_rows:
        sub_block = _round_up(rows, _SUB_ALIGN)
        num_blocks = 1
    else:
        sub_block = max_rows
        num_blocks = pl.cdiv(rows, sub_block)
        if num_blocks % 2:        # even grid -> both v7x TensorCores get equal work
            num_blocks += 1
    rows_pad = num_blocks * sub_block
    n_pad = rows_pad * LANES

    if n_pad != N:
        # TODO(synk): callers should keep params pre-padded to a block multiple
        # so this full-input copy (and the output slice below) disappears.
        params = jnp.pad(params, ((0, 0), (0, n_pad - N)))
    p3 = params.reshape(8, rows_pad, LANES)

    mod = jnp.full((1,), scaling_modifier, jnp.float32)
    itemsize = jnp.dtype(io_dtype).itemsize

    out = pl.pallas_call(
        _gaussian_kernel,
        out_shape=jax.ShapeDtypeStruct((14, rows_pad, LANES), io_dtype),
        grid=(num_blocks,),
        in_specs=[pl.BlockSpec(memory_space=pltpu.MemorySpace.SMEM),   # scaling_modifier
                  pl.BlockSpec((8, sub_block, LANES), lambda i: (0, i, 0))],
        out_specs=pl.BlockSpec((14, sub_block, LANES), lambda i: (0, i, 0)),
        compiler_params=pltpu.CompilerParams(
            dimension_semantics=("parallel",),
            vmem_limit_bytes=48 * 1024 * 1024),
        cost_estimate=pl.CostEstimate(
            flops=84 * n_pad,
            transcendentals=6 * n_pad,
            bytes_accessed=22 * itemsize * n_pad),
    )(mod, p3)

    out = out.reshape(14, n_pad)
    if return_padded or n_pad == N:
        return out
    return out[:, :N]


def _reference(params, mod):
    """Pure-JAX reference mirroring the PyTorch helpers (packed layout, f32)."""
    s_log = params[0:3]                      # (3, N)
    q = params[3:7]                          # (4, N)
    op = params[7:8]                         # (1, N)
    s = jnp.exp(s_log)
    qn = q / jnp.maximum(jnp.linalg.norm(q, axis=0, keepdims=True), 1e-12)
    w, x, y, z = qn[0], qn[1], qn[2], qn[3]
    R = jnp.stack([
        jnp.stack([1 - 2 * (y * y + z * z), 2 * (x * y - w * z), 2 * (x * z + w * y)]),
        jnp.stack([2 * (x * y + w * z), 1 - 2 * (x * x + z * z), 2 * (y * z - w * x)]),
        jnp.stack([2 * (x * z - w * y), 2 * (y * z + w * x), 1 - 2 * (x * x + y * y)]),
    ])                                       # (3, 3, N)
    L = R * (mod * s)[None, :, :]            # R @ diag(mod * s)
    Sigma = jnp.einsum('ikn,jkn->ijn', L, L)
    cov = jnp.stack([Sigma[0, 0], Sigma[0, 1], Sigma[0, 2],
                     Sigma[1, 1], Sigma[1, 2], Sigma[2, 2]])
    return jnp.concatenate([cov, s, qn, jax.nn.sigmoid(op)], axis=0)


if __name__ == "__main__":
    # Deterministic synthetic "point cloud" parameters (no checkpoint load).
    # TODO(synk): the module's forward() body is empty in the source; the
    # parameter activation / covariance pipeline is what is implemented here.
    # load_point_cloud (PLY ingest, distCUDA2, optimizer state) is host-side
    # setup and is not part of the kernel.
    key = jax.random.PRNGKey(0)
    k1, k2, k3 = jax.random.split(key, 3)

    def make_params(n):
        scaling_log = 0.1 * jax.random.normal(k1, (3, n), jnp.float32)
        rotation = jax.random.normal(k2, (4, n), jnp.float32)
        opacity = jax.random.normal(k3, (1, n), jnp.float32)
        return jnp.concatenate([scaling_log, rotation, opacity], axis=0)  # (8, n)

    ok = True

    # 1) f32, block-aligned N -> no wrapper pad/slice, even 2-step grid (v7x megacore).
    n_aligned = 2 * POINTS_PER_BLOCK
    p_f32 = make_params(n_aligned)
    for mod in (1.0, 0.7):
        out = jax.block_until_ready(gaussian_forward(p_f32, mod))
        ref = _reference(p_f32, mod)
        ok &= out.shape == (14, n_aligned)
        ok &= bool(jnp.allclose(out, ref, atol=1e-5, rtol=1e-5))

    # 2) f32, small non-multiple-of-128 N -> exercises the padding path.
    n_small = 20000
    p_small = make_params(n_small)
    out = jax.block_until_ready(gaussian_forward(p_small, 0.7))
    ref = _reference(p_small, 0.7)
    ok &= out.shape == (14, n_small)
    ok &= bool(jnp.allclose(out, ref, atol=1e-5, rtol=1e-5))

    # 3) bf16 HBM I/O (compute stays f32 in-kernel); reference uses the same
    #    bf16-rounded inputs so only the output rounding differs.
    p_bf16 = p_f32.astype(jnp.bfloat16)
    out = jax.block_until_ready(gaussian_forward(p_bf16, 0.7))
    ref = _reference(p_bf16.astype(jnp.float32), 0.7)
    ok &= out.dtype == jnp.bfloat16
    ok &= bool(jnp.allclose(out.astype(jnp.float32), ref, atol=2e-2, rtol=2e-2))

    if ok:
        print("KERNEL_OK")
</pallas_src>

<mosaic_0001>
module attributes {stable_mosaic.version = 11 : i64} {
  func.func @_gaussian_kernel(%arg0: i32, %arg1: memref<1xf32, #tpu.memory_space<smem>>, %arg2: memref<8x256x128xf32, #tpu.memory_space<vmem>>, %arg3: memref<14x256x128xf32, #tpu.memory_space<vmem>>) attributes {dimension_semantics = [#tpu.dimension_semantics<parallel>], iteration_bounds = array<i64: 2>, scalar_prefetch = 0 : i64, scratch_operands = 0 : i64, tpu.core_type = #tpu.core_type<tc>, window_params = [{transform_indices = @transform_0, window_bounds = array<i64: 1>}, {transform_indices = @transform_1, window_bounds = array<i64: 8, 256, 128>}, {transform_indices = @transform_2, window_bounds = array<i64: 14, 256, 128>}]} {
    %c0 = arith.constant 0 : index
    %c0_0 = arith.constant 0 : index
    %c0_1 = arith.constant 0 : index
    %0 = vector.load %arg2[%c0, %c0_0, %c0_1] : memref<8x256x128xf32, #tpu.memory_space<vmem>>, vector<1x256x128xf32>
    %1 = vector.shape_cast %0 : vector<1x256x128xf32> to vector<256x128xf32>
    %c1 = arith.constant 1 : index
    %c0_2 = arith.constant 0 : index
    %c0_3 = arith.constant 0 : index
    %2 = vector.load %arg2[%c1, %c0_2, %c0_3] : memref<8x256x128xf32, #tpu.memory_space<vmem>>, vector<1x256x128xf32>
    %3 = vector.shape_cast %2 : vector<1x256x128xf32> to vector<256x128xf32>
    %c2 = arith.constant 2 : index
    %c0_4 = arith.constant 0 : index
    %c0_5 = arith.constant 0 : index
    %4 = vector.load %arg2[%c2, %c0_4, %c0_5] : memref<8x256x128xf32, #tpu.memory_space<vmem>>, vector<1x256x128xf32>
    %5 = vector.shape_cast %4 : vector<1x256x128xf32> to vector<256x128xf32>
    %c3 = arith.constant 3 : index
    %c0_6 = arith.constant 0 : index
    %c0_7 = arith.constant 0 : index
    %6 = vector.load %arg2[%c3, %c0_6, %c0_7] : memref<8x256x128xf32, #tpu.memory_space<vmem>>, vector<1x256x128xf32>
    %7 = vector.shape_cast %6 : vector<1x256x128xf32> to vector<256x128xf32>
    %c4 = arith.constant 4 : index
    %c0_8 = arith.constant 0 : index
    %c0_9 = arith.constant 0 : index
    %8 = vector.load %arg2[%c4, %c0_8, %c0_9] : memref<8x256x128xf32, #tpu.memory_space<vmem>>, vector<1x256x128xf32>
    %9 = vector.shape_cast %8 : vector<1x256x128xf32> to vector<256x128xf32>
    %c5 = arith.constant 5 : index
    %c0_10 = arith.constant 0 : index
    %c0_11 = arith.constant 0 : index
    %10 = vector.load %arg2[%c5, %c0_10, %c0_11] : memref<8x256x128xf32, #tpu.memory_space<vmem>>, vector<1x256x128xf32>
    %11 = vector.shape_cast %10 : vector<1x256x128xf32> to vector<256x128xf32>
    %c6 = arith.constant 6 : index
    %c0_12 = arith.constant 0 : index
    %c0_13 = arith.constant 0 : index
    %12 = vector.load %arg2[%c6, %c0_12, %c0_13] : memref<8x256x128xf32, #tpu.memory_space<vmem>>, vector<1x256x128xf32>
    %13 = vector.shape_cast %12 : vector<1x256x128xf32> to vector<256x128xf32>
    %c7 = arith.constant 7 : index
    %c0_14 = arith.constant 0 : index
    %c0_15 = arith.constant 0 : index
    %14 = vector.load %arg2[%c7, %c0_14, %c0_15] : memref<8x256x128xf32, #tpu.memory_space<vmem>>, vector<1x256x128xf32>
    %15 = vector.shape_cast %14 : vector<1x256x128xf32> to vector<256x128xf32>
    %16 = math.exp %1 : vector<256x128xf32>
    %17 = math.exp %3 : vector<256x128xf32>
    %18 = math.exp %5 : vector<256x128xf32>
    %19 = arith.negf %15 : vector<256x128xf32>
    %20 = math.exp %19 : vector<256x128xf32>
    %cst = arith.constant 1.000000e+00 : f32
    %21 = vector.broadcast %cst : f32 to vector<256x128xf32>
    %22 = arith.addf %21, %20 : vector<256x128xf32>
    %23 = arith.divf %21, %22 : vector<256x128xf32>
    %24 = arith.mulf %7, %7 : vector<256x128xf32>
    %25 = arith.mulf %9, %9 : vector<256x128xf32>
    %26 = arith.addf %24, %25 : vector<256x128xf32>
    %27 = arith.mulf %11, %11 : vector<256x128xf32>
    %28 = arith.addf %26, %27 : vector<256x128xf32>
    %29 = arith.mulf %13, %13 : vector<256x128xf32>
    %30 = arith.addf %28, %29 : vector<256x128xf32>
    %cst_16 = arith.constant 1.000000e-24 : f32
    %31 = vector.broadcast %cst_16 : f32 to vector<256x128xf32>
    %32 = arith.maximumf %30, %31 : vector<256x128xf32>
    %33 = math.rsqrt %32 : vector<256x128xf32>
    %34 = arith.mulf %7, %33 : vector<256x128xf32>
    %35 = arith.mulf %9, %33 : vector<256x128xf32>
    %36 = arith.mulf %11, %33 : vector<256x128xf32>
    %37 = arith.mulf %13, %33 : vector<256x128xf32>
    %c6_17 = arith.constant 6 : index
    %c0_18 = arith.constant 0 : index
    %c0_19 = arith.constant 0 : index
    %38 = vector.load %arg3[%c6_17, %c0_18, %c0_19] : memref<14x256x128xf32, #tpu.memory_space<vmem>>, vector<1x256x128xf32>
    %39 = vector.shape_cast %38 : vector<1x256x128xf32> to vector<256x128xf32>
    %40 = vector.shape_cast %16 : vector<256x128xf32> to vector<1x256x128xf32>
    tpu.vector_store %arg3[%c6_17, %c0_18, %c0_19], %40 {strides = array<i32>} : memref<14x256x128xf32, #tpu.memory_space<vmem>>, vector<1x256x128xf32>,
    %c7_20 = arith.constant 7 : index
    %c0_21 = arith.constant 0 : index
    %c0_22 = arith.constant 0 : index
    %41 = vector.load %arg3[%c7_20, %c0_21, %c0_22] : memref<14x256x128xf32, #tpu.memory_space<vmem>>, vector<1x256x128xf32>
    %42 = vector.shape_cast %41 : vector<1x256x128xf32> to vector<256x128xf32>
    %43 = vector.shape_cast %17 : vector<256x128xf32> to vector<1x256x128xf32>
    tpu.vector_store %arg3[%c7_20, %c0_21, %c0_22], %43 {strides = array<i32>} : memref<14x256x128xf32, #tpu.memory_space<vmem>>, vector<1x256x128xf32>,
    %c8 = arith.constant 8 : index
    %c0_23 = arith.constant 0 : index
    %c0_24 = arith.constant 0 : index
    %44 = vector.load %arg3[%c8, %c0_23, %c0_24] : memref<14x256x128xf32, #tpu.memory_space<vmem>>, vector<1x256x128xf32>
    %45 = vector.shape_cast %44 : vector<1x256x128xf32> to vector<256x128xf32>
    %46 = vector.shape_cast %18 : vector<256x128xf32> to vector<1x256x128xf32>
    tpu.vector_store %arg3[%c8, %c0_23, %c0_24], %46 {strides = array<i32>} : memref<14x256x128xf32, #tpu.memory_space<vmem>>, vector<1x256x128xf32>,
    %c9 = arith.constant 9 : index
    %c0_25 = arith.constant 0 : index
    %c0_26 = arith.constant 0 : index
    %47 = vector.load %arg3[%c9, %c0_25, %c0_26] : memref<14x256x128xf32, #tpu.memory_space<vmem>>, vector<1x256x128xf32>
    %48 = vector.shape_cast %47 : vector<1x256x128xf32> to vector<256x128xf32>
    %49 = vector.shape_cast %34 : vector<256x128xf32> to vector<1x256x128xf32>
    tpu.vector_store %arg3[%c9, %c0_25, %c0_26], %49 {strides = array<i32>} : memref<14x256x128xf32, #tpu.memory_space<vmem>>, vector<1x256x128xf32>,
    %c10 = arith.constant 10 : index
    %c0_27 = arith.constant 0 : index
    %c0_28 = arith.constant 0 : index
    %50 = vector.load %arg3[%c10, %c0_27, %c0_28] : memref<14x256x128xf32, #tpu.memory_space<vmem>>, vector<1x256x128xf32>
    %51 = vector.shape_cast %50 : vector<1x256x128xf32> to vector<256x128xf32>
    %52 = vector.shape_cast %35 : vector<256x128xf32> to vector<1x256x128xf32>
    tpu.vector_store %arg3[%c10, %c0_27, %c0_28], %52 {strides = array<i32>} : memref<14x256x128xf32, #tpu.memory_space<vmem>>, vector<1x256x128xf32>,
    %c11 = arith.constant 11 : index
    %c0_29 = arith.constant 0 : index
    %c0_30 = arith.constant 0 : index
    %53 = vector.load %arg3[%c11, %c0_29, %c0_30] : memref<14x256x128xf32, #tpu.memory_space<vmem>>, vector<1x256x128xf32>
    %54 = vector.shape_cast %53 : vector<1x256x128xf32> to vector<256x128xf32>
    %55 = vector.shape_cast %36 : vector<256x128xf32> to vector<1x256x128xf32>
    tpu.vector_store %arg3[%c11, %c0_29, %c0_30], %55 {strides = array<i32>} : memref<14x256x128xf32, #tpu.memory_space<vmem>>, vector<1x256x128xf32>,
    %c12 = arith.constant 12 : index
    %c0_31 = arith.constant 0 : index
    %c0_32 = arith.constant 0 : index
    %56 = vector.load %arg3[%c12, %c0_31, %c0_32] : memref<14x256x128xf32, #tpu.memory_space<vmem>>, vector<1x256x128xf32>
    %57 = vector.shape_cast %56 : vector<1x256x128xf32> to vector<256x128xf32>
    %58 = vector.shape_cast %37 : vector<256x128xf32> to vector<1x256x128xf32>
    tpu.vector_store %arg3[%c12, %c0_31, %c0_32], %58 {strides = array<i32>} : memref<14x256x128xf32, #tpu.memory_space<vmem>>, vector<1x256x128xf32>,
    %c13 = arith.constant 13 : index
    %c0_33 = arith.constant 0 : index
    %c0_34 = arith.constant 0 : index
    %59 = vector.load %arg3[%c13, %c0_33, %c0_34] : memref<14x256x128xf32, #tpu.memory_space<vmem>>, vector<1x256x128xf32>
    %60 = vector.shape_cast %59 : vector<1x256x128xf32> to vector<256x128xf32>
    %61 = vector.shape_cast %23 : vector<256x128xf32> to vector<1x256x128xf32>
    tpu.vector_store %arg3[%c13, %c0_33, %c0_34], %61 {strides = array<i32>} : memref<14x256x128xf32, #tpu.memory_space<vmem>>, vector<1x256x128xf32>,
    %62 = arith.mulf %36, %36 : vector<256x128xf32>
    %63 = arith.mulf %37, %37 : vector<256x128xf32>
    %64 = arith.addf %62, %63 : vector<256x128xf32>
    %cst_35 = arith.constant 2.000000e+00 : f32
    %65 = vector.broadcast %cst_35 : f32 to vector<256x128xf32>
    %66 = arith.mulf %65, %64 : vector<256x128xf32>
    %cst_36 = arith.constant 1.000000e+00 : f32
    %67 = vector.broadcast %cst_36 : f32 to vector<256x128xf32>
    %68 = arith.subf %67, %66 : vector<256x128xf32>
    %69 = arith.mulf %35, %36 : vector<256x128xf32>
    %70 = arith.mulf %34, %37 : vector<256x128xf32>
    %71 = arith.subf %69, %70 : vector<256x128xf32>
    %cst_37 = arith.constant 2.000000e+00 : f32
    %72 = vector.broadcast %cst_37 : f32 to vector<256x128xf32>
    %73 = arith.mulf %72, %71 : vector<256x128xf32>
    %74 = arith.mulf %35, %37 : vector<256x128xf32>
    %75 = arith.mulf %34, %36 : vector<256x128xf32>
    %76 = arith.addf %74, %75 : vector<256x128xf32>
    %cst_38 = arith.constant 2.000000e+00 : f32
    %77 = vector.broadcast %cst_38 : f32 to vector<256x128xf32>
    %78 = arith.mulf %77, %76 : vector<256x128xf32>
    %79 = arith.mulf %35, %36 : vector<256x128xf32>
    %80 = arith.mulf %34, %37 : vector<256x128xf32>
    %81 = arith.addf %79, %80 : vector<256x128xf32>
    %cst_39 = arith.constant 2.000000e+00 : f32
    %82 = vector.broadcast %cst_39 : f32 to vector<256x128xf32>
    %83 = arith.mulf %82, %81 : vector<256x128xf32>
    %84 = arith.mulf %35, %35 : vector<256x128xf32>
    %85 = arith.mulf %37, %37 : vector<256x128xf32>
    %86 = arith.addf %84, %85 : vector<256x128xf32>
    %cst_40 = arith.constant 2.000000e+00 : f32
    %87 = vector.broadcast %cst_40 : f32 to vector<256x128xf32>
    %88 = arith.mulf %87, %86 : vector<256x128xf32>
    %cst_41 = arith.constant 1.000000e+00 : f32
    %89 = vector.broadcast %cst_41 : f32 to vector<256x128xf32>
    %90 = arith.subf %89, %88 : vector<256x128xf32>
    %91 = arith.mulf %36, %37 : vector<256x128xf32>
    %92 = arith.mulf %34, %35 : vector<256x128xf32>
    %93 = arith.subf %91, %92 : vector<256x128xf32>
    %cst_42 = arith.constant 2.000000e+00 : f32
    %94 = vector.broadcast %cst_42 : f32 to vector<256x128xf32>
    %95 = arith.mulf %94, %93 : vector<256x128xf32>
    %96 = arith.mulf %35, %37 : vector<256x128xf32>
    %97 = arith.mulf %34, %36 : vector<256x128xf32>
    %98 = arith.subf %96, %97 : vector<256x128xf32>
    %cst_43 = arith.constant 2.000000e+00 : f32
    %99 = vector.broadcast %cst_43 : f32 to vector<256x128xf32>
    %100 = arith.mulf %99, %98 : vector<256x128xf32>
    %101 = arith.mulf %36, %37 : vector<256x128xf32>
    %102 = arith.mulf %34, %35 : vector<256x128xf32>
    %103 = arith.addf %101, %102 : vector<256x128xf32>
    %cst_44 = arith.constant 2.000000e+00 : f32
    %104 = vector.broadcast %cst_44 : f32 to vector<256x128xf32>
    %105 = arith.mulf %104, %103 : vector<256x128xf32>
    %106 = arith.mulf %35, %35 : vector<256x128xf32>
    %107 = arith.mulf %36, %36 : vector<256x128xf32>
    %108 = arith.addf %106, %107 : vector<256x128xf32>
    %cst_45 = arith.constant 2.000000e+00 : f32
    %109 = vector.broadcast %cst_45 : f32 to vector<256x128xf32>
    %110 = arith.mulf %109, %108 : vector<256x128xf32>
    %cst_46 = arith.constant 1.000000e+00 : f32
    %111 = vector.broadcast %cst_46 : f32 to vector<256x128xf32>
    %112 = arith.subf %111, %110 : vector<256x128xf32>
    %c0_47 = arith.constant 0 : index
    %113 = memref.load %arg1[%c0_47] : memref<1xf32, #tpu.memory_space<smem>>
    %114 = vector.broadcast %113 : f32 to vector<256x128xf32>
    %115 = arith.mulf %16, %114 : vector<256x128xf32>
    %116 = vector.broadcast %113 : f32 to vector<256x128xf32>
    %117 = arith.mulf %17, %116 : vector<256x128xf32>
    %118 = vector.broadcast %113 : f32 to vector<256x128xf32>
    %119 = arith.mulf %18, %118 : vector<256x128xf32>
    %120 = arith.mulf %68, %115 : vector<256x128xf32>
    %121 = arith.mulf %73, %117 : vector<256x128xf32>
    %122 = arith.mulf %78, %119 : vector<256x128xf32>
    %123 = arith.mulf %83, %115 : vector<256x128xf32>
    %124 = arith.mulf %90, %117 : vector<256x128xf32>
    %125 = arith.mulf %95, %119 : vector<256x128xf32>
    %126 = arith.mulf %100, %115 : vector<256x128xf32>
    %127 = arith.mulf %105, %117 : vector<256x128xf32>
    %128 = arith.mulf %112, %119 : vector<256x128xf32>
    %129 = arith.mulf %120, %120 : vector<256x128xf32>
    %130 = arith.mulf %121, %121 : vector<256x128xf32>
    %131 = arith.addf %129, %130 : vector<256x128xf32>
    %132 = arith.mulf %122, %122 : vector<256x128xf32>
    %133 = arith.addf %131, %132 : vector<256x128xf32>
    %c0_48 = arith.constant 0 : index
    %c0_49 = arith.constant 0 : index
    %c0_50 = arith.constant 0 : index
    %134 = vector.load %arg3[%c0_48, %c0_49, %c0_50] : memref<14x256x128xf32, #tpu.memory_space<vmem>>, vector<1x256x128xf32>
    %135 = vector.shape_cast %134 : vector<1x256x128xf32> to vector<256x128xf32>
    %136 = vector.shape_cast %133 : vector<256x128xf32> to vector<1x256x128xf32>
    tpu.vector_store %arg3[%c0_48, %c0_49, %c0_50], %136 {strides = array<i32>} : memref<14x256x128xf32, #tpu.memory_space<vmem>>, vector<1x256x128xf32>,
    %137 = arith.mulf %120, %123 : vector<256x128xf32>
    %138 = arith.mulf %121, %124 : vector<256x128xf32>
    %139 = arith.addf %137, %138 : vector<256x128xf32>
    %140 = arith.mulf %122, %125 : vector<256x128xf32>
    %141 = arith.addf %139, %140 : vector<256x128xf32>
    %c1_51 = arith.constant 1 : index
    %c0_52 = arith.constant 0 : index
    %c0_53 = arith.constant 0 : index
    %142 = vector.load %arg3[%c1_51, %c0_52, %c0_53] : memref<14x256x128xf32, #tpu.memory_space<vmem>>, vector<1x256x128xf32>
    %143 = vector.shape_cast %142 : vector<1x256x128xf32> to vector<256x128xf32>
    %144 = vector.shape_cast %141 : vector<256x128xf32> to vector<1x256x128xf32>
    tpu.vector_store %arg3[%c1_51, %c0_52, %c0_53], %144 {strides = array<i32>} : memref<14x256x128xf32, #tpu.memory_space<vmem>>, vector<1x256x128xf32>,
    %145 = arith.mulf %120, %126 : vector<256x128xf32>
    %146 = arith.mulf %121, %127 : vector<256x128xf32>
    %147 = arith.addf %145, %146 : vector<256x128xf32>
    %148 = arith.mulf %122, %128 : vector<256x128xf32>
    %149 = arith.addf %147, %148 : vector<256x128xf32>
    %c2_54 = arith.constant 2 : index
    %c0_55 = arith.constant 0 : index
    %c0_56 = arith.constant 0 : index
    %150 = vector.load %arg3[%c2_54, %c0_55, %c0_56] : memref<14x256x128xf32, #tpu.memory_space<vmem>>, vector<1x256x128xf32>
    %151 = vector.shape_cast %150 : vector<1x256x128xf32> to vector<256x128xf32>
    %152 = vector.shape_cast %149 : vector<256x128xf32> to vector<1x256x128xf32>
    tpu.vector_store %arg3[%c2_54, %c0_55, %c0_56], %152 {strides = array<i32>} : memref<14x256x128xf32, #tpu.memory_space<vmem>>, vector<1x256x128xf32>,
    %153 = arith.mulf %123, %123 : vector<256x128xf32>
    %154 = arith.mulf %124, %124 : vector<256x128xf32>
    %155 = arith.addf %153, %154 : vector<256x128xf32>
    %156 = arith.mulf %125, %125 : vector<256x128xf32>
    %157 = arith.addf %155, %156 : vector<256x128xf32>
    %c3_57 = arith.constant 3 : index
    %c0_58 = arith.constant 0 : index
    %c0_59 = arith.constant 0 : index
    %158 = vector.load %arg3[%c3_57, %c0_58, %c0_59] : memref<14x256x128xf32, #tpu.memory_space<vmem>>, vector<1x256x128xf32>
    %159 = vector.shape_cast %158 : vector<1x256x128xf32> to vector<256x128xf32>
    %160 = vector.shape_cast %157 : vector<256x128xf32> to vector<1x256x128xf32>
    tpu.vector_store %arg3[%c3_57, %c0_58, %c0_59], %160 {strides = array<i32>} : memref<14x256x128xf32, #tpu.memory_space<vmem>>, vector<1x256x128xf32>,
    %161 = arith.mulf %123, %126 : vector<256x128xf32>
    %162 = arith.mulf %124, %127 : vector<256x128xf32>
    %163 = arith.addf %161, %162 : vector<256x128xf32>
    %164 = arith.mulf %125, %128 : vector<256x128xf32>
    %165 = arith.addf %163, %164 : vector<256x128xf32>
    %c4_60 = arith.constant 4 : index
    %c0_61 = arith.constant 0 : index
    %c0_62 = arith.constant 0 : index
    %166 = vector.load %arg3[%c4_60, %c0_61, %c0_62] : memref<14x256x128xf32, #tpu.memory_space<vmem>>, vector<1x256x128xf32>
    %167 = vector.shape_cast %166 : vector<1x256x128xf32> to vector<256x128xf32>
    %168 = vector.shape_cast %165 : vector<256x128xf32> to vector<1x256x128xf32>
    tpu.vector_store %arg3[%c4_60, %c0_61, %c0_62], %168 {strides = array<i32>} : memref<14x256x128xf32, #tpu.memory_space<vmem>>, vector<1x256x128xf32>,
    %169 = arith.mulf %126, %126 : vector<256x128xf32>
    %170 = arith.mulf %127, %127 : vector<256x128xf32>
    %171 = arith.addf %169, %170 : vector<256x128xf32>
    %172 = arith.mulf %128, %128 : vector<256x128xf32>
    %173 = arith.addf %171, %172 : vector<256x128xf32>
    %c5_63 = arith.constant 5 : index
    %c0_64 = arith.constant 0 : index
    %c0_65 = arith.constant 0 : index
    %174 = vector.load %arg3[%c5_63, %c0_64, %c0_65] : memref<14x256x128xf32, #tpu.memory_space<vmem>>, vector<1x256x128xf32>
    %175 = vector.shape_cast %174 : vector<1x256x128xf32> to vector<256x128xf32>
    %176 = vector.shape_cast %173 : vector<256x128xf32> to vector<1x256x128xf32>
    tpu.vector_store %arg3[%c5_63, %c0_64, %c0_65], %176 {strides = array<i32>} : memref<14x256x128xf32, #tpu.memory_space<vmem>>, vector<1x256x128xf32>,
    return
  }
  func.func @transform_0(%arg0: i32) -> i32 {
    %c0_i32 = arith.constant 0 : i32
    %c0_i32_0 = arith.constant 0 : i32
    return %c0_i32 : i32
  }
  func.func @transform_1(%arg0: i32) -> (i32, i32, i32) {
    %c0_i32 = arith.constant 0 : i32
    %c0_i32_0 = arith.constant 0 : i32
    %c0_i32_1 = arith.constant 0 : i32
    return %c0_i32, %arg0, %c0_i32_0 : i32, i32, i32
  }
  func.func @transform_2(%arg0: i32) -> (i32, i32, i32) {
    %c0_i32 = arith.constant 0 : i32
    %c0_i32_0 = arith.constant 0 : i32
    %c0_i32_1 = arith.constant 0 : i32
    return %c0_i32, %arg0, %c0_i32_0 : i32, i32, i32
  }
}

</mosaic_0001>

<llo_original>
// kernel: tpu_custom_call.1
$region0: #{tpu_custom_call.1}
  #allocation0 [shape = 'u32[]', space=smem, size = 0x4, offset = 0x4, fixed_abs, tag = 'smem constant byte address 0x4 - core index']
  #allocation1 [shape = 'u32[72,128]{1,0:T(1,128)}', space=vmem, size = 0x9000, scoped, tag = 'internal scratch']
  #allocation2 [shape = 'f32[1]{0:T(128)S(6)}', space=smem, size = 0x200, scoped, tag = 'scoped memory for tpu_custom_call.1']
  #allocation7 [shape = 's32[]', space=sflag, size = 0x4, offset = 0, fixed_abs, tag = 'sflag constant byte address 0x0 - dummy sync flag']
  #allocation9 [shape = 's32[]', space=sflag, size = 0x4, offset = 0, fixed_abs, tag = 'sflag constant byte address 0x0 - dummy sync flag']
  %s0 = inlined_call_operand.<no memory space> [shape: f32[1], index: 0, kind: input, shape index: {}]
  %s1 = inlined_call_operand.hbm [shape: f32[8,512,128], index: 1, kind: input, shape index: {}]
  %s2 = inlined_call_operand.hbm [shape: f32[14,512,128], index: 2, kind: output, shape index: {}]
  %s3 = sld [smem:[#allocation0]]
  $region45: #{tpu_custom_call.1} parent=0
    _
  %s5 = ssub.s32 1, %s3
  %s6 = scalar_select 0, %s5, %s3
  %7 = sst [smem:[#allocation2]] %s0
  $region1: #{tpu_custom_call.1} parent=0
    #allocation3 [shape = 'u8[2097152]{0}', space=vmem, size = 0x200000, scoped, tag = 'input window, operand 1']
    #allocation4 [shape = 's32[2]{0}', space=sflag, size = 0x8, scoped, tag = 'scoped memory for tpu_custom_call.1']
    #allocation5 [shape = 's32[2]{0}', space=sflag, size = 0x8, scoped, tag = 'scoped memory for tpu_custom_call.1']
    #allocation6 [shape = 'u8[3670016]{0}', space=vmem, size = 0x380000, scoped, tag = 'output window, operand 0']
    %8 = vsyncpa [#allocation4], 0
    %s9 = scalar_lea.sflag [#allocation4], 1
    %10 = vsyncpa %s9, 0
    %11 = vsyncpa [#allocation5], 0
    %s12 = scalar_lea.sflag [#allocation5], 1
    %13 = vsyncpa %s12, 0
    loop: start=0, step=1, limit=4
    $region2: #{tpu_custom_call.1} parent=1 // loop_pre_header
      _
    $region3: #{tpu_custom_call.1} parent=1 // loop_header
      %s15 = sphi 0, %s19
      %p16 = scmp.ge.s32.totalorder %s15, 4
      %s23 = sphi 0, %s23
      %s25 = sphi 0, %s23
      %s26 = sphi 0, %s25
      %s40 = sphi 0, %s26
      %s46 = sphi 0, %s48
      %s49 = sphi 0, %s46
      %s50 = sphi 0, %s49
      %s66 = sphi 0, %s50
      %s72 = sphi 0, %s74
      %s75 = sphi 0, %s72
      %s76 = sphi 0, %s75
      %s92 = sphi 0, %s76
    $region4: #{tpu_custom_call.1} parent=1 // loop_header_branch
      %18 = sbr.rel (%p16) target = $region8
    $region5: #{tpu_custom_call.1} parent=1 // loop_body
      %s20 = ssub.s32 %s15, 1
      %s21 = ssub.s32 %s15, 2
      %s22 = sadd.s32 %s15, 1
      %s24 = sadd.s32 %s23, 1
      %p27 = scmp.eq.s32.totalorder %s15, 1
      %p28 = scmp.ne.s32.totalorder %s23, %s25
      %p29 = scmp.eq.s32.totalorder %s15, 0
      %p30 = por %p28, %p29
      %p31 = scmp.ne.s32.totalorder %s23, %s25
      %p32 = scmp.eq.s32.totalorder %s20, 1
      %p33 = por %p31, %p32
      %p34 = scmp.ne.s32.totalorder %s25, %s26
      %p35 = scmp.eq.s32.totalorder %s20, 0
      %p36 = por %p34, %p35
      %p37 = scmp.ne.s32.totalorder %s25, %s26
      %p38 = scmp.eq.s32.totalorder %s21, 1
      %p39 = por %p37, %p38
      %p41 = scmp.ne.s32.totalorder %s26, %s40
      %p42 = scmp.eq.s32.totalorder %s21, 0
      %p43 = por %p41, %p42
      %s44 = ssub.s32 %s15, %s22
      %p45 = scmp.eq.s32.totalorder %s44, 0
      %s47 = sadd.s32 %s46, 1
      %s48 = scalar_select %p45, %s46, %s47
      %p51 = pneg %p45
      %p52 = scmp.eq.s32.totalorder %s15, 1
      %p53 = por %p51, %p52
      %p54 = scmp.ne.s32.totalorder %s46, %s49
      %p55 = scmp.eq.s32.totalorder %s15, 0
      %p56 = por %p54, %p55
      %p57 = scmp.ne.s32.totalorder %s46, %s49
      %p58 = scmp.eq.s32.totalorder %s20, 1
      %p59 = por %p57, %p58
      %p60 = scmp.ne.s32.totalorder %s49, %s50
      %p61 = scmp.eq.s32.totalorder %s20, 0
      %p62 = por %p60, %p61
      %p63 = scmp.ne.s32.totalorder %s49, %s50
      %p64 = scmp.eq.s32.totalorder %s21, 1
      %p65 = por %p63, %p64
      %p67 = scmp.ne.s32.totalorder %s50, %s66
      %p68 = scmp.eq.s32.totalorder %s21, 0
      %p69 = por %p67, %p68
      %s70 = ssub.s32 %s15, %s22
      %p71 = scmp.eq.s32.totalorder %s70, 0
      %s73 = sadd.s32 %s72, 1
      %s74 = scalar_select %p71, %s72, %s73
      %p77 = pneg %p71
      %p78 = scmp.eq.s32.totalorder %s15, 1
      %p79 = por %p77, %p78
      %p80 = scmp.ne.s32.totalorder %s72, %s75
      %p81 = scmp.eq.s32.totalorder %s15, 0
      %p82 = por %p80, %p81
      %p83 = scmp.ne.s32.totalorder %s72, %s75
      %p84 = scmp.eq.s32.totalorder %s20, 1
      %p85 = por %p83, %p84
      %p86 = scmp.ne.s32.totalorder %s75, %s76
      %p87 = scmp.eq.s32.totalorder %s20, 0
      %p88 = por %p86, %p87
      %p89 = scmp.ne.s32.totalorder %s75, %s76
      %p90 = scmp.eq.s32.totalorder %s21, 1
      %p91 = por %p89, %p90
      %p93 = scmp.ne.s32.totalorder %s76, %s92
      %p94 = scmp.eq.s32.totalorder %s21, 0
      %p95 = por %p93, %p94
      %p96 = scmp.le.s32.totalorder 1, %s15
      %p97 = scmp.lt.s32.totalorder %s15, 3
      %p98 = pnand %p96, %p97
      %p99 = pneg %p98
      // Predicated region
      $region9: #{tpu_custom_call.1} parent=5 // pred_check
        _
      $region10: #{tpu_custom_call.1} parent=5 // pred_check_branch
        %101 = sbr.rel (%p98) target = $region12
      $region11: #{tpu_custom_call.1} parent=5 // pred_region
        %s102 = ssub.s32 %s15, 1
        // Predicated region
        $region13: #{tpu_custom_call.1} parent=11 // pred_check
          %p103 = pneg %p36
        $region14: #{tpu_custom_call.1} parent=11 // pred_check_branch
          %105 = sbr.rel (%p103) target = $region16
        $region15: #{tpu_custom_call.1} parent=11 // pred_region
          _
        $region16: #{tpu_custom_call.1} parent=11 // pred_fallthru
          _
      $region12: #{tpu_custom_call.1} parent=5 // pred_fallthru
        _
      %p106 = scmp.lt.s32.totalorder %s15, 2
      // Predicated region
      $region17: #{tpu_custom_call.1} parent=5 // pred_check
        %p107 = pneg %p106
      $region18: #{tpu_custom_call.1} parent=5 // pred_check_branch
        %109 = sbr.rel (%p107) target = $region20
      $region19: #{tpu_custom_call.1} parent=5 // pred_region
        // Predicated region
        $region21: #{tpu_custom_call.1} parent=19 // pred_check
          %p110 = pneg %p56
        $region22: #{tpu_custom_call.1} parent=19 // pred_check_branch
          %112 = sbr.rel (%p110) target = $region24
        $region23: #{tpu_custom_call.1} parent=19 // pred_region
          #allocation8 [shape = 'u32[6]{0}', space=smem, size = 0x18, scoped, tag = 'DMA stride descriptor']
          %s113 = sand.u32 %s46, 1
          %s114 = scalar_lea.sflag [#allocation4], %s113
          %s115 = sand.u32 %s46, 1
          %s116 = smul.addr %s115, 2048
          %s117 = scalar_lea.vmem [#allocation3], %s116
          %s118 = smul.u32 32, %s15
          %120 = vsyncadd %s114, 0
          %s121 = smul.addr %s118, 8
          %s122 = scalar_lea.hbm %s1, %s121
          %s124 = sshll.u32 1, 14
          %s125 = sxor.u32 4294967295, %s124
          %s127 = sld [smem:[#allocation0]]
          %s128 = sadd.s32 2, %s127
          %s130 = sshll.u32 7, 26
          %s131 = sxor.u32 4294967295, %s130
          %s132 = sand.u32 0, %s131
          %s133 = sshll.u32 %s128, 26
          %s134 = sor.u32 %s132, %s133
          %s135 = sshll.u32 %s122, 4
          %s136 = int_to_ptr.hbm [resolvable:$true] %s135
          %s137 = sshll.u32 %s117, 4
          %s138 = int_to_ptr.vmem [resolvable:$true] %s137
          %144 = sst [smem:[#allocation8]] 8192
          %s145 = scalar_lea.smem [#allocation8], 1
          %146 = sst [smem:[%s145]] 4096
          %s147 = scalar_lea.smem [#allocation8], 2
          %148 = sst [smem:[%s147]] 32
          %s149 = scalar_lea.smem [#allocation8], 3
          %150 = sst [smem:[%s149]] 128
          %s151 = scalar_lea.smem [#allocation8], 4
          %152 = sst [smem:[%s151]] 128
          %s153 = scalar_lea.smem [#allocation8], 5
          %154 = sst [smem:[%s153]] 8
          %156 = dma.general %s136, 32768, %s138, %s114, [#allocation7], [#allocation8], %s134, 0
        $region24: #{tpu_custom_call.1} parent=19 // pred_fallthru
          _
      $region20: #{tpu_custom_call.1} parent=5 // pred_fallthru
        _
      %p157 = scmp.le.s32.totalorder 1, %s15
      %p158 = scmp.lt.s32.totalorder %s15, 3
      %p159 = pnand %p157, %p158
      %p160 = pneg %p159
      // Predicated region
      $region25: #{tpu_custom_call.1} parent=5 // pred_check
        _
      $region26: #{tpu_custom_call.1} parent=5 // pred_check_branch
        %162 = sbr.rel (%p159) target = $region28
      $region27: #{tpu_custom_call.1} parent=5 // pred_region
        %s163 = ssub.s32 %s15, 1
        %s164 = sand.u32 %s49, 1
        %s165 = scalar_lea.sflag [#allocation4], %s164
        %s166 = sand.u32 %s49, 1
        %s167 = smul.addr %s166, 2048
        %s168 = scalar_lea.vmem [#allocation3], %s167
        // Predicated region
        $region29: #{tpu_custom_call.1} parent=27 // pred_check
          %p169 = pneg %p62
        $region30: #{tpu_custom_call.1} parent=27 // pred_check_branch
          %171 = sbr.rel (%p169) target = $region32
        $region31: #{tpu_custom_call.1} parent=27 // pred_region
          %173 = dma.done %s165, 32768
        $region32: #{tpu_custom_call.1} parent=27 // pred_fallthru
          _
        %p174 = pneg %p36
        %p175 = pneg %p33
        %s176 = sand.u32 %s49, 1
        %s177 = scalar_lea.sflag [#allocation4], %s176
        %s178 = sand.u32 %s49, 1
        %s179 = smul.addr %s178, 2048
        %s180 = scalar_lea.vmem [#allocation3], %s179
        %p181 = pneg %p62
        %p182 = pneg %p59
        %p183 = pneg %p88
        %p184 = pneg %p85
        %s185 = sand.u32 %s75, 1
        %s186 = scalar_lea.sflag [#allocation5], %s185
        %s187 = sand.u32 %s75, 1
        %s188 = smul.addr %s187, 3584
        %s189 = scalar_lea.vmem [#allocation6], %s188
        %s190 = smul.u32 32, %s20
        %s191 = smul.u32 32, %s20
        %v192 = vld [vmem:[%s168] sm:$0xff]
        %v193 = vld [vmem:[%s168 + $0x8] sm:$0xff]
        %v194 = vld [vmem:[%s168 + $0x10] sm:$0xff]
        %v195 = vld [vmem:[%s168 + $0x18] sm:$0xff]
        %v196 = vld [vmem:[%s168 + $0x20] sm:$0xff]
        %v197 = vld [vmem:[%s168 + $0x28] sm:$0xff]
        %v198 = vld [vmem:[%s168 + $0x30] sm:$0xff]
        %v199 = vld [vmem:[%s168 + $0x38] sm:$0xff]
        %v200 = vld [vmem:[%s168 + $0x40] sm:$0xff]
        %v201 = vld [vmem:[%s168 + $0x48] sm:$0xff]
        %v202 = vld [vmem:[%s168 + $0x50] sm:$0xff]
        %v203 = vld [vmem:[%s168 + $0x58] sm:$0xff]
        %v204 = vld [vmem:[%s168 + $0x60] sm:$0xff]
        %v205 = vld [vmem:[%s168 + $0x68] sm:$0xff]
        %v206 = vld [vmem:[%s168 + $0x70] sm:$0xff]
        %v207 = vld [vmem:[%s168 + $0x78] sm:$0xff]
        %v208 = vld [vmem:[%s168 + $0x80] sm:$0xff]
        %v209 = vld [vmem:[%s168 + $0x88] sm:$0xff]
        %v210 = vld [vmem:[%s168 + $0x90] sm:$0xff]
        %v211 = vld [vmem:[%s168 + $0x98] sm:$0xff]
        %v212 = vld [vmem:[%s168 + $0xa0] sm:$0xff]
        %v213 = vld [vmem:[%s168 + $0xa8] sm:$0xff]
        %v214 = vld [vmem:[%s168 + $0xb0] sm:$0xff]
        %v215 = vld [vmem:[%s168 + $0xb8] sm:$0xff]
        %v216 = vld [vmem:[%s168 + $0xc0] sm:$0xff]
        %v217 = vld [vmem:[%s168 + $0xc8] sm:$0xff]
        %v218 = vld [vmem:[%s168 + $0xd0] sm:$0xff]
        %v219 = vld [vmem:[%s168 + $0xd8] sm:$0xff]
        %v220 = vld [vmem:[%s168 + $0xe0] sm:$0xff]
        %v221 = vld [vmem:[%s168 + $0xe8] sm:$0xff]
        %v222 = vld [vmem:[%s168 + $0xf0] sm:$0xff]
        %v223 = vld [vmem:[%s168 + $0xf8] sm:$0xff]
        %s224 = scalar_lea.vmem %s168, 256 [#allocation3]
        %v225 = vld [vmem:[%s224] sm:$0xff]
        %v226 = vld [vmem:[%s224 + $0x8] sm:$0xff]
        %v227 = vld [vmem:[%s224 + $0x10] sm:$0xff]
        %v228 = vld [vmem:[%s224 + $0x18] sm:$0xff]
        %v229 = vld [vmem:[%s224 + $0x20] sm:$0xff]
        %v230 = vld [vmem:[%s224 + $0x28] sm:$0xff]
        %v231 = vld [vmem:[%s224 + $0x30] sm:$0xff]
        %v232 = vld [vmem:[%s224 + $0x38] sm:$0xff]
        %v233 = vld [vmem:[%s224 + $0x40] sm:$0xff]
        %v234 = vld [vmem:[%s224 + $0x48] sm:$0xff]
        %v235 = vld [vmem:[%s224 + $0x50] sm:$0xff]
        %v236 = vld [vmem:[%s224 + $0x58] sm:$0xff]
        %v237 = vld [vmem:[%s224 + $0x60] sm:$0xff]
        %v238 = vld [vmem:[%s224 + $0x68] sm:$0xff]
        %v239 = vld [vmem:[%s224 + $0x70] sm:$0xff]
        %v240 = vld [vmem:[%s224 + $0x78] sm:$0xff]
        %v241 = vld [vmem:[%s224 + $0x80] sm:$0xff]
        %v242 = vld [vmem:[%s224 + $0x88] sm:$0xff]
        %v243 = vld [vmem:[%s224 + $0x90] sm:$0xff]
        %v244 = vld [vmem:[%s224 + $0x98] sm:$0xff]
        %v245 = vld [vmem:[%s224 + $0xa0] sm:$0xff]
        %v246 = vld [vmem:[%s224 + $0xa8] sm:$0xff]
        %v247 = vld [vmem:[%s224 + $0xb0] sm:$0xff]
        %v248 = vld [vmem:[%s224 + $0xb8] sm:$0xff]
        %v249 = vld [vmem:[%s224 + $0xc0] sm:$0xff]
        %v250 = vld [vmem:[%s224 + $0xc8] sm:$0xff]
        %v251 = vld [vmem:[%s224 + $0xd0] sm:$0xff]
        %v252 = vld [vmem:[%s224 + $0xd8] sm:$0xff]
        %v253 = vld [vmem:[%s224 + $0xe0] sm:$0xff]
        %v254 = vld [vmem:[%s224 + $0xe8] sm:$0xff]
        %v255 = vld [vmem:[%s224 + $0xf0] sm:$0xff]
        %v256 = vld [vmem:[%s224 + $0xf8] sm:$0xff]
        %s257 = scalar_lea.vmem %s168, 512 [#allocation3]
        %v258 = vld [vmem:[%s257] sm:$0xff]
        %v259 = vld [vmem:[%s257 + $0x8] sm:$0xff]
        %v260 = vld [vmem:[%s257 + $0x10] sm:$0xff]
        %v261 = vld [vmem:[%s257 + $0x18] sm:$0xff]
        %v262 = vld [vmem:[%s257 + $0x20] sm:$0xff]
        %v263 = vld [vmem:[%s257 + $0x28] sm:$0xff]
        %v264 = vld [vmem:[%s257 + $0x30] sm:$0xff]
        %v265 = vld [vmem:[%s257 + $0x38] sm:$0xff]
        %v266 = vld [vmem:[%s257 + $0x40] sm:$0xff]
        %v267 = vld [vmem:[%s257 + $0x48] sm:$0xff]
        %v268 = vld [vmem:[%s257 + $0x50] sm:$0xff]
        %v269 = vld [vmem:[%s257 + $0x58] sm:$0xff]
        %v270 = vld [vmem:[%s257 + $0x60] sm:$0xff]
        %v271 = vld [vmem:[%s257 + $0x68] sm:$0xff]
        %v272 = vld [vmem:[%s257 + $0x70] sm:$0xff]
        %v273 = vld [vmem:[%s257 + $0x78] sm:$0xff]
        %v274 = vld [vmem:[%s257 + $0x80] sm:$0xff]
        %v275 = vld [vmem:[%s257 + $0x88] sm:$0xff]
        %v276 = vld [vmem:[%s257 + $0x90] sm:$0xff]
        %v277 = vld [vmem:[%s257 + $0x98] sm:$0xff]
        %v278 = vld [vmem:[%s257 + $0xa0] sm:$0xff]
        %v279 = vld [vmem:[%s257 + $0xa8] sm:$0xff]
        %v280 = vld [vmem:[%s257 + $0xb0] sm:$0xff]
        %v281 = vld [vmem:[%s257 + $0xb8] sm:$0xff]
        %v282 = vld [vmem:[%s257 + $0xc0] sm:$0xff]
        %v283 = vld [vmem:[%s257 + $0xc8] sm:$0xff]
        %v284 = vld [vmem:[%s257 + $0xd0] sm:$0xff]
        %v285 = vld [vmem:[%s257 + $0xd8] sm:$0xff]
        %v286 = vld [vmem:[%s257 + $0xe0] sm:$0xff]
        %v287 = vld [vmem:[%s257 + $0xe8] sm:$0xff]
        %v288 = vld [vmem:[%s257 + $0xf0] sm:$0xff]
        %v289 = vld [vmem:[%s257 + $0xf8] sm:$0xff]
        %s290 = scalar_lea.vmem %s168, 768 [#allocation3]
        %v291 = vld [vmem:[%s290] sm:$0xff]
        %v292 = vld [vmem:[%s290 + $0x8] sm:$0xff]
        %v293 = vld [vmem:[%s290 + $0x10] sm:$0xff]
        %v294 = vld [vmem:[%s290 + $0x18] sm:$0xff]
        %v295 = vld [vmem:[%s290 + $0x20] sm:$0xff]
        %v296 = vld [vmem:[%s290 + $0x28] sm:$0xff]
        %v297 = vld [vmem:[%s290 + $0x30] sm:$0xff]
        %v298 = vld [vmem:[%s290 + $0x38] sm:$0xff]
        %v299 = vld [vmem:[%s290 + $0x40] sm:$0xff]
        %v300 = vld [vmem:[%s290 + $0x48] sm:$0xff]
        %v301 = vld [vmem:[%s290 + $0x50] sm:$0xff]
        %v302 = vld [vmem:[%s290 + $0x58] sm:$0xff]
        %v303 = vld [vmem:[%s290 + $0x60] sm:$0xff]
        %v304 = vld [vmem:[%s290 + $0x68] sm:$0xff]
        %v305 = vld [vmem:[%s290 + $0x70] sm:$0xff]
        %v306 = vld [vmem:[%s290 + $0x78] sm:$0xff]
        %v307 = vld [vmem:[%s290 + $0x80] sm:$0xff]
        %v308 = vld [vmem:[%s290 + $0x88] sm:$0xff]
        %v309 = vld [vmem:[%s290 + $0x90] sm:$0xff]
        %v310 = vld [vmem:[%s290 + $0x98] sm:$0xff]
        %v311 = vld [vmem:[%s290 + $0xa0] sm:$0xff]
        %v312 = vld [vmem:[%s290 + $0xa8] sm:$0xff]
        %v313 = vld [vmem:[%s290 + $0xb0] sm:$0xff]
        %v314 = vld [vmem:[%s290 + $0xb8] sm:$0xff]
        %v315 = vld [vmem:[%s290 + $0xc0] sm:$0xff]
        %v316 = vld [vmem:[%s290 + $0xc8] sm:$0xff]
        %v317 = vld [vmem:[%s290 + $0xd0] sm:$0xff]
        %v318 = vld [vmem:[%s290 + $0xd8] sm:$0xff]
        %v319 = vld [vmem:[%s290 + $0xe0] sm:$0xff]
        %v320 = vld [vmem:[%s290 + $0xe8] sm:$0xff]
        %v321 = vld [vmem:[%s290 + $0xf0] sm:$0xff]
        %v322 = vld [vmem:[%s290 + $0xf8] sm:$0xff]
        %s323 = scalar_lea.vmem %s168, 1024 [#allocation3]
        %v324 = vld [vmem:[%s323] sm:$0xff]
        %v325 = vld [vmem:[%s323 + $0x8] sm:$0xff]
        %v326 = vld [vmem:[%s323 + $0x10] sm:$0xff]
        %v327 = vld [vmem:[%s323 + $0x18] sm:$0xff]
        %v328 = vld [vmem:[%s323 + $0x20] sm:$0xff]
        %v329 = vld [vmem:[%s323 + $0x28] sm:$0xff]
        %v330 = vld [vmem:[%s323 + $0x30] sm:$0xff]
        %v331 = vld [vmem:[%s323 + $0x38] sm:$0xff]
        %v332 = vld [vmem:[%s323 + $0x40] sm:$0xff]
        %v333 = vld [vmem:[%s323 + $0x48] sm:$0xff]
        %v334 = vld [vmem:[%s323 + $0x50] sm:$0xff]
        %v335 = vld [vmem:[%s323 + $0x58] sm:$0xff]
        %v336 = vld [vmem:[%s323 + $0x60] sm:$0xff]
        %v337 = vld [vmem:[%s323 + $0x68] sm:$0xff]
        %v338 = vld [vmem:[%s323 + $0x70] sm:$0xff]
        %v339 = vld [vmem:[%s323 + $0x78] sm:$0xff]
        %v340 = vld [vmem:[%s323 + $0x80] sm:$0xff]
        %v341 = vld [vmem:[%s323 + $0x88] sm:$0xff]
        %v342 = vld [vmem:[%s323 + $0x90] sm:$0xff]
        %v343 = vld [vmem:[%s323 + $0x98] sm:$0xff]
        %v344 = vld [vmem:[%s323 + $0xa0] sm:$0xff]
        %v345 = vld [vmem:[%s323 + $0xa8] sm:$0xff]
        %v346 = vld [vmem:[%s323 + $0xb0] sm:$0xff]
        %v347 = vld [vmem:[%s323 + $0xb8] sm:$0xff]
        %v348 = vld [vmem:[%s323 + $0xc0] sm:$0xff]
        %v349 = vld [vmem:[%s323 + $0xc8] sm:$0xff]
        %v350 = vld [vmem:[%s323 + $0xd0] sm:$0xff]
        %v351 = vld [vmem:[%s323 + $0xd8] sm:$0xff]
        %v352 = vld [vmem:[%s323 + $0xe0] sm:$0xff]
        %v353 = vld [vmem:[%s323 + $0xe8] sm:$0xff]
        %v354 = vld [vmem:[%s323 + $0xf0] sm:$0xff]
        %v355 = vld [vmem:[%s323 + $0xf8] sm:$0xff]
        %s356 = scalar_lea.vmem %s168, 1280 [#allocation3]
        %v357 = vld [vmem:[%s356] sm:$0xff]
        %v358 = vld [vmem:[%s356 + $0x8] sm:$0xff]
        %v359 = vld [vmem:[%s356 + $0x10] sm:$0xff]
        %v360 = vld [vmem:[%s356 + $0x18] sm:$0xff]
        %v361 = vld [vmem:[%s356 + $0x20] sm:$0xff]
        %v362 = vld [vmem:[%s356 + $0x28] sm:$0xff]
        %v363 = vld [vmem:[%s356 + $0x30] sm:$0xff]
        %v364 = vld [vmem:[%s356 + $0x38] sm:$0xff]
        %v365 = vld [vmem:[%s356 + $0x40] sm:$0xff]
        %v366 = vld [vmem:[%s356 + $0x48] sm:$0xff]
        %v367 = vld [vmem:[%s356 + $0x50] sm:$0xff]
        %v368 = vld [vmem:[%s356 + $0x58] sm:$0xff]
        %v369 = vld [vmem:[%s356 + $0x60] sm:$0xff]
        %v370 = vld [vmem:[%s356 + $0x68] sm:$0xff]
        %v371 = vld [vmem:[%s356 + $0x70] sm:$0xff]
        %v372 = vld [vmem:[%s356 + $0x78] sm:$0xff]
        %v373 = vld [vmem:[%s356 + $0x80] sm:$0xff]
        %v374 = vld [vmem:[%s356 + $0x88] sm:$0xff]
        %v375 = vld [vmem:[%s356 + $0x90] sm:$0xff]
        %v376 = vld [vmem:[%s356 + $0x98] sm:$0xff]
        %v377 = vld [vmem:[%s356 + $0xa0] sm:$0xff]
        %v378 = vld [vmem:[%s356 + $0xa8] sm:$0xff]
        %v379 = vld [vmem:[%s356 + $0xb0] sm:$0xff]
        %v380 = vld [vmem:[%s356 + $0xb8] sm:$0xff]
        %v381 = vld [vmem:[%s356 + $0xc0] sm:$0xff]
        %v382 = vld [vmem:[%s356 + $0xc8] sm:$0xff]
        %v383 = vld [vmem:[%s356 + $0xd0] sm:$0xff]
        %v384 = vld [vmem:[%s356 + $0xd8] sm:$0xff]
        %v385 = vld [vmem:[%s356 + $0xe0] sm:$0xff]
        %v386 = vld [vmem:[%s356 + $0xe8] sm:$0xff]
        %v387 = vld [vmem:[%s356 + $0xf0] sm:$0xff]
        %v388 = vld [vmem:[%s356 + $0xf8] sm:$0xff]
        %s389 = scalar_lea.vmem %s168, 1536 [#allocation3]
        %v390 = vld [vmem:[%s389] sm:$0xff]
        %v391 = vld [vmem:[%s389 + $0x8] sm:$0xff]
        %v392 = vld [vmem:[%s389 + $0x10] sm:$0xff]
        %v393 = vld [vmem:[%s389 + $0x18] sm:$0xff]
        %v394 = vld [vmem:[%s389 + $0x20] sm:$0xff]
        %v395 = vld [vmem:[%s389 + $0x28] sm:$0xff]
        %v396 = vld [vmem:[%s389 + $0x30] sm:$0xff]
        %v397 = vld [vmem:[%s389 + $0x38] sm:$0xff]
        %v398 = vld [vmem:[%s389 + $0x40] sm:$0xff]
        %v399 = vld [vmem:[%s389 + $0x48] sm:$0xff]
        %v400 = vld [vmem:[%s389 + $0x50] sm:$0xff]
        %v401 = vld [vmem:[%s389 + $0x58] sm:$0xff]
        %v402 = vld [vmem:[%s389 + $0x60] sm:$0xff]
        %v403 = vld [vmem:[%s389 + $0x68] sm:$0xff]
        %v404 = vld [vmem:[%s389 + $0x70] sm:$0xff]
        %v405 = vld [vmem:[%s389 + $0x78] sm:$0xff]
        %v406 = vld [vmem:[%s389 + $0x80] sm:$0xff]
        %v407 = vld [vmem:[%s389 + $0x88] sm:$0xff]
        %v408 = vld [vmem:[%s389 + $0x90] sm:$0xff]
        %v409 = vld [vmem:[%s389 + $0x98] sm:$0xff]
        %v410 = vld [vmem:[%s389 + $0xa0] sm:$0xff]
        %v411 = vld [vmem:[%s389 + $0xa8] sm:$0xff]
        %v412 = vld [vmem:[%s389 + $0xb0] sm:$0xff]
        %v413 = vld [vmem:[%s389 + $0xb8] sm:$0xff]
        %v414 = vld [vmem:[%s389 + $0xc0] sm:$0xff]
        %v415 = vld [vmem:[%s389 + $0xc8] sm:$0xff]
        %v416 = vld [vmem:[%s389 + $0xd0] sm:$0xff]
        %v417 = vld [vmem:[%s389 + $0xd8] sm:$0xff]
        %v418 = vld [vmem:[%s389 + $0xe0] sm:$0xff]
        %v419 = vld [vmem:[%s389 + $0xe8] sm:$0xff]
        %v420 = vld [vmem:[%s389 + $0xf0] sm:$0xff]
        %v421 = vld [vmem:[%s389 + $0xf8] sm:$0xff]
        %s422 = scalar_lea.vmem %s168, 1792 [#allocation3]
        %v423 = vld [vmem:[%s422] sm:$0xff]
        %v424 = vld [vmem:[%s422 + $0x8] sm:$0xff]
        %v425 = vld [vmem:[%s422 + $0x10] sm:$0xff]
        %v426 = vld [vmem:[%s422 + $0x18] sm:$0xff]
        %v427 = vld [vmem:[%s422 + $0x20] sm:$0xff]
        %v428 = vld [vmem:[%s422 + $0x28] sm:$0xff]
        %v429 = vld [vmem:[%s422 + $0x30] sm:$0xff]
        %v430 = vld [vmem:[%s422 + $0x38] sm:$0xff]
        %v431 = vld [vmem:[%s422 + $0x40] sm:$0xff]
        %v432 = vld [vmem:[%s422 + $0x48] sm:$0xff]
        %v433 = vld [vmem:[%s422 + $0x50] sm:$0xff]
        %v434 = vld [vmem:[%s422 + $0x58] sm:$0xff]
        %v435 = vld [vmem:[%s422 + $0x60] sm:$0xff]
        %v436 = vld [vmem:[%s422 + $0x68] sm:$0xff]
        %v437 = vld [vmem:[%s422 + $0x70] sm:$0xff]
        %v438 = vld [vmem:[%s422 + $0x78] sm:$0xff]
        %v439 = vld [vmem:[%s422 + $0x80] sm:$0xff]
        %v440 = vld [vmem:[%s422 + $0x88] sm:$0xff]
        %v441 = vld [vmem:[%s422 + $0x90] sm:$0xff]
        %v442 = vld [vmem:[%s422 + $0x98] sm:$0xff]
        %v443 = vld [vmem:[%s422 + $0xa0] sm:$0xff]
        %v444 = vld [vmem:[%s422 + $0xa8] sm:$0xff]
        %v445 = vld [vmem:[%s422 + $0xb0] sm:$0xff]
        %v446 = vld [vmem:[%s422 + $0xb8] sm:$0xff]
        %v447 = vld [vmem:[%s422 + $0xc0] sm:$0xff]
        %v448 = vld [vmem:[%s422 + $0xc8] sm:$0xff]
        %v449 = vld [vmem:[%s422 + $0xd0] sm:$0xff]
        %v450 = vld [vmem:[%s422 + $0xd8] sm:$0xff]
        %v451 = vld [vmem:[%s422 + $0xe0] sm:$0xff]
        %v452 = vld [vmem:[%s422 + $0xe8] sm:$0xff]
        %v453 = vld [vmem:[%s422 + $0xf0] sm:$0xff]
        %v454 = vld [vmem:[%s422 + $0xf8] sm:$0xff]
        %v455 = vmul.f32 %v192, 1.442695
        %v456 = vpow.pop %v455
        %v457 = vmul.f32 %v193, 1.442695
        %v458 = vpow.pop %v457
        %v459 = vmul.f32 %v194, 1.442695
        %v460 = vpow.pop %v459
        %v461 = vmul.f32 %v195, 1.442695
        %v462 = vpow.pop %v461
        %v463 = vmul.f32 %v196, 1.442695
        %v464 = vpow.pop %v463
        %v465 = vmul.f32 %v197, 1.442695
        %v466 = vpow.pop %v465
        %v467 = vmul.f32 %v198, 1.442695
        %v468 = vpow.pop %v467
        %v469 = vmul.f32 %v199, 1.442695
        %v470 = vpow.pop %v469
        %v471 = vmul.f32 %v200, 1.442695
        %v472 = vpow.pop %v471
        %v473 = vmul.f32 %v201, 1.442695
        %v474 = vpow.pop %v473
        %v475 = vmul.f32 %v202, 1.442695
        %v476 = vpow.pop %v475
        %v477 = vmul.f32 %v203, 1.442695
        %v478 = vpow.pop %v477
        %v479 = vmul.f32 %v204, 1.442695
        %v480 = vpow.pop %v479
        %v481 = vmul.f32 %v205, 1.442695
        %v482 = vpow.pop %v481
        %v483 = vmul.f32 %v206, 1.442695
        %v484 = vpow.pop %v483
        %v485 = vmul.f32 %v207, 1.442695
        %v486 = vpow.pop %v485
        %v487 = vmul.f32 %v208, 1.442695
        %v488 = vpow.pop %v487
        %v489 = vmul.f32 %v209, 1.442695
        %v490 = vpow.pop %v489
        %v491 = vmul.f32 %v210, 1.442695
        %v492 = vpow.pop %v491
        %v493 = vmul.f32 %v211, 1.442695
        %v494 = vpow.pop %v493
        %v495 = vmul.f32 %v212, 1.442695
        %v496 = vpow.pop %v495
        %v497 = vmul.f32 %v213, 1.442695
        %v498 = vpow.pop %v497
        %v499 = vmul.f32 %v214, 1.442695
        %v500 = vpow.pop %v499
        %v501 = vmul.f32 %v215, 1.442695
        %v502 = vpow.pop %v501
        %v503 = vmul.f32 %v216, 1.442695
        %v504 = vpow.pop %v503
        %v505 = vmul.f32 %v217, 1.442695
        %v506 = vpow.pop %v505
        %v507 = vmul.f32 %v218, 1.442695
        %v508 = vpow.pop %v507
        %v509 = vmul.f32 %v219, 1.442695
        %v510 = vpow.pop %v509
        %v511 = vmul.f32 %v220, 1.442695
        %v512 = vpow.pop %v511
        %v513 = vmul.f32 %v221, 1.442695
        %v514 = vpow.pop %v513
        %v515 = vmul.f32 %v222, 1.442695
        %v516 = vpow.pop %v515
        %v517 = vmul.f32 %v223, 1.442695
        %v518 = vpow.pop %v517
        %v519 = vmul.f32 %v225, 1.442695
        %v520 = vpow.pop %v519
        %v521 = vmul.f32 %v226, 1.442695
        %v522 = vpow.pop %v521
        %v523 = vmul.f32 %v227, 1.442695
        %v524 = vpow.pop %v523
        %v525 = vmul.f32 %v228, 1.442695
        %v526 = vpow.pop %v525
        %v527 = vmul.f32 %v229, 1.442695
        %v528 = vpow.pop %v527
        %v529 = vmul.f32 %v230, 1.442695
        %v530 = vpow.pop %v529
        %v531 = vmul.f32 %v231, 1.442695
        %v532 = vpow.pop %v531
        %v533 = vmul.f32 %v232, 1.442695
        %v534 = vpow.pop %v533
        %v535 = vmul.f32 %v233, 1.442695
        %v536 = vpow.pop %v535
        %v537 = vmul.f32 %v234, 1.442695
        %v538 = vpow.pop %v537
        %v539 = vmul.f32 %v235, 1.442695
        %v540 = vpow.pop %v539
        %v541 = vmul.f32 %v236, 1.442695
        %v542 = vpow.pop %v541
        %v543 = vmul.f32 %v237, 1.442695
        %v544 = vpow.pop %v543
        %v545 = vmul.f32 %v238, 1.442695
        %v546 = vpow.pop %v545
        %v547 = vmul.f32 %v239, 1.442695
        %v548 = vpow.pop %v547
        %v549 = vmul.f32 %v240, 1.442695
        %v550 = vpow.pop %v549
        %v551 = vmul.f32 %v241, 1.442695
        %v552 = vpow.pop %v551
        %v553 = vmul.f32 %v242, 1.442695
        %v554 = vpow.pop %v553
        %v555 = vmul.f32 %v243, 1.442695
        %v556 = vpow.pop %v555
        %v557 = vmul.f32 %v244, 1.442695
        %v558 = vpow.pop %v557
        %v559 = vmul.f32 %v245, 1.442695
        %v560 = vpow.pop %v559
        %v561 = vmul.f32 %v246, 1.442695
        %v562 = vpow.pop %v561
        %v563 = vmul.f32 %v247, 1.442695
        %v564 = vpow.pop %v563
        %v565 = vmul.f32 %v248, 1.442695
        %v566 = vpow.pop %v565
        %v567 = vmul.f32 %v249, 1.442695
        %v568 = vpow.pop %v567
        %v569 = vmul.f32 %v250, 1.442695
        %v570 = vpow.pop %v569
        %v571 = vmul.f32 %v251, 1.442695
        %v572 = vpow.pop %v571
        %v573 = vmul.f32 %v252, 1.442695
        %v574 = vpow.pop %v573
        %v575 = vmul.f32 %v253, 1.442695
        %v576 = vpow.pop %v575
        %v577 = vmul.f32 %v254, 1.442695
        %v578 = vpow.pop %v577
        %v579 = vmul.f32 %v255, 1.442695
        %v580 = vpow.pop %v579
        %v581 = vmul.f32 %v256, 1.442695
        %v582 = vpow.pop %v581
        %v583 = vmul.f32 %v258, 1.442695
        %v584 = vpow.pop %v583
        %v585 = vmul.f32 %v259, 1.442695
        %v586 = vpow.pop %v585
        %v587 = vmul.f32 %v260, 1.442695
        %v588 = vpow.pop %v587
        %v589 = vmul.f32 %v261, 1.442695
        %v590 = vpow.pop %v589
        %v591 = vmul.f32 %v262, 1.442695
        %v592 = vpow.pop %v591
        %v593 = vmul.f32 %v263, 1.442695
        %v594 = vpow.pop %v593
        %v595 = vmul.f32 %v264, 1.442695
        %v596 = vpow.pop %v595
        %v597 = vmul.f32 %v265, 1.442695
        %v598 = vpow.pop %v597
        %v599 = vmul.f32 %v266, 1.442695
        %v600 = vpow.pop %v599
        %v601 = vmul.f32 %v267, 1.442695
        %v602 = vpow.pop %v601
        %v603 = vmul.f32 %v268, 1.442695
        %v604 = vpow.pop %v603
        %v605 = vmul.f32 %v269, 1.442695
        %v606 = vpow.pop %v605
        %v607 = vmul.f32 %v270, 1.442695
        %v608 = vpow.pop %v607
        %v609 = vmul.f32 %v271, 1.442695
        %v610 = vpow.pop %v609
        %v611 = vmul.f32 %v272, 1.442695
        %v612 = vpow.pop %v611
        %v613 = vmul.f32 %v273, 1.442695
        %v614 = vpow.pop %v613
        %v615 = vmul.f32 %v274, 1.442695
        %v616 = vpow.pop %v615
        %v617 = vmul.f32 %v275, 1.442695
        %v618 = vpow.pop %v617
        %v619 = vmul.f32 %v276, 1.442695
        %v620 = vpow.pop %v619
        %v621 = vmul.f32 %v277, 1.442695
        %v622 = vpow.pop %v621
        %v623 = vmul.f32 %v278, 1.442695
        %v624 = vpow.pop %v623
        %v625 = vmul.f32 %v279, 1.442695
        %v626 = vpow.pop %v625
        %v627 = vmul.f32 %v280, 1.442695
        %v628 = vpow.pop %v627
        %v629 = vmul.f32 %v281, 1.442695
        %v630 = vpow.pop %v629
        %v631 = vmul.f32 %v282, 1.442695
        %v632 = vpow.pop %v631
        %v633 = vmul.f32 %v283, 1.442695
        %v634 = vpow.pop %v633
        %v635 = vmul.f32 %v284, 1.442695
        %v636 = vpow.pop %v635
        %v637 = vmul.f32 %v285, 1.442695
        %v638 = vpow.pop %v637
        %v639 = vmul.f32 %v286, 1.442695
        %v640 = vpow.pop %v639
        %v641 = vmul.f32 %v287, 1.442695
        %v642 = vpow.pop %v641
        %v643 = vmul.f32 %v288, 1.442695
        %v644 = vpow.pop %v643
        %v645 = vmul.f32 %v289, 1.442695
        %v646 = vpow.pop %v645
        %v647 = vxor.u32 %v423, 2147483648
        %v648 = vxor.u32 %v424, 2147483648
        %v649 = vxor.u32 %v425, 2147483648
        %v650 = vxor.u32 %v426, 2147483648
        %v651 = vxor.u32 %v427, 2147483648
        %v652 = vxor.u32 %v428, 2147483648
        %v653 = vxor.u32 %v429, 2147483648
        %v654 = vxor.u32 %v430, 2147483648
        %v655 = vxor.u32 %v431, 2147483648
        %v656 = vxor.u32 %v432, 2147483648
        %v657 = vxor.u32 %v433, 2147483648
        %v658 = vxor.u32 %v434, 2147483648
        %v659 = vxor.u32 %v435, 2147483648
        %v660 = vxor.u32 %v436, 2147483648
        %v661 = vxor.u32 %v437, 2147483648
        %v662 = vxor.u32 %v438, 2147483648
        %v663 = vxor.u32 %v439, 2147483648
        %v664 = vxor.u32 %v440, 2147483648
        %v665 = vxor.u32 %v441, 2147483648
        %v666 = vxor.u32 %v442, 2147483648
        %v667 = vxor.u32 %v443, 2147483648
        %v668 = vxor.u32 %v444, 2147483648
        %v669 = vxor.u32 %v445, 2147483648
        %v670 = vxor.u32 %v446, 2147483648
        %v671 = vxor.u32 %v447, 2147483648
        %v672 = vxor.u32 %v448, 2147483648
        %v673 = vxor.u32 %v449, 2147483648
        %v674 = vxor.u32 %v450, 2147483648
        %v675 = vxor.u32 %v451, 2147483648
        %v676 = vxor.u32 %v452, 2147483648
        %v677 = vxor.u32 %v453, 2147483648
        %v678 = vxor.u32 %v454, 2147483648
        %v679 = vmul.f32 %v647, 1.442695
        %v680 = vpow.pop %v679
        %v681 = vmul.f32 %v648, 1.442695
        %v682 = vpow.pop %v681
        %v683 = vmul.f32 %v649, 1.442695
        %v684 = vpow.pop %v683
        %v685 = vmul.f32 %v650, 1.442695
        %v686 = vpow.pop %v685
        %v687 = vmul.f32 %v651, 1.442695
        %v688 = vpow.pop %v687
        %v689 = vmul.f32 %v652, 1.442695
        %v690 = vpow.pop %v689
        %v691 = vmul.f32 %v653, 1.442695
        %v692 = vpow.pop %v691
        %v693 = vmul.f32 %v654, 1.442695
        %v694 = vpow.pop %v693
        %v695 = vmul.f32 %v655, 1.442695
        %v696 = vpow.pop %v695
        %v697 = vmul.f32 %v656, 1.442695
        %v698 = vpow.pop %v697
        %v699 = vmul.f32 %v657, 1.442695
        %v700 = vpow.pop %v699
        %v701 = vmul.f32 %v658, 1.442695
        %v702 = vpow.pop %v701
        %v703 = vmul.f32 %v659, 1.442695
        %v704 = vpow.pop %v703
        %v705 = vmul.f32 %v660, 1.442695
        %v706 = vpow.pop %v705
        %v707 = vmul.f32 %v661, 1.442695
        %v708 = vpow.pop %v707
        %v709 = vmul.f32 %v662, 1.442695
        %v710 = vpow.pop %v709
        %v711 = vmul.f32 %v663, 1.442695
        %v712 = vpow.pop %v711
        %v713 = vmul.f32 %v664, 1.442695
        %v714 = vpow.pop %v713
        %v715 = vmul.f32 %v665, 1.442695
        %v716 = vpow.pop %v715
        %v717 = vmul.f32 %v666, 1.442695
        %v718 = vpow.pop %v717
        %v719 = vmul.f32 %v667, 1.442695
        %v720 = vpow.pop %v719
        %v721 = vmul.f32 %v668, 1.442695
        %v722 = vpow.pop %v721
        %v723 = vmul.f32 %v669, 1.442695
        %v724 = vpow.pop %v723
        %v725 = vmul.f32 %v670, 1.442695
        %v726 = vpow.pop %v725
        %v727 = vmul.f32 %v671, 1.442695
        %v728 = vpow.pop %v727
        %v729 = vmul.f32 %v672, 1.442695
        %v730 = vpow.pop %v729
        %v731 = vmul.f32 %v673, 1.442695
        %v732 = vpow.pop %v731
        %v733 = vmul.f32 %v674, 1.442695
        %v734 = vpow.pop %v733
        %v735 = vmul.f32 %v675, 1.442695
        %v736 = vpow.pop %v735
        %v737 = vmul.f32 %v676, 1.442695
        %v738 = vpow.pop %v737
        %v739 = vmul.f32 %v677, 1.442695
        %v740 = vpow.pop %v739
        %v741 = vmul.f32 %v678, 1.442695
        %v742 = vpow.pop %v741
        %v743 = vadd.f32 %v680, 1.0
        %v744 = vadd.f32 %v682, 1.0
        %v745 = vadd.f32 %v684, 1.0
        %v746 = vadd.f32 %v686, 1.0
        %v747 = vadd.f32 %v688, 1.0
        %v748 = vadd.f32 %v690, 1.0
        %v749 = vadd.f32 %v692, 1.0
        %v750 = vadd.f32 %v694, 1.0
        %v751 = vadd.f32 %v696, 1.0
        %v752 = vadd.f32 %v698, 1.0
        %v753 = vadd.f32 %v700, 1.0
        %v754 = vadd.f32 %v702, 1.0
        %v755 = vadd.f32 %v704, 1.0
        %v756 = vadd.f32 %v706, 1.0
        %v757 = vadd.f32 %v708, 1.0
        %v758 = vadd.f32 %v710, 1.0
        %v759 = vadd.f32 %v712, 1.0
        %v760 = vadd.f32 %v714, 1.0
        %v761 = vadd.f32 %v716, 1.0
        %v762 = vadd.f32 %v718, 1.0
        %v763 = vadd.f32 %v720, 1.0
        %v764 = vadd.f32 %v722, 1.0
        %v765 = vadd.f32 %v724, 1.0
        %v766 = vadd.f32 %v726, 1.0
        %v767 = vadd.f32 %v728, 1.0
        %v768 = vadd.f32 %v730, 1.0
        %v769 = vadd.f32 %v732, 1.0
        %v770 = vadd.f32 %v734, 1.0
        %v771 = vadd.f32 %v736, 1.0
        %v772 = vadd.f32 %v738, 1.0
        %v773 = vadd.f32 %v740, 1.0
        %v774 = vadd.f32 %v742, 1.0
        %v775 = vrcp.pop %v743
        %v776 = vmul.f32 %v743, %v775
        %v777 = vsub.f32 1.0, %v776
        %v778 = vmul.f32 %v775, %v777
        %v779 = vadd.f32 %v775, %v778
        %vm780 = vweird.f32 %v743
        %vm781 = vweird.f32 %v775
        %vm782 = vmor %vm780, %vm781
        %v783 = vsel %vm782, %v775, %v779
        %v784 = vand.u32 2147483647, %v743
        %vm785 = vcmp.eq.f32.partialorder %v784, 8.507059e+37
        %v786 = vand.u32 %v743, 2147483648
        %v787 = vor.u32 1.1754944e-38, %v786
        %v788 = vsel %vm785, %v787, %v783
        %v789 = vmul.f32 1.0, %v788
        %v790 = vrcp.pop %v744
        %v791 = vmul.f32 %v744, %v790
        %v792 = vsub.f32 1.0, %v791
        %v793 = vmul.f32 %v790, %v792
        %v794 = vadd.f32 %v790, %v793
        %vm795 = vweird.f32 %v744
        %vm796 = vweird.f32 %v790
        %vm797 = vmor %vm795, %vm796
        %v798 = vsel %vm797, %v790, %v794
        %v799 = vand.u32 2147483647, %v744
        %vm800 = vcmp.eq.f32.partialorder %v799, 8.507059e+37
        %v801 = vand.u32 %v744, 2147483648
        %v802 = vor.u32 1.1754944e-38, %v801
        %v803 = vsel %vm800, %v802, %v798
        %v804 = vmul.f32 1.0, %v803
        %v805 = vrcp.pop %v745
        %v806 = vmul.f32 %v745, %v805
        %v807 = vsub.f32 1.0, %v806
        %v808 = vmul.f32 %v805, %v807
        %v809 = vadd.f32 %v805, %v808
        %vm810 = vweird.f32 %v745
        %vm811 = vweird.f32 %v805
        %vm812 = vmor %vm810, %vm811
        %v813 = vsel %vm812, %v805, %v809
        %v814 = vand.u32 2147483647, %v745
        %vm815 = vcmp.eq.f32.partialorder %v814, 8.507059e+37
        %v816 = vand.u32 %v745, 2147483648
        %v817 = vor.u32 1.1754944e-38, %v816
        %v818 = vsel %vm815, %v817, %v813
        %v819 = vmul.f32 1.0, %v818
        %v820 = vrcp.pop %v746
        %v821 = vmul.f32 %v746, %v820
        %v822 = vsub.f32 1.0, %v821
        %v823 = vmul.f32 %v820, %v822
        %v824 = vadd.f32 %v820, %v823
        %vm825 = vweird.f32 %v746
        %vm826 = vweird.f32 %v820
        %vm827 = vmor %vm825, %vm826
        %v828 = vsel %vm827, %v820, %v824
        %v829 = vand.u32 2147483647, %v746
        %vm830 = vcmp.eq.f32.partialorder %v829, 8.507059e+37
        %v831 = vand.u32 %v746, 2147483648
        %v832 = vor.u32 1.1754944e-38, %v831
        %v833 = vsel %vm830, %v832, %v828
        %v834 = vmul.f32 1.0, %v833
        %v835 = vrcp.pop %v747
        %v836 = vmul.f32 %v747, %v835
        %v837 = vsub.f32 1.0, %v836
        %v838 = vmul.f32 %v835, %v837
        %v839 = vadd.f32 %v835, %v838
        %vm840 = vweird.f32 %v747
        %vm841 = vweird.f32 %v835
        %vm842 = vmor %vm840, %vm841
        %v843 = vsel %vm842, %v835, %v839
        %v844 = vand.u32 2147483647, %v747
        %vm845 = vcmp.eq.f32.partialorder %v844, 8.507059e+37
        %v846 = vand.u32 %v747, 2147483648
        %v847 = vor.u32 1.1754944e-38, %v846
        %v848 = vsel %vm845, %v847, %v843
        %v849 = vmul.f32 1.0, %v848
        %v850 = vrcp.pop %v748
        %v851 = vmul.f32 %v748, %v850
        %v852 = vsub.f32 1.0, %v851
        %v853 = vmul.f32 %v850, %v852
        %v854 = vadd.f32 %v850, %v853
        %vm855 = vweird.f32 %v748
        %vm856 = vweird.f32 %v850
        %vm857 = vmor %vm855, %vm856
        %v858 = vsel %vm857, %v850, %v854
        %v859 = vand.u32 2147483647, %v748
        %vm860 = vcmp.eq.f32.partialorder %v859, 8.507059e+37
        %v861 = vand.u32 %v748, 2147483648
        %v862 = vor.u32 1.1754944e-38, %v861
        %v863 = vsel %vm860, %v862, %v858
        %v864 = vmul.f32 1.0, %v863
        %v865 = vrcp.pop %v749
        %v866 = vmul.f32 %v749, %v865
        %v867 = vsub.f32 1.0, %v866
        %v868 = vmul.f32 %v865, %v867
        %v869 = vadd.f32 %v865, %v868
        %vm870 = vweird.f32 %v749
        %vm871 = vweird.f32 %v865
        %vm872 = vmor %vm870, %vm871
        %v873 = vsel %vm872, %v865, %v869
        %v874 = vand.u32 2147483647, %v749
        %vm875 = vcmp.eq.f32.partialorder %v874, 8.507059e+37
        %v876 = vand.u32 %v749, 2147483648
        %v877 = vor.u32 1.1754944e-38, %v876
        %v878 = vsel %vm875, %v877, %v873
        %v879 = vmul.f32 1.0, %v878
        %v880 = vrcp.pop %v750
        %v881 = vmul.f32 %v750, %v880
        %v882 = vsub.f32 1.0, %v881
        %v883 = vmul.f32 %v880, %v882
        %v884 = vadd.f32 %v880, %v883
        %vm885 = vweird.f32 %v750
        %vm886 = vweird.f32 %v880
        %vm887 = vmor %vm885, %vm886
        %v888 = vsel %vm887, %v880, %v884
        %v889 = vand.u32 2147483647, %v750
        %vm890 = vcmp.eq.f32.partialorder %v889, 8.507059e+37
        %v891 = vand.u32 %v750, 2147483648
        %v892 = vor.u32 1.1754944e-38, %v891
        %v893 = vsel %vm890, %v892, %v888
        %v894 = vmul.f32 1.0, %v893
        %v895 = vrcp.pop %v751
        %v896 = vmul.f32 %v751, %v895
        %v897 = vsub.f32 1.0, %v896
        %v898 = vmul.f32 %v895, %v897
        %v899 = vadd.f32 %v895, %v898
        %vm900 = vweird.f32 %v751
        %vm901 = vweird.f32 %v895
        %vm902 = vmor %vm900, %vm901
        %v903 = vsel %vm902, %v895, %v899
        %v904 = vand.u32 2147483647, %v751
        %vm905 = vcmp.eq.f32.partialorder %v904, 8.507059e+37
        %v906 = vand.u32 %v751, 2147483648
        %v907 = vor.u32 1.1754944e-38, %v906
        %v908 = vsel %vm905, %v907, %v903
        %v909 = vmul.f32 1.0, %v908
        %v910 = vrcp.pop %v752
        %v911 = vmul.f32 %v752, %v910
        %v912 = vsub.f32 1.0, %v911
        %v913 = vmul.f32 %v910, %v912
        %v914 = vadd.f32 %v910, %v913
        %vm915 = vweird.f32 %v752
        %vm916 = vweird.f32 %v910
        %vm917 = vmor %vm915, %vm916
        %v918 = vsel %vm917, %v910, %v914
        %v919 = vand.u32 2147483647, %v752
        %vm920 = vcmp.eq.f32.partialorder %v919, 8.507059e+37
        %v921 = vand.u32 %v752, 2147483648
        %v922 = vor.u32 1.1754944e-38, %v921
        %v923 = vsel %vm920, %v922, %v918
        %v924 = vmul.f32 1.0, %v923
        %v925 = vrcp.pop %v753
        %v926 = vmul.f32 %v753, %v925
        %v927 = vsub.f32 1.0, %v926
        %v928 = vmul.f32 %v925, %v927
        %v929 = vadd.f32 %v925, %v928
        %vm930 = vweird.f32 %v753
        %vm931 = vweird.f32 %v925
        %vm932 = vmor %vm930, %vm931
        %v933 = vsel %vm932, %v925, %v929
        %v934 = vand.u32 2147483647, %v753
        %vm935 = vcmp.eq.f32.partialorder %v934, 8.507059e+37
        %v936 = vand.u32 %v753, 2147483648
        %v937 = vor.u32 1.1754944e-38, %v936
        %v938 = vsel %vm935, %v937, %v933
        %v939 = vmul.f32 1.0, %v938
        %v940 = vrcp.pop %v754
        %v941 = vmul.f32 %v754, %v940
        %v942 = vsub.f32 1.0, %v941
        %v943 = vmul.f32 %v940, %v942
        %v944 = vadd.f32 %v940, %v943
        %vm945 = vweird.f32 %v754
        %vm946 = vweird.f32 %v940
        %vm947 = vmor %vm945, %vm946
        %v948 = vsel %vm947, %v940, %v944
        %v949 = vand.u32 2147483647, %v754
        %vm950 = vcmp.eq.f32.partialorder %v949, 8.507059e+37
        %v951 = vand.u32 %v754, 2147483648
        %v952 = vor.u32 1.1754944e-38, %v951
        %v953 = vsel %vm950, %v952, %v948
        %v954 = vmul.f32 1.0, %v953
        %v955 = vrcp.pop %v755
        %v956 = vmul.f32 %v755, %v955
        %v957 = vsub.f32 1.0, %v956
        %v958 = vmul.f32 %v955, %v957
        %v959 = vadd.f32 %v955, %v958
        %vm960 = vweird.f32 %v755
        %vm961 = vweird.f32 %v955
        %vm962 = vmor %vm960, %vm961
        %v963 = vsel %vm962, %v955, %v959
        %v964 = vand.u32 2147483647, %v755
        %vm965 = vcmp.eq.f32.partialorder %v964, 8.507059e+37
        %v966 = vand.u32 %v755, 2147483648
        %v967 = vor.u32 1.1754944e-38, %v966
        %v968 = vsel %vm965, %v967, %v963
        %v969 = vmul.f32 1.0, %v968
        %v970 = vrcp.pop %v756
        %v971 = vmul.f32 %v756, %v970
        %v972 = vsub.f32 1.0, %v971
        %v973 = vmul.f32 %v970, %v972
        %v974 = vadd.f32 %v970, %v973
        %vm975 = vweird.f32 %v756
        %vm976 = vweird.f32 %v970
        %vm977 = vmor %vm975, %vm976
        %v978 = vsel %vm977, %v970, %v974
        %v979 = vand.u32 2147483647, %v756
        %vm980 = vcmp.eq.f32.partialorder %v979, 8.507059e+37
        %v981 = vand.u32 %v756, 2147483648
        %v982 = vor.u32 1.1754944e-38, %v981
        %v983 = vsel %vm980, %v982, %v978
        %v984 = vmul.f32 1.0, %v983
        %v985 = vrcp.pop %v757
        %v986 = vmul.f32 %v757, %v985
        %v987 = vsub.f32 1.0, %v986
        %v988 = vmul.f32 %v985, %v987
        %v989 = vadd.f32 %v985, %v988
        %vm990 = vweird.f32 %v757
        %vm991 = vweird.f32 %v985
        %vm992 = vmor %vm990, %vm991
        %v993 = vsel %vm992, %v985, %v989
        %v994 = vand.u32 2147483647, %v757
        %vm995 = vcmp.eq.f32.partialorder %v994, 8.507059e+37
        %v996 = vand.u32 %v757, 2147483648
        %v997 = vor.u32 1.1754944e-38, %v996
        %v998 = vsel %vm995, %v997, %v993
        %v999 = vmul.f32 1.0, %v998
        %v1000 = vrcp.pop %v758
        %v1001 = vmul.f32 %v758, %v1000
        %v1002 = vsub.f32 1.0, %v1001
        %v1003 = vmul.f32 %v1000, %v1002
        %v1004 = vadd.f32 %v1000, %v1003
        %vm1005 = vweird.f32 %v758
        %vm1006 = vweird.f32 %v1000
        %vm1007 = vmor %vm1005, %vm1006
        %v1008 = vsel %vm1007, %v1000, %v1004
        %v1009 = vand.u32 2147483647, %v758
        %vm1010 = vcmp.eq.f32.partialorder %v1009, 8.507059e+37
        %v1011 = vand.u32 %v758, 2147483648
        %v1012 = vor.u32 1.1754944e-38, %v1011
        %v1013 = vsel %vm1010, %v1012, %v1008
        %v1014 = vmul.f32 1.0, %v1013
        %v1015 = vrcp.pop %v759
        %v1016 = vmul.f32 %v759, %v1015
        %v1017 = vsub.f32 1.0, %v1016
        %v1018 = vmul.f32 %v1015, %v1017
        %v1019 = vadd.f32 %v1015, %v1018
        %vm1020 = vweird.f32 %v759
        %vm1021 = vweird.f32 %v1015
        %vm1022 = vmor %vm1020, %vm1021
        %v1023 = vsel %vm1022, %v1015, %v1019
        %v1024 = vand.u32 2147483647, %v759
        %vm1025 = vcmp.eq.f32.partialorder %v1024, 8.507059e+37
        %v1026 = vand.u32 %v759, 2147483648
        %v1027 = vor.u32 1.1754944e-38, %v1026
        %v1028 = vsel %vm1025, %v1027, %v1023
        %v1029 = vmul.f32 1.0, %v1028
        %v1030 = vrcp.pop %v760
        %v1031 = vmul.f32 %v760, %v1030
        %v1032 = vsub.f32 1.0, %v1031
        %v1033 = vmul.f32 %v1030, %v1032
        %v1034 = vadd.f32 %v1030, %v1033
        %vm1035 = vweird.f32 %v760
        %vm1036 = vweird.f32 %v1030
        %vm1037 = vmor %vm1035, %vm1036
        %v1038 = vsel %vm1037, %v1030, %v1034
        %v1039 = vand.u32 2147483647, %v760
        %vm1040 = vcmp.eq.f32.partialorder %v1039, 8.507059e+37
        %v1041 = vand.u32 %v760, 2147483648
        %v1042 = vor.u32 1.1754944e-38, %v1041
        %v1043 = vsel %vm1040, %v1042, %v1038
        %v1044 = vmul.f32 1.0, %v1043
        %v1045 = vrcp.pop %v761
        %v1046 = vmul.f32 %v761, %v1045
        %v1047 = vsub.f32 1.0, %v1046
        %v1048 = vmul.f32 %v1045, %v1047
        %v1049 = vadd.f32 %v1045, %v1048
        %vm1050 = vweird.f32 %v761
        %vm1051 = vweird.f32 %v1045
        %vm1052 = vmor %vm1050, %vm1051
        %v1053 = vsel %vm1052, %v1045, %v1049
        %v1054 = vand.u32 2147483647, %v761
        %vm1055 = vcmp.eq.f32.partialorder %v1054, 8.507059e+37
        %v1056 = vand.u32 %v761, 2147483648
        %v1057 = vor.u32 1.1754944e-38, %v1056
        %v1058 = vsel %vm1055, %v1057, %v1053
        %v1059 = vmul.f32 1.0, %v1058
        %v1060 = vrcp.pop %v762
        %v1061 = vmul.f32 %v762, %v1060
        %v1062 = vsub.f32 1.0, %v1061
        %v1063 = vmul.f32 %v1060, %v1062
        %v1064 = vadd.f32 %v1060, %v1063
        %vm1065 = vweird.f32 %v762
        %vm1066 = vweird.f32 %v1060
        %vm1067 = vmor %vm1065, %vm1066
        %v1068 = vsel %vm1067, %v1060, %v1064
        %v1069 = vand.u32 2147483647, %v762
        %vm1070 = vcmp.eq.f32.partialorder %v1069, 8.507059e+37
        %v1071 = vand.u32 %v762, 2147483648
        %v1072 = vor.u32 1.1754944e-38, %v1071
        %v1073 = vsel %vm1070, %v1072, %v1068
        %v1074 = vmul.f32 1.0, %v1073
        %v1075 = vrcp.pop %v763
        %v1076 = vmul.f32 %v763, %v1075
        %v1077 = vsub.f32 1.0, %v1076
        %v1078 = vmul.f32 %v1075, %v1077
        %v1079 = vadd.f32 %v1075, %v1078
        %vm1080 = vweird.f32 %v763
        %vm1081 = vweird.f32 %v1075
        %vm1082 = vmor %vm1080, %vm1081
        %v1083 = vsel %vm1082, %v1075, %v1079
        %v1084 = vand.u32 2147483647, %v763
        %vm1085 = vcmp.eq.f32.partialorder %v1084, 8.507059e+37
        %v1086 = vand.u32 %v763, 2147483648
        %v1087 = vor.u32 1.1754944e-38, %v1086
        %v1088 = vsel %vm1085, %v1087, %v1083
        %v1089 = vmul.f32 1.0, %v1088
        %v1090 = vrcp.pop %v764
        %v1091 = vmul.f32 %v764, %v1090
        %v1092 = vsub.f32 1.0, %v1091
        %v1093 = vmul.f32 %v1090, %v1092
        %v1094 = vadd.f32 %v1090, %v1093
        %vm1095 = vweird.f32 %v764
        %vm1096 = vweird.f32 %v1090
        %vm1097 = vmor %vm1095, %vm1096
        %v1098 = vsel %vm1097, %v1090, %v1094
        %v1099 = vand.u32 2147483647, %v764
        %vm1100 = vcmp.eq.f32.partialorder %v1099, 8.507059e+37
        %v1101 = vand.u32 %v764, 2147483648
        %v1102 = vor.u32 1.1754944e-38, %v1101
        %v1103 = vsel %vm1100, %v1102, %v1098
        %v1104 = vmul.f32 1.0, %v1103
        %v1105 = vrcp.pop %v765
        %v1106 = vmul.f32 %v765, %v1105
        %v1107 = vsub.f32 1.0, %v1106
        %v1108 = vmul.f32 %v1105, %v1107
        %v1109 = vadd.f32 %v1105, %v1108
        %vm1110 = vweird.f32 %v765
        %vm1111 = vweird.f32 %v1105
        %vm1112 = vmor %vm1110, %vm1111
        %v1113 = vsel %vm1112, %v1105, %v1109
        %v1114 = vand.u32 2147483647, %v765
        %vm1115 = vcmp.eq.f32.partialorder %v1114, 8.507059e+37
        %v1116 = vand.u32 %v765, 2147483648
        %v1117 = vor.u32 1.1754944e-38, %v1116
        %v1118 = vsel %vm1115, %v1117, %v1113
        %v1119 = vmul.f32 1.0, %v1118
        %v1120 = vrcp.pop %v766
        %v1121 = vmul.f32 %v766, %v1120
        %v1122 = vsub.f32 1.0, %v1121
        %v1123 = vmul.f32 %v1120, %v1122
        %v1124 = vadd.f32 %v1120, %v1123
        %vm1125 = vweird.f32 %v766
        %vm1126 = vweird.f32 %v1120
        %vm1127 = vmor %vm1125, %vm1126
        %v1128 = vsel %vm1127, %v1120, %v1124
        %v1129 = vand.u32 2147483647, %v766
        %vm1130 = vcmp.eq.f32.partialorder %v1129, 8.507059e+37
        %v1131 = vand.u32 %v766, 2147483648
        %v1132 = vor.u32 1.1754944e-38, %v1131
        %v1133 = vsel %vm1130, %v1132, %v1128
        %v1134 = vmul.f32 1.0, %v1133
        %v1135 = vrcp.pop %v767
        %v1136 = vmul.f32 %v767, %v1135
        %v1137 = vsub.f32 1.0, %v1136
        %v1138 = vmul.f32 %v1135, %v1137
        %v1139 = vadd.f32 %v1135, %v1138
        %vm1140 = vweird.f32 %v767
        %vm1141 = vweird.f32 %v1135
        %vm1142 = vmor %vm1140, %vm1141
        %v1143 = vsel %vm1142, %v1135, %v1139
        %v1144 = vand.u32 2147483647, %v767
        %vm1145 = vcmp.eq.f32.partialorder %v1144, 8.507059e+37
        %v1146 = vand.u32 %v767, 2147483648
        %v1147 = vor.u32 1.1754944e-38, %v1146
        %v1148 = vsel %vm1145, %v1147, %v1143
        %v1149 = vmul.f32 1.0, %v1148
        %v1150 = vrcp.pop %v768
        %v1151 = vmul.f32 %v768, %v1150
        %v1152 = vsub.f32 1.0, %v1151
        %v1153 = vmul.f32 %v1150, %v1152
        %v1154 = vadd.f32 %v1150, %v1153
        %vm1155 = vweird.f32 %v768
        %vm1156 = vweird.f32 %v1150
        %vm1157 = vmor %vm1155, %vm1156
        %v1158 = vsel %vm1157, %v1150, %v1154
        %v1159 = vand.u32 2147483647, %v768
        %vm1160 = vcmp.eq.f32.partialorder %v1159, 8.507059e+37
        %v1161 = vand.u32 %v768, 2147483648
        %v1162 = vor.u32 1.1754944e-38, %v1161
        %v1163 = vsel %vm1160, %v1162, %v1158
        %v1164 = vmul.f32 1.0, %v1163
        %v1165 = vrcp.pop %v769
        %v1166 = vmul.f32 %v769, %v1165
        %v1167 = vsub.f32 1.0, %v1166
        %v1168 = vmul.f32 %v1165, %v1167
        %v1169 = vadd.f32 %v1165, %v1168
        %vm1170 = vweird.f32 %v769
        %vm1171 = vweird.f32 %v1165
        %vm1172 = vmor %vm1170, %vm1171
        %v1173 = vsel %vm1172, %v1165, %v1169
        %v1174 = vand.u32 2147483647, %v769
        %vm1175 = vcmp.eq.f32.partialorder %v1174, 8.507059e+37
        %v1176 = vand.u32 %v769, 2147483648
        %v1177 = vor.u32 1.1754944e-38, %v1176
        %v1178 = vsel %vm1175, %v1177, %v1173
        %v1179 = vmul.f32 1.0, %v1178
        %v1180 = vrcp.pop %v770
        %v1181 = vmul.f32 %v770, %v1180
        %v1182 = vsub.f32 1.0, %v1181
        %v1183 = vmul.f32 %v1180, %v1182
        %v1184 = vadd.f32 %v1180, %v1183
        %vm1185 = vweird.f32 %v770
        %vm1186 = vweird.f32 %v1180
        %vm1187 = vmor %vm1185, %vm1186
        %v1188 = vsel %vm1187, %v1180, %v1184
        %v1189 = vand.u32 2147483647, %v770
        %vm1190 = vcmp.eq.f32.partialorder %v1189, 8.507059e+37
        %v1191 = vand.u32 %v770, 2147483648
        %v1192 = vor.u32 1.1754944e-38, %v1191
        %v1193 = vsel %vm1190, %v1192, %v1188
        %v1194 = vmul.f32 1.0, %v1193
        %v1195 = vrcp.pop %v771
        %v1196 = vmul.f32 %v771, %v1195
        %v1197 = vsub.f32 1.0, %v1196
        %v1198 = vmul.f32 %v1195, %v1197
        %v1199 = vadd.f32 %v1195, %v1198
        %vm1200 = vweird.f32 %v771
        %vm1201 = vweird.f32 %v1195
        %vm1202 = vmor %vm1200, %vm1201
        %v1203 = vsel %vm1202, %v1195, %v1199
        %v1204 = vand.u32 2147483647, %v771
        %vm1205 = vcmp.eq.f32.partialorder %v1204, 8.507059e+37
        %v1206 = vand.u32 %v771, 2147483648
        %v1207 = vor.u32 1.1754944e-38, %v1206
        %v1208 = vsel %vm1205, %v1207, %v1203
        %v1209 = vmul.f32 1.0, %v1208
        %v1210 = vrcp.pop %v772
        %v1211 = vmul.f32 %v772, %v1210
        %v1212 = vsub.f32 1.0, %v1211
        %v1213 = vmul.f32 %v1210, %v1212
        %v1214 = vadd.f32 %v1210, %v1213
        %vm1215 = vweird.f32 %v772
        %vm1216 = vweird.f32 %v1210
        %vm1217 = vmor %vm1215, %vm1216
        %v1218 = vsel %vm1217, %v1210, %v1214
        %v1219 = vand.u32 2147483647, %v772
        %vm1220 = vcmp.eq.f32.partialorder %v1219, 8.507059e+37
        %v1221 = vand.u32 %v772, 2147483648
        %v1222 = vor.u32 1.1754944e-38, %v1221
        %v1223 = vsel %vm1220, %v1222, %v1218
        %v1224 = vmul.f32 1.0, %v1223
        %v1225 = vrcp.pop %v773
        %v1226 = vmul.f32 %v773, %v1225
        %v1227 = vsub.f32 1.0, %v1226
        %v1228 = vmul.f32 %v1225, %v1227
        %v1229 = vadd.f32 %v1225, %v1228
        %vm1230 = vweird.f32 %v773
        %vm1231 = vweird.f32 %v1225
        %vm1232 = vmor %vm1230, %vm1231
        %v1233 = vsel %vm1232, %v1225, %v1229
        %v1234 = vand.u32 2147483647, %v773
        %vm1235 = vcmp.eq.f32.partialorder %v1234, 8.507059e+37
        %v1236 = vand.u32 %v773, 2147483648
        %v1237 = vor.u32 1.1754944e-38, %v1236
        %v1238 = vsel %vm1235, %v1237, %v1233
        %v1239 = vmul.f32 1.0, %v1238
        %v1240 = vrcp.pop %v774
        %v1241 = vmul.f32 %v774, %v1240
        %v1242 = vsub.f32 1.0, %v1241
        %v1243 = vmul.f32 %v1240, %v1242
        %v1244 = vadd.f32 %v1240, %v1243
        %vm1245 = vweird.f32 %v774
        %vm1246 = vweird.f32 %v1240
        %vm1247 = vmor %vm1245, %vm1246
        %v1248 = vsel %vm1247, %v1240, %v1244
        %v1249 = vand.u32 2147483647, %v774
        %vm1250 = vcmp.eq.f32.partialorder %v1249, 8.507059e+37
        %v1251 = vand.u32 %v774, 2147483648
        %v1252 = vor.u32 1.1754944e-38, %v1251
        %v1253 = vsel %vm1250, %v1252, %v1248
        %v1254 = vmul.f32 1.0, %v1253
        %v1255 = vmul.f32 %v291, %v291
        %v1256 = vmul.f32 %v292, %v292
        %v1257 = vmul.f32 %v293, %v293
        %v1258 = vmul.f32 %v294, %v294
        %v1259 = vmul.f32 %v295, %v295
        %v1260 = vmul.f32 %v296, %v296
        %v1261 = vmul.f32 %v297, %v297
        %v1262 = vmul.f32 %v298, %v298
        %v1263 = vmul.f32 %v299, %v299
        %v1264 = vmul.f32 %v300, %v300
        %v1265 = vmul.f32 %v301, %v301
        %v1266 = vmul.f32 %v302, %v302
        %v1267 = vmul.f32 %v303, %v303
        %v1268 = vmul.f32 %v304, %v304
        %v1269 = vmul.f32 %v305, %v305
        %v1270 = vmul.f32 %v306, %v306
        %v1271 = vmul.f32 %v307, %v307
        %v1272 = vmul.f32 %v308, %v308
        %v1273 = vmul.f32 %v309, %v309
        %v1274 = vmul.f32 %v310, %v310
        %v1275 = vmul.f32 %v311, %v311
        %v1276 = vmul.f32 %v312, %v312
        %v1277 = vmul.f32 %v313, %v313
        %v1278 = vmul.f32 %v314, %v314
        %v1279 = vmul.f32 %v315, %v315
        %v1280 = vmul.f32 %v316, %v316
        %v1281 = vmul.f32 %v317, %v317
        %v1282 = vmul.f32 %v318, %v318
        %v1283 = vmul.f32 %v319, %v319
        %v1284 = vmul.f32 %v320, %v320
        %v1285 = vmul.f32 %v321, %v321
        %v1286 = vmul.f32 %v322, %v322
        %v1287 = vmul.f32 %v324, %v324
        %v1288 = vmul.f32 %v325, %v325
        %v1289 = vmul.f32 %v326, %v326
        %v1290 = vmul.f32 %v327, %v327
        %v1291 = vmul.f32 %v328, %v328
        %v1292 = vmul.f32 %v329, %v329
        %v1293 = vmul.f32 %v330, %v330
        %v1294 = vmul.f32 %v331, %v331
        %v1295 = vmul.f32 %v332, %v332
        %v1296 = vmul.f32 %v333, %v333
        %v1297 = vmul.f32 %v334, %v334
        %v1298 = vmul.f32 %v335, %v335
        %v1299 = vmul.f32 %v336, %v336
        %v1300 = vmul.f32 %v337, %v337
        %v1301 = vmul.f32 %v338, %v338
        %v1302 = vmul.f32 %v339, %v339
        %v1303 = vmul.f32 %v340, %v340
        %v1304 = vmul.f32 %v341, %v341
        %v1305 = vmul.f32 %v342, %v342
        %v1306 = vmul.f32 %v343, %v343
        %v1307 = vmul.f32 %v344, %v344
        %v1308 = vmul.f32 %v345, %v345
        %v1309 = vmul.f32 %v346, %v346
        %v1310 = vmul.f32 %v347, %v347
        %v1311 = vmul.f32 %v348, %v348
        %v1312 = vmul.f32 %v349, %v349
        %v1313 = vmul.f32 %v350, %v350
        %v1314 = vmul.f32 %v351, %v351
        %v1315 = vmul.f32 %v352, %v352
        %v1316 = vmul.f32 %v353, %v353
        %v1317 = vmul.f32 %v354, %v354
        %v1318 = vmul.f32 %v355, %v355
        %v1319 = vadd.f32 %v1255, %v1287
        %v1320 = vadd.f32 %v1256, %v1288
        %v1321 = vadd.f32 %v1257, %v1289
        %v1322 = vadd.f32 %v1258, %v1290
        %v1323 = vadd.f32 %v1259, %v1291
        %v1324 = vadd.f32 %v1260, %v1292
        %v1325 = vadd.f32 %v1261, %v1293
        %v1326 = vadd.f32 %v1262, %v1294
        %v1327 = vadd.f32 %v1263, %v1295
        %v1328 = vadd.f32 %v1264, %v1296
        %v1329 = vadd.f32 %v1265, %v1297
        %v1330 = vadd.f32 %v1266, %v1298
        %v1331 = vadd.f32 %v1267, %v1299
        %v1332 = vadd.f32 %v1268, %v1300
        %v1333 = vadd.f32 %v1269, %v1301
        %v1334 = vadd.f32 %v1270, %v1302
        %v1335 = vadd.f32 %v1271, %v1303
        %v1336 = vadd.f32 %v1272, %v1304
        %v1337 = vadd.f32 %v1273, %v1305
        %v1338 = vadd.f32 %v1274, %v1306
        %v1339 = vadd.f32 %v1275, %v1307
        %v1340 = vadd.f32 %v1276, %v1308
        %v1341 = vadd.f32 %v1277, %v1309
        %v1342 = vadd.f32 %v1278, %v1310
        %v1343 = vadd.f32 %v1279, %v1311
        %v1344 = vadd.f32 %v1280, %v1312
        %v1345 = vadd.f32 %v1281, %v1313
        %v1346 = vadd.f32 %v1282, %v1314
        %v1347 = vadd.f32 %v1283, %v1315
        %v1348 = vadd.f32 %v1284, %v1316
        %v1349 = vadd.f32 %v1285, %v1317
        %v1350 = vadd.f32 %v1286, %v1318
        %v1351 = vmul.f32 %v357, %v357
        %v1352 = vmul.f32 %v358, %v358
        %v1353 = vmul.f32 %v359, %v359
        %v1354 = vmul.f32 %v360, %v360
        %v1355 = vmul.f32 %v361, %v361
        %v1356 = vmul.f32 %v362, %v362
        %v1357 = vmul.f32 %v363, %v363
        %v1358 = vmul.f32 %v364, %v364
        %v1359 = vmul.f32 %v365, %v365
        %v1360 = vmul.f32 %v366, %v366
        %v1361 = vmul.f32 %v367, %v367
        %v1362 = vmul.f32 %v368, %v368
        %v1363 = vmul.f32 %v369, %v369
        %v1364 = vmul.f32 %v370, %v370
        %v1365 = vmul.f32 %v371, %v371
        %v1366 = vmul.f32 %v372, %v372
        %v1367 = vmul.f32 %v373, %v373
        %v1368 = vmul.f32 %v374, %v374
        %v1369 = vmul.f32 %v375, %v375
        %v1370 = vmul.f32 %v376, %v376
        %v1371 = vmul.f32 %v377, %v377
        %v1372 = vmul.f32 %v378, %v378
        %v1373 = vmul.f32 %v379, %v379
        %v1374 = vmul.f32 %v380, %v380
        %v1375 = vmul.f32 %v381, %v381
        %v1376 = vmul.f32 %v382, %v382
        %v1377 = vmul.f32 %v383, %v383
        %v1378 = vmul.f32 %v384, %v384
        %v1379 = vmul.f32 %v385, %v385
        %v1380 = vmul.f32 %v386, %v386
        %v1381 = vmul.f32 %v387, %v387
        %v1382 = vmul.f32 %v388, %v388
        %v1383 = vadd.f32 %v1319, %v1351
        %v1384 = vadd.f32 %v1320, %v1352
        %v1385 = vadd.f32 %v1321, %v1353
        %v1386 = vadd.f32 %v1322, %v1354
        %v1387 = vadd.f32 %v1323, %v1355
        %v1388 = vadd.f32 %v1324, %v1356
        %v1389 = vadd.f32 %v1325, %v1357
        %v1390 = vadd.f32 %v1326, %v1358
        %v1391 = vadd.f32 %v1327, %v1359
        %v1392 = vadd.f32 %v1328, %v1360
        %v1393 = vadd.f32 %v1329, %v1361
        %v1394 = vadd.f32 %v1330, %v1362
        %v1395 = vadd.f32 %v1331, %v1363
        %v1396 = vadd.f32 %v1332, %v1364
        %v1397 = vadd.f32 %v1333, %v1365
        %v1398 = vadd.f32 %v1334, %v1366
        %v1399 = vadd.f32 %v1335, %v1367
        %v1400 = vadd.f32 %v1336, %v1368
        %v1401 = vadd.f32 %v1337, %v1369
        %v1402 = vadd.f32 %v1338, %v1370
        %v1403 = vadd.f32 %v1339, %v1371
        %v1404 = vadd.f32 %v1340, %v1372
        %v1405 = vadd.f32 %v1341, %v1373
        %v1406 = vadd.f32 %v1342, %v1374
        %v1407 = vadd.f32 %v1343, %v1375
        %v1408 = vadd.f32 %v1344, %v1376
        %v1409 = vadd.f32 %v1345, %v1377
        %v1410 = vadd.f32 %v1346, %v1378
        %v1411 = vadd.f32 %v1347, %v1379
        %v1412 = vadd.f32 %v1348, %v1380
        %v1413 = vadd.f32 %v1349, %v1381
        %v1414 = vadd.f32 %v1350, %v1382
        %v1415 = vmul.f32 %v390, %v390
        %v1416 = vmul.f32 %v391, %v391
        %v1417 = vmul.f32 %v392, %v392
        %v1418 = vmul.f32 %v393, %v393
        %v1419 = vmul.f32 %v394, %v394
        %v1420 = vmul.f32 %v395, %v395
        %v1421 = vmul.f32 %v396, %v396
        %v1422 = vmul.f32 %v397, %v397
        %v1423 = vmul.f32 %v398, %v398
        %v1424 = vmul.f32 %v399, %v399
        %v1425 = vmul.f32 %v400, %v400
        %v1426 = vmul.f32 %v401, %v401
        %v1427 = vmul.f32 %v402, %v402
        %v1428 = vmul.f32 %v403, %v403
        %v1429 = vmul.f32 %v404, %v404
        %v1430 = vmul.f32 %v405, %v405
        %v1431 = vmul.f32 %v406, %v406
        %v1432 = vmul.f32 %v407, %v407
        %v1433 = vmul.f32 %v408, %v408
        %v1434 = vmul.f32 %v409, %v409
        %v1435 = vmul.f32 %v410, %v410
        %v1436 = vmul.f32 %v411, %v411
        %v1437 = vmul.f32 %v412, %v412
        %v1438 = vmul.f32 %v413, %v413
        %v1439 = vmul.f32 %v414, %v414
        %v1440 = vmul.f32 %v415, %v415
        %v1441 = vmul.f32 %v416, %v416
        %v1442 = vmul.f32 %v417, %v417
        %v1443 = vmul.f32 %v418, %v418
        %v1444 = vmul.f32 %v419, %v419
        %v1445 = vmul.f32 %v420, %v420
        %v1446 = vmul.f32 %v421, %v421
        %v1447 = vadd.f32 %v1383, %v1415
        %v1448 = vadd.f32 %v1384, %v1416
        %v1449 = vadd.f32 %v1385, %v1417
        %v1450 = vadd.f32 %v1386, %v1418
        %v1451 = vadd.f32 %v1387, %v1419
        %v1452 = vadd.f32 %v1388, %v1420
        %v1453 = vadd.f32 %v1389, %v1421
        %v1454 = vadd.f32 %v1390, %v1422
        %v1455 = vadd.f32 %v1391, %v1423
        %v1456 = vadd.f32 %v1392, %v1424
        %v1457 = vadd.f32 %v1393, %v1425
        %v1458 = vadd.f32 %v1394, %v1426
        %v1459 = vadd.f32 %v1395, %v1427
        %v1460 = vadd.f32 %v1396, %v1428
        %v1461 = vadd.f32 %v1397, %v1429
        %v1462 = vadd.f32 %v1398, %v1430
        %v1463 = vadd.f32 %v1399, %v1431
        %v1464 = vadd.f32 %v1400, %v1432
        %v1465 = vadd.f32 %v1401, %v1433
        %v1466 = vadd.f32 %v1402, %v1434
        %v1467 = vadd.f32 %v1403, %v1435
        %v1468 = vadd.f32 %v1404, %v1436
        %v1469 = vadd.f32 %v1405, %v1437
        %v1470 = vadd.f32 %v1406, %v1438
        %v1471 = vadd.f32 %v1407, %v1439
        %v1472 = vadd.f32 %v1408, %v1440
        %v1473 = vadd.f32 %v1409, %v1441
        %v1474 = vadd.f32 %v1410, %v1442
        %v1475 = vadd.f32 %v1411, %v1443
        %v1476 = vadd.f32 %v1412, %v1444
        %v1477 = vadd.f32 %v1413, %v1445
        %v1478 = vadd.f32 %v1414, %v1446
        %v1479 = vmax.f32 %v1447, 1e-24
        %v1480 = vmax.f32 %v1448, 1e-24
        %v1481 = vmax.f32 %v1449, 1e-24
        %v1482 = vmax.f32 %v1450, 1e-24
        %v1483 = vmax.f32 %v1451, 1e-24
        %v1484 = vmax.f32 %v1452, 1e-24
        %v1485 = vmax.f32 %v1453, 1e-24
        %v1486 = vmax.f32 %v1454, 1e-24
        %v1487 = vmax.f32 %v1455, 1e-24
        %v1488 = vmax.f32 %v1456, 1e-24
        %v1489 = vmax.f32 %v1457, 1e-24
        %v1490 = vmax.f32 %v1458, 1e-24
        %v1491 = vmax.f32 %v1459, 1e-24
        %v1492 = vmax.f32 %v1460, 1e-24
        %v1493 = vmax.f32 %v1461, 1e-24
        %v1494 = vmax.f32 %v1462, 1e-24
        %v1495 = vmax.f32 %v1463, 1e-24
        %v1496 = vmax.f32 %v1464, 1e-24
        %v1497 = vmax.f32 %v1465, 1e-24
        %v1498 = vmax.f32 %v1466, 1e-24
        %v1499 = vmax.f32 %v1467, 1e-24
        %v1500 = vmax.f32 %v1468, 1e-24
        %v1501 = vmax.f32 %v1469, 1e-24
        %v1502 = vmax.f32 %v1470, 1e-24
        %v1503 = vmax.f32 %v1471, 1e-24
        %v1504 = vmax.f32 %v1472, 1e-24
        %v1505 = vmax.f32 %v1473, 1e-24
        %v1506 = vmax.f32 %v1474, 1e-24
        %v1507 = vmax.f32 %v1475, 1e-24
        %v1508 = vmax.f32 %v1476, 1e-24
        %v1509 = vmax.f32 %v1477, 1e-24
        %v1510 = vmax.f32 %v1478, 1e-24
        %v1511 = vrsqrt.pop %v1479
        %v1512 = vmul.f32 %v1511, %v1479
        %v1513 = vmul.f32 %v1512, %v1511
        %v1514 = vmul.f32 0.5, %v1513
        %v1515 = vsub.f32 1.5, %v1514
        %v1516 = vmul.f32 %v1511, %v1515
        %vm1517 = vweird.f32 %v1479
        %vm1518 = vweird.f32 %v1511
        %vm1519 = vmor %vm1517, %vm1518
        %v1520 = vsel %vm1519, %v1511, %v1516
        %v1521 = vrsqrt.pop %v1480
        %v1522 = vmul.f32 %v1521, %v1480
        %v1523 = vmul.f32 %v1522, %v1521
        %v1524 = vmul.f32 0.5, %v1523
        %v1525 = vsub.f32 1.5, %v1524
        %v1526 = vmul.f32 %v1521, %v1525
        %vm1527 = vweird.f32 %v1480
        %vm1528 = vweird.f32 %v1521
        %vm1529 = vmor %vm1527, %vm1528
        %v1530 = vsel %vm1529, %v1521, %v1526
        %v1531 = vrsqrt.pop %v1481
        %v1532 = vmul.f32 %v1531, %v1481
        %v1533 = vmul.f32 %v1532, %v1531
        %v1534 = vmul.f32 0.5, %v1533
        %v1535 = vsub.f32 1.5, %v1534
        %v1536 = vmul.f32 %v1531, %v1535
        %vm1537 = vweird.f32 %v1481
        %vm1538 = vweird.f32 %v1531
        %vm1539 = vmor %vm1537, %vm1538
        %v1540 = vsel %vm1539, %v1531, %v1536
        %v1541 = vrsqrt.pop %v1482
        %v1542 = vmul.f32 %v1541, %v1482
        %v1543 = vmul.f32 %v1542, %v1541
        %v1544 = vmul.f32 0.5, %v1543
        %v1545 = vsub.f32 1.5, %v1544
        %v1546 = vmul.f32 %v1541, %v1545
        %vm1547 = vweird.f32 %v1482
        %vm1548 = vweird.f32 %v1541
        %vm1549 = vmor %vm1547, %vm1548
        %v1550 = vsel %vm1549, %v1541, %v1546
        %v1551 = vrsqrt.pop %v1483
        %v1552 = vmul.f32 %v1551, %v1483
        %v1553 = vmul.f32 %v1552, %v1551
        %v1554 = vmul.f32 0.5, %v1553
        %v1555 = vsub.f32 1.5, %v1554
        %v1556 = vmul.f32 %v1551, %v1555
        %vm1557 = vweird.f32 %v1483
        %vm1558 = vweird.f32 %v1551
        %vm1559 = vmor %vm1557, %vm1558
        %v1560 = vsel %vm1559, %v1551, %v1556
        %v1561 = vrsqrt.pop %v1484
        %v1562 = vmul.f32 %v1561, %v1484
        %v1563 = vmul.f32 %v1562, %v1561
        %v1564 = vmul.f32 0.5, %v1563
        %v1565 = vsub.f32 1.5, %v1564
        %v1566 = vmul.f32 %v1561, %v1565
        %vm1567 = vweird.f32 %v1484
        %vm1568 = vweird.f32 %v1561
        %vm1569 = vmor %vm1567, %vm1568
        %v1570 = vsel %vm1569, %v1561, %v1566
        %v1571 = vrsqrt.pop %v1485
        %v1572 = vmul.f32 %v1571, %v1485
        %v1573 = vmul.f32 %v1572, %v1571
        %v1574 = vmul.f32 0.5, %v1573
        %v1575 = vsub.f32 1.5, %v1574
        %v1576 = vmul.f32 %v1571, %v1575
        %vm1577 = vweird.f32 %v1485
        %vm1578 = vweird.f32 %v1571
        %vm1579 = vmor %vm1577, %vm1578
        %v1580 = vsel %vm1579, %v1571, %v1576
        %v1581 = vrsqrt.pop %v1486
        %v1582 = vmul.f32 %v1581, %v1486
        %v1583 = vmul.f32 %v1582, %v1581
        %v1584 = vmul.f32 0.5, %v1583
        %v1585 = vsub.f32 1.5, %v1584
        %v1586 = vmul.f32 %v1581, %v1585
        %vm1587 = vweird.f32 %v1486
        %vm1588 = vweird.f32 %v1581
        %vm1589 = vmor %vm1587, %vm1588
        %v1590 = vsel %vm1589, %v1581, %v1586
        %v1591 = vrsqrt.pop %v1487
        %v1592 = vmul.f32 %v1591, %v1487
        %v1593 = vmul.f32 %v1592, %v1591
        %v1594 = vmul.f32 0.5, %v1593
        %v1595 = vsub.f32 1.5, %v1594
        %v1596 = vmul.f32 %v1591, %v1595
        %vm1597 = vweird.f32 %v1487
        %vm1598 = vweird.f32 %v1591
        %vm1599 = vmor %vm1597, %vm1598
        %v1600 = vsel %vm1599, %v1591, %v1596
        %v1601 = vrsqrt.pop %v1488
        %v1602 = vmul.f32 %v1601, %v1488
        %v1603 = vmul.f32 %v1602, %v1601
        %v1604 = vmul.f32 0.5, %v1603
        %v1605 = vsub.f32 1.5, %v1604
        %v1606 = vmul.f32 %v1601, %v1605
        %vm1607 = vweird.f32 %v1488
        %vm1608 = vweird.f32 %v1601
        %vm1609 = vmor %vm1607, %vm1608
        %v1610 = vsel %vm1609, %v1601, %v1606
        %v1611 = vrsqrt.pop %v1489
        %v1612 = vmul.f32 %v1611, %v1489
        %v1613 = vmul.f32 %v1612, %v1611
        %v1614 = vmul.f32 0.5, %v1613
        %v1615 = vsub.f32 1.5, %v1614
        %v1616 = vmul.f32 %v1611, %v1615
        %vm1617 = vweird.f32 %v1489
        %vm1618 = vweird.f32 %v1611
        %vm1619 = vmor %vm1617, %vm1618
        %v1620 = vsel %vm1619, %v1611, %v1616
        %v1621 = vrsqrt.pop %v1490
        %v1622 = vmul.f32 %v1621, %v1490
        %v1623 = vmul.f32 %v1622, %v1621
        %v1624 = vmul.f32 0.5, %v1623
        %v1625 = vsub.f32 1.5, %v1624
        %v1626 = vmul.f32 %v1621, %v1625
        %vm1627 = vweird.f32 %v1490
        %vm1628 = vweird.f32 %v1621
        %vm1629 = vmor %vm1627, %vm1628
        %v1630 = vsel %vm1629, %v1621, %v1626
        %v1631 = vrsqrt.pop %v1491
        %v1632 = vmul.f32 %v1631, %v1491
        %v1633 = vmul.f32 %v1632, %v1631
        %v1634 = vmul.f32 0.5, %v1633
        %v1635 = vsub.f32 1.5, %v1634
        %v1636 = vmul.f32 %v1631, %v1635
        %vm1637 = vweird.f32 %v1491
        %vm1638 = vweird.f32 %v1631
        %vm1639 = vmor %vm1637, %vm1638
        %v1640 = vsel %vm1639, %v1631, %v1636
        %v1641 = vrsqrt.pop %v1492
        %v1642 = vmul.f32 %v1641, %v1492
        %v1643 = vmul.f32 %v1642, %v1641
        %v1644 = vmul.f32 0.5, %v1643
        %v1645 = vsub.f32 1.5, %v1644
        %v1646 = vmul.f32 %v1641, %v1645
        %vm1647 = vweird.f32 %v1492
        %vm1648 = vweird.f32 %v1641
        %vm1649 = vmor %vm1647, %vm1648
        %v1650 = vsel %vm1649, %v1641, %v1646
        %v1651 = vrsqrt.pop %v1493
        %v1652 = vmul.f32 %v1651, %v1493
        %v1653 = vmul.f32 %v1652, %v1651
        %v1654 = vmul.f32 0.5, %v1653
        %v1655 = vsub.f32 1.5, %v1654
        %v1656 = vmul.f32 %v1651, %v1655
        %vm1657 = vweird.f32 %v1493
        %vm1658 = vweird.f32 %v1651
        %vm1659 = vmor %vm1657, %vm1658
        %v1660 = vsel %vm1659, %v1651, %v1656
        %v1661 = vrsqrt.pop %v1494
        %v1662 = vmul.f32 %v1661, %v1494
        %v1663 = vmul.f32 %v1662, %v1661
        %v1664 = vmul.f32 0.5, %v1663
        %v1665 = vsub.f32 1.5, %v1664
        %v1666 = vmul.f32 %v1661, %v1665
        %vm1667 = vweird.f32 %v1494
        %vm1668 = vweird.f32 %v1661
        %vm1669 = vmor %vm1667, %vm1668
        %v1670 = vsel %vm1669, %v1661, %v1666
        %v1671 = vrsqrt.pop %v1495
        %v1672 = vmul.f32 %v1671, %v1495
        %v1673 = vmul.f32 %v1672, %v1671
        %v1674 = vmul.f32 0.5, %v1673
        %v1675 = vsub.f32 1.5, %v1674
        %v1676 = vmul.f32 %v1671, %v1675
        %vm1677 = vweird.f32 %v1495
        %vm1678 = vweird.f32 %v1671
        %vm1679 = vmor %vm1677, %vm1678
        %v1680 = vsel %vm1679, %v1671, %v1676
        %v1681 = vrsqrt.pop %v1496
        %v1682 = vmul.f32 %v1681, %v1496
        %v1683 = vmul.f32 %v1682, %v1681
        %v1684 = vmul.f32 0.5, %v1683
        %v1685 = vsub.f32 1.5, %v1684
        %v1686 = vmul.f32 %v1681, %v1685
        %vm1687 = vweird.f32 %v1496
        %vm1688 = vweird.f32 %v1681
        %vm1689 = vmor %vm1687, %vm1688
        %v1690 = vsel %vm1689, %v1681, %v1686
        %v1691 = vrsqrt.pop %v1497
        %v1692 = vmul.f32 %v1691, %v1497
        %v1693 = vmul.f32 %v1692, %v1691
        %v1694 = vmul.f32 0.5, %v1693
        %v1695 = vsub.f32 1.5, %v1694
        %v1696 = vmul.f32 %v1691, %v1695
        %vm1697 = vweird.f32 %v1497
        %vm1698 = vweird.f32 %v1691
        %vm1699 = vmor %vm1697, %vm1698
        %v1700 = vsel %vm1699, %v1691, %v1696
        %v1701 = vrsqrt.pop %v1498
        %v1702 = vmul.f32 %v1701, %v1498
        %v1703 = vmul.f32 %v1702, %v1701
        %v1704 = vmul.f32 0.5, %v1703
        %v1705 = vsub.f32 1.5, %v1704
        %v1706 = vmul.f32 %v1701, %v1705
        %vm1707 = vweird.f32 %v1498
        %vm1708 = vweird.f32 %v1701
        %vm1709 = vmor %vm1707, %vm1708
        %v1710 = vsel %vm1709, %v1701, %v1706
        %v1711 = vrsqrt.pop %v1499
        %v1712 = vmul.f32 %v1711, %v1499
        %v1713 = vmul.f32 %v1712, %v1711
        %v1714 = vmul.f32 0.5, %v1713
        %v1715 = vsub.f32 1.5, %v1714
        %v1716 = vmul.f32 %v1711, %v1715
        %vm1717 = vweird.f32 %v1499
        %vm1718 = vweird.f32 %v1711
        %vm1719 = vmor %vm1717, %vm1718
        %v1720 = vsel %vm1719, %v1711, %v1716
        %v1721 = vrsqrt.pop %v1500
        %v1722 = vmul.f32 %v1721, %v1500
        %v1723 = vmul.f32 %v1722, %v1721
        %v1724 = vmul.f32 0.5, %v1723
        %v1725 = vsub.f32 1.5, %v1724
        %v1726 = vmul.f32 %v1721, %v1725
        %vm1727 = vweird.f32 %v1500
        %vm1728 = vweird.f32 %v1721
        %vm1729 = vmor %vm1727, %vm1728
        %v1730 = vsel %vm1729, %v1721, %v1726
        %v1731 = vrsqrt.pop %v1501
        %v1732 = vmul.f32 %v1731, %v1501
        %v1733 = vmul.f32 %v1732, %v1731
        %v1734 = vmul.f32 0.5, %v1733
        %v1735 = vsub.f32 1.5, %v1734
        %v1736 = vmul.f32 %v1731, %v1735
        %vm1737 = vweird.f32 %v1501
        %vm1738 = vweird.f32 %v1731
        %vm1739 = vmor %vm1737, %vm1738
        %v1740 = vsel %vm1739, %v1731, %v1736
        %v1741 = vrsqrt.pop %v1502
        %v1742 = vmul.f32 %v1741, %v1502
        %v1743 = vmul.f32 %v1742, %v1741
        %v1744 = vmul.f32 0.5, %v1743
        %v1745 = vsub.f32 1.5, %v1744
        %v1746 = vmul.f32 %v1741, %v1745
        %vm1747 = vweird.f32 %v1502
        %vm1748 = vweird.f32 %v1741
        %vm1749 = vmor %vm1747, %vm1748
        %v1750 = vsel %vm1749, %v1741, %v1746
        %v1751 = vrsqrt.pop %v1503
        %v1752 = vmul.f32 %v1751, %v1503
        %v1753 = vmul.f32 %v1752, %v1751
        %v1754 = vmul.f32 0.5, %v1753
        %v1755 = vsub.f32 1.5, %v1754
        %v1756 = vmul.f32 %v1751, %v1755
        %vm1757 = vweird.f32 %v1503
        %vm1758 = vweird.f32 %v1751
        %vm1759 = vmor %vm1757, %vm1758
        %v1760 = vsel %vm1759, %v1751, %v1756
        %v1761 = vrsqrt.pop %v1504
        %v1762 = vmul.f32 %v1761, %v1504
        %v1763 = vmul.f32 %v1762, %v1761
        %v1764 = vmul.f32 0.5, %v1763
        %v1765 = vsub.f32 1.5, %v1764
        %v1766 = vmul.f32 %v1761, %v1765
        %vm1767 = vweird.f32 %v1504
        %vm1768 = vweird.f32 %v1761
        %vm1769 = vmor %vm1767, %vm1768
        %v1770 = vsel %vm1769, %v1761, %v1766
        %v1771 = vrsqrt.pop %v1505
        %v1772 = vmul.f32 %v1771, %v1505
        %v1773 = vmul.f32 %v1772, %v1771
        %v1774 = vmul.f32 0.5, %v1773
        %v1775 = vsub.f32 1.5, %v1774
        %v1776 = vmul.f32 %v1771, %v1775
        %vm1777 = vweird.f32 %v1505
        %vm1778 = vweird.f32 %v1771
        %vm1779 = vmor %vm1777, %vm1778
        %v1780 = vsel %vm1779, %v1771, %v1776
        %v1781 = vrsqrt.pop %v1506
        %v1782 = vmul.f32 %v1781, %v1506
        %v1783 = vmul.f32 %v1782, %v1781
        %v1784 = vmul.f32 0.5, %v1783
        %v1785 = vsub.f32 1.5, %v1784
        %v1786 = vmul.f32 %v1781, %v1785
        %vm1787 = vweird.f32 %v1506
        %vm1788 = vweird.f32 %v1781
        %vm1789 = vmor %vm1787, %vm1788
        %v1790 = vsel %vm1789, %v1781, %v1786
        %v1791 = vrsqrt.pop %v1507
        %v1792 = vmul.f32 %v1791, %v1507
        %v1793 = vmul.f32 %v1792, %v1791
        %v1794 = vmul.f32 0.5, %v1793
        %v1795 = vsub.f32 1.5, %v1794
        %v1796 = vmul.f32 %v1791, %v1795
        %vm1797 = vweird.f32 %v1507
        %vm1798 = vweird.f32 %v1791
        %vm1799 = vmor %vm1797, %vm1798
        %v1800 = vsel %vm1799, %v1791, %v1796
        %v1801 = vrsqrt.pop %v1508
        %v1802 = vmul.f32 %v1801, %v1508
        %v1803 = vmul.f32 %v1802, %v1801
        %v1804 = vmul.f32 0.5, %v1803
        %v1805 = vsub.f32 1.5, %v1804
        %v1806 = vmul.f32 %v1801, %v1805
        %vm1807 = vweird.f32 %v1508
        %vm1808 = vweird.f32 %v1801
        %vm1809 = vmor %vm1807, %vm1808
        %v1810 = vsel %vm1809, %v1801, %v1806
        %v1811 = vrsqrt.pop %v1509
        %v1812 = vmul.f32 %v1811, %v1509
        %v1813 = vmul.f32 %v1812, %v1811
        %v1814 = vmul.f32 0.5, %v1813
        %v1815 = vsub.f32 1.5, %v1814
        %v1816 = vmul.f32 %v1811, %v1815
        %vm1817 = vweird.f32 %v1509
        %vm1818 = vweird.f32 %v1811
        %vm1819 = vmor %vm1817, %vm1818
        %v1820 = vsel %vm1819, %v1811, %v1816
        %v1821 = vrsqrt.pop %v1510
        %v1822 = vmul.f32 %v1821, %v1510
        %v1823 = vmul.f32 %v1822, %v1821
        %v1824 = vmul.f32 0.5, %v1823
        %v1825 = vsub.f32 1.5, %v1824
        %v1826 = vmul.f32 %v1821, %v1825
        %vm1827 = vweird.f32 %v1510
        %vm1828 = vweird.f32 %v1821
        %vm1829 = vmor %vm1827, %vm1828
        %v1830 = vsel %vm1829, %v1821, %v1826
        %v1831 = vmul.f32 %v291, %v1520
        %v1832 = vmul.f32 %v292, %v1530
        %v1833 = vmul.f32 %v293, %v1540
        %v1834 = vmul.f32 %v294, %v1550
        %v1835 = vmul.f32 %v295, %v1560
        %v1836 = vmul.f32 %v296, %v1570
        %v1837 = vmul.f32 %v297, %v1580
        %v1838 = vmul.f32 %v298, %v1590
        %v1839 = vmul.f32 %v299, %v1600
        %v1840 = vmul.f32 %v300, %v1610
        %v1841 = vmul.f32 %v301, %v1620
        %v1842 = vmul.f32 %v302, %v1630
        %v1843 = vmul.f32 %v303, %v1640
        %v1844 = vmul.f32 %v304, %v1650
        %v1845 = vmul.f32 %v305, %v1660
        %v1846 = vmul.f32 %v306, %v1670
        %v1847 = vmul.f32 %v307, %v1680
        %v1848 = vmul.f32 %v308, %v1690
        %v1849 = vmul.f32 %v309, %v1700
        %v1850 = vmul.f32 %v310, %v1710
        %v1851 = vmul.f32 %v311, %v1720
        %v1852 = vmul.f32 %v312, %v1730
        %v1853 = vmul.f32 %v313, %v1740
        %v1854 = vmul.f32 %v314, %v1750
        %v1855 = vmul.f32 %v315, %v1760
        %v1856 = vmul.f32 %v316, %v1770
        %v1857 = vmul.f32 %v317, %v1780
        %v1858 = vmul.f32 %v318, %v1790
        %v1859 = vmul.f32 %v319, %v1800
        %v1860 = vmul.f32 %v320, %v1810
        %v1861 = vmul.f32 %v321, %v1820
        %v1862 = vmul.f32 %v322, %v1830
        %v1863 = vmul.f32 %v324, %v1520
        %v1864 = vmul.f32 %v325, %v1530
        %v1865 = vmul.f32 %v326, %v1540
        %v1866 = vmul.f32 %v327, %v1550
        %v1867 = vmul.f32 %v328, %v1560
        %v1868 = vmul.f32 %v329, %v1570
        %v1869 = vmul.f32 %v330, %v1580
        %v1870 = vmul.f32 %v331, %v1590
        %v1871 = vmul.f32 %v332, %v1600
        %v1872 = vmul.f32 %v333, %v1610
        %v1873 = vmul.f32 %v334, %v1620
        %v1874 = vmul.f32 %v335, %v1630
        %v1875 = vmul.f32 %v336, %v1640
        %v1876 = vmul.f32 %v337, %v1650
        %v1877 = vmul.f32 %v338, %v1660
        %v1878 = vmul.f32 %v339, %v1670
        %v1879 = vmul.f32 %v340, %v1680
        %v1880 = vmul.f32 %v341, %v1690
        %v1881 = vmul.f32 %v342, %v1700
        %v1882 = vmul.f32 %v343, %v1710
        %v1883 = vmul.f32 %v344, %v1720
        %v1884 = vmul.f32 %v345, %v1730
        %v1885 = vmul.f32 %v346, %v1740
        %v1886 = vmul.f32 %v347, %v1750
        %v1887 = vmul.f32 %v348, %v1760
        %v1888 = vmul.f32 %v349, %v1770
        %v1889 = vmul.f32 %v350, %v1780
        %v1890 = vmul.f32 %v351, %v1790
        %v1891 = vmul.f32 %v352, %v1800
        %v1892 = vmul.f32 %v353, %v1810
        %v1893 = vmul.f32 %v354, %v1820
        %v1894 = vmul.f32 %v355, %v1830
        %v1895 = vmul.f32 %v357, %v1520
        %v1896 = vmul.f32 %v358, %v1530
        %v1897 = vmul.f32 %v359, %v1540
        %v1898 = vmul.f32 %v360, %v1550
        %v1899 = vmul.f32 %v361, %v1560
        %v1900 = vmul.f32 %v362, %v1570
        %v1901 = vmul.f32 %v363, %v1580
        %v1902 = vmul.f32 %v364, %v1590
        %v1903 = vmul.f32 %v365, %v1600
        %v1904 = vmul.f32 %v366, %v1610
        %v1905 = vmul.f32 %v367, %v1620
        %v1906 = vmul.f32 %v368, %v1630
        %v1907 = vmul.f32 %v369, %v1640
        %v1908 = vmul.f32 %v370, %v1650
        %v1909 = vmul.f32 %v371, %v1660
        %v1910 = vmul.f32 %v372, %v1670
        %v1911 = vmul.f32 %v373, %v1680
        %v1912 = vmul.f32 %v374, %v1690
        %v1913 = vmul.f32 %v375, %v1700
        %v1914 = vmul.f32 %v376, %v1710
        %v1915 = vmul.f32 %v377, %v1720
        %v1916 = vmul.f32 %v378, %v1730
        %v1917 = vmul.f32 %v379, %v1740
        %v1918 = vmul.f32 %v380, %v1750
        %v1919 = vmul.f32 %v381, %v1760
        %v1920 = vmul.f32 %v382, %v1770
        %v1921 = vmul.f32 %v383, %v1780
        %v1922 = vmul.f32 %v384, %v1790
        %v1923 = vmul.f32 %v385, %v1800
        %v1924 = vmul.f32 %v386, %v1810
        %v1925 = vmul.f32 %v387, %v1820
        %v1926 = vmul.f32 %v388, %v1830
        %v1927 = vmul.f32 %v390, %v1520
        %v1928 = vmul.f32 %v391, %v1530
        %v1929 = vmul.f32 %v392, %v1540
        %v1930 = vmul.f32 %v393, %v1550
        %v1931 = vmul.f32 %v394, %v1560
        %v1932 = vmul.f32 %v395, %v1570
        %v1933 = vmul.f32 %v396, %v1580
        %v1934 = vmul.f32 %v397, %v1590
        %v1935 = vmul.f32 %v398, %v1600
        %v1936 = vmul.f32 %v399, %v1610
        %v1937 = vmul.f32 %v400, %v1620
        %v1938 = vmul.f32 %v401, %v1630
        %v1939 = vmul.f32 %v402, %v1640
        %v1940 = vmul.f32 %v403, %v1650
        %v1941 = vmul.f32 %v404, %v1660
        %v1942 = vmul.f32 %v405, %v1670
        %v1943 = vmul.f32 %v406, %v1680
        %v1944 = vmul.f32 %v407, %v1690
        %v1945 = vmul.f32 %v408, %v1700
        %v1946 = vmul.f32 %v409, %v1710
        %v1947 = vmul.f32 %v410, %v1720
        %v1948 = vmul.f32 %v411, %v1730
        %v1949 = vmul.f32 %v412, %v1740
        %v1950 = vmul.f32 %v413, %v1750
        %v1951 = vmul.f32 %v414, %v1760
        %v1952 = vmul.f32 %v415, %v1770
        %v1953 = vmul.f32 %v416, %v1780
        %v1954 = vmul.f32 %v417, %v1790
        %v1955 = vmul.f32 %v418, %v1800
        %v1956 = vmul.f32 %v419, %v1810
        %v1957 = vmul.f32 %v420, %v1820
        %v1958 = vmul.f32 %v421, %v1830
        %s1959 = scalar_lea.vmem %s189, 1536 [#allocation6]
        %1960 = vst [vmem:[%s1959] sm:$0xff] %v456
        %1961 = vst [vmem:[%s1959 + $0x8] sm:$0xff] %v458
        %1962 = vst [vmem:[%s1959 + $0x10] sm:$0xff] %v460
        %1963 = vst [vmem:[%s1959 + $0x18] sm:$0xff] %v462
        %1964 = vst [vmem:[%s1959 + $0x20] sm:$0xff] %v464
        %1965 = vst [vmem:[%s1959 + $0x28] sm:$0xff] %v466
        %1966 = vst [vmem:[%s1959 + $0x30] sm:$0xff] %v468
        %1967 = vst [vmem:[%s1959 + $0x38] sm:$0xff] %v470
        %1968 = vst [vmem:[%s1959 + $0x40] sm:$0xff] %v472
        %1969 = vst [vmem:[%s1959 + $0x48] sm:$0xff] %v474
        %1970 = vst [vmem:[%s1959 + $0x50] sm:$0xff] %v476
        %1971 = vst [vmem:[%s1959 + $0x58] sm:$0xff] %v478
        %1972 = vst [vmem:[%s1959 + $0x60] sm:$0xff] %v480
        %1973 = vst [vmem:[%s1959 + $0x68] sm:$0xff] %v482
        %1974 = vst [vmem:[%s1959 + $0x70] sm:$0xff] %v484
        %1975 = vst [vmem:[%s1959 + $0x78] sm:$0xff] %v486
        %1976 = vst [vmem:[%s1959 + $0x80] sm:$0xff] %v488
        %1977 = vst [vmem:[%s1959 + $0x88] sm:$0xff] %v490
        %1978 = vst [vmem:[%s1959 + $0x90] sm:$0xff] %v492
        %1979 = vst [vmem:[%s1959 + $0x98] sm:$0xff] %v494
        %1980 = vst [vmem:[%s1959 + $0xa0] sm:$0xff] %v496
        %1981 = vst [vmem:[%s1959 + $0xa8] sm:$0xff] %v498
        %1982 = vst [vmem:[%s1959 + $0xb0] sm:$0xff] %v500
        %1983 = vst [vmem:[%s1959 + $0xb8] sm:$0xff] %v502
        %1984 = vst [vmem:[%s1959 + $0xc0] sm:$0xff] %v504
        %1985 = vst [vmem:[%s1959 + $0xc8] sm:$0xff] %v506
        %1986 = vst [vmem:[%s1959 + $0xd0] sm:$0xff] %v508
        %1987 = vst [vmem:[%s1959 + $0xd8] sm:$0xff] %v510
        %1988 = vst [vmem:[%s1959 + $0xe0] sm:$0xff] %v512
        %1989 = vst [vmem:[%s1959 + $0xe8] sm:$0xff] %v514
        %1990 = vst [vmem:[%s1959 + $0xf0] sm:$0xff] %v516
        %1991 = vst [vmem:[%s1959 + $0xf8] sm:$0xff] %v518
        %s1992 = scalar_lea.vmem %s189, 1792 [#allocation6]
        %1993 = vst [vmem:[%s1992] sm:$0xff] %v520
        %1994 = vst [vmem:[%s1992 + $0x8] sm:$0xff] %v522
        %1995 = vst [vmem:[%s1992 + $0x10] sm:$0xff] %v524
        %1996 = vst [vmem:[%s1992 + $0x18] sm:$0xff] %v526
        %1997 = vst [vmem:[%s1992 + $0x20] sm:$0xff] %v528
        %1998 = vst [vmem:[%s1992 + $0x28] sm:$0xff] %v530
        %1999 = vst [vmem:[%s1992 + $0x30] sm:$0xff] %v532
        %2000 = vst [vmem:[%s1992 + $0x38] sm:$0xff] %v534
        %2001 = vst [vmem:[%s1992 + $0x40] sm:$0xff] %v536
        %2002 = vst [vmem:[%s1992 + $0x48] sm:$0xff] %v538
        %2003 = vst [vmem:[%s1992 + $0x50] sm:$0xff] %v540
        %2004 = vst [vmem:[%s1992 + $0x58] sm:$0xff] %v542
        %2005 = vst [vmem:[%s1992 + $0x60] sm:$0xff] %v544
        %2006 = vst [vmem:[%s1992 + $0x68] sm:$0xff] %v546
        %2007 = vst [vmem:[%s1992 + $0x70] sm:$0xff] %v548
        %2008 = vst [vmem:[%s1992 + $0x78] sm:$0xff] %v550
        %2009 = vst [vmem:[%s1992 + $0x80] sm:$0xff] %v552
        %2010 = vst [vmem:[%s1992 + $0x88] sm:$0xff] %v554
        %2011 = vst [vmem:[%s1992 + $0x90] sm:$0xff] %v556
        %2012 = vst [vmem:[%s1992 + $0x98] sm:$0xff] %v558
        %2013 = vst [vmem:[%s1992 + $0xa0] sm:$0xff] %v560
        %2014 = vst [vmem:[%s1992 + $0xa8] sm:$0xff] %v562
        %2015 = vst [vmem:[%s1992 + $0xb0] sm:$0xff] %v564
        %2016 = vst [vmem:[%s1992 + $0xb8] sm:$0xff] %v566
        %2017 = vst [vmem:[%s1992 + $0xc0] sm:$0xff] %v568
        %2018 = vst [vmem:[%s1992 + $0xc8] sm:$0xff] %v570
        %2019 = vst [vmem:[%s1992 + $0xd0] sm:$0xff] %v572
        %2020 = vst [vmem:[%s1992 + $0xd8] sm:$0xff] %v574
        %2021 = vst [vmem:[%s1992 + $0xe0] sm:$0xff] %v576
        %2022 = vst [vmem:[%s1992 + $0xe8] sm:$0xff] %v578
        %2023 = vst [vmem:[%s1992 + $0xf0] sm:$0xff] %v580
        %2024 = vst [vmem:[%s1992 + $0xf8] sm:$0xff] %v582
        %s2025 = scalar_lea.vmem %s189, 2048 [#allocation6]
        %2026 = vst [vmem:[%s2025] sm:$0xff] %v584
        %2027 = vst [vmem:[%s2025 + $0x8] sm:$0xff] %v586
        %2028 = vst [vmem:[%s2025 + $0x10] sm:$0xff] %v588
        %2029 = vst [vmem:[%s2025 + $0x18] sm:$0xff] %v590
        %2030 = vst [vmem:[%s2025 + $0x20] sm:$0xff] %v592
        %2031 = vst [vmem:[%s2025 + $0x28] sm:$0xff] %v594
        %2032 = vst [vmem:[%s2025 + $0x30] sm:$0xff] %v596
        %2033 = vst [vmem:[%s2025 + $0x38] sm:$0xff] %v598
        %2034 = vst [vmem:[%s2025 + $0x40] sm:$0xff] %v600
        %2035 = vst [vmem:[%s2025 + $0x48] sm:$0xff] %v602
        %2036 = vst [vmem:[%s2025 + $0x50] sm:$0xff] %v604
        %2037 = vst [vmem:[%s2025 + $0x58] sm:$0xff] %v606
        %2038 = vst [vmem:[%s2025 + $0x60] sm:$0xff] %v608
        %2039 = vst [vmem:[%s2025 + $0x68] sm:$0xff] %v610
        %2040 = vst [vmem:[%s2025 + $0x70] sm:$0xff] %v612
        %2041 = vst [vmem:[%s2025 + $0x78] sm:$0xff] %v614
        %2042 = vst [vmem:[%s2025 + $0x80] sm:$0xff] %v616
        %2043 = vst [vmem:[%s2025 + $0x88] sm:$0xff] %v618
        %2044 = vst [vmem:[%s2025 + $0x90] sm:$0xff] %v620
        %2045 = vst [vmem:[%s2025 + $0x98] sm:$0xff] %v622
        %2046 = vst [vmem:[%s2025 + $0xa0] sm:$0xff] %v624
        %2047 = vst [vmem:[%s2025 + $0xa8] sm:$0xff] %v626
        %2048 = vst [vmem:[%s2025 + $0xb0] sm:$0xff] %v628
        %2049 = vst [vmem:[%s2025 + $0xb8] sm:$0xff] %v630
        %2050 = vst [vmem:[%s2025 + $0xc0] sm:$0xff] %v632
        %2051 = vst [vmem:[%s2025 + $0xc8] sm:$0xff] %v634
        %2052 = vst [vmem:[%s2025 + $0xd0] sm:$0xff] %v636
        %2053 = vst [vmem:[%s2025 + $0xd8] sm:$0xff] %v638
        %2054 = vst [vmem:[%s2025 + $0xe0] sm:$0xff] %v640
        %2055 = vst [vmem:[%s2025 + $0xe8] sm:$0xff] %v642
        %2056 = vst [vmem:[%s2025 + $0xf0] sm:$0xff] %v644
        %2057 = vst [vmem:[%s2025 + $0xf8] sm:$0xff] %v646
        %s2058 = scalar_lea.vmem %s189, 2304 [#allocation6]
        %2059 = vst [vmem:[%s2058] sm:$0xff] %v1831
        %2060 = vst [vmem:[%s2058 + $0x8] sm:$0xff] %v1832
        %2061 = vst [vmem:[%s2058 + $0x10] sm:$0xff] %v1833
        %2062 = vst [vmem:[%s2058 + $0x18] sm:$0xff] %v1834
        %2063 = vst [vmem:[%s2058 + $0x20] sm:$0xff] %v1835
        %2064 = vst [vmem:[%s2058 + $0x28] sm:$0xff] %v1836
        %2065 = vst [vmem:[%s2058 + $0x30] sm:$0xff] %v1837
        %2066 = vst [vmem:[%s2058 + $0x38] sm:$0xff] %v1838
        %2067 = vst [vmem:[%s2058 + $0x40] sm:$0xff] %v1839
        %2068 = vst [vmem:[%s2058 + $0x48] sm:$0xff] %v1840
        %2069 = vst [vmem:[%s2058 + $0x50] sm:$0xff] %v1841
        %2070 = vst [vmem:[%s2058 + $0x58] sm:$0xff] %v1842
        %2071 = vst [vmem:[%s2058 + $0x60] sm:$0xff] %v1843
        %2072 = vst [vmem:[%s2058 + $0x68] sm:$0xff] %v1844
        %2073 = vst [vmem:[%s2058 + $0x70] sm:$0xff] %v1845
        %2074 = vst [vmem:[%s2058 + $0x78] sm:$0xff] %v1846
        %2075 = vst [vmem:[%s2058 + $0x80] sm:$0xff] %v1847
        %2076 = vst [vmem:[%s2058 + $0x88] sm:$0xff] %v1848
        %2077 = vst [vmem:[%s2058 + $0x90] sm:$0xff] %v1849
        %2078 = vst [vmem:[%s2058 + $0x98] sm:$0xff] %v1850
        %2079 = vst [vmem:[%s2058 + $0xa0] sm:$0xff] %v1851
        %2080 = vst [vmem:[%s2058 + $0xa8] sm:$0xff] %v1852
        %2081 = vst [vmem:[%s2058 + $0xb0] sm:$0xff] %v1853
        %2082 = vst [vmem:[%s2058 + $0xb8] sm:$0xff] %v1854
        %2083 = vst [vmem:[%s2058 + $0xc0] sm:$0xff] %v1855
        %2084 = vst [vmem:[%s2058 + $0xc8] sm:$0xff] %v1856
        %2085 = vst [vmem:[%s2058 + $0xd0] sm:$0xff] %v1857
        %2086 = vst [vmem:[%s2058 + $0xd8] sm:$0xff] %v1858
        %2087 = vst [vmem:[%s2058 + $0xe0] sm:$0xff] %v1859
        %2088 = vst [vmem:[%s2058 + $0xe8] sm:$0xff] %v1860
        %2089 = vst [vmem:[%s2058 + $0xf0] sm:$0xff] %v1861
        %2090 = vst [vmem:[%s2058 + $0xf8] sm:$0xff] %v1862
        %s2091 = scalar_lea.vmem %s189, 2560 [#allocation6]
        %2092 = vst [vmem:[%s2091] sm:$0xff] %v1863
        %2093 = vst [vmem:[%s2091 + $0x8] sm:$0xff] %v1864
        %2094 = vst [vmem:[%s2091 + $0x10] sm:$0xff] %v1865
        %2095 = vst [vmem:[%s2091 + $0x18] sm:$0xff] %v1866
        %2096 = vst [vmem:[%s2091 + $0x20] sm:$0xff] %v1867
        %2097 = vst [vmem:[%s2091 + $0x28] sm:$0xff] %v1868
        %2098 = vst [vmem:[%s2091 + $0x30] sm:$0xff] %v1869
        %2099 = vst [vmem:[%s2091 + $0x38] sm:$0xff] %v1870
        %2100 = vst [vmem:[%s2091 + $0x40] sm:$0xff] %v1871
        %2101 = vst [vmem:[%s2091 + $0x48] sm:$0xff] %v1872
        %2102 = vst [vmem:[%s2091 + $0x50] sm:$0xff] %v1873
        %2103 = vst [vmem:[%s2091 + $0x58] sm:$0xff] %v1874
        %2104 = vst [vmem:[%s2091 + $0x60] sm:$0xff] %v1875
        %2105 = vst [vmem:[%s2091 + $0x68] sm:$0xff] %v1876
        %2106 = vst [vmem:[%s2091 + $0x70] sm:$0xff] %v1877
        %2107 = vst [vmem:[%s2091 + $0x78] sm:$0xff] %v1878
        %2108 = vst [vmem:[%s2091 + $0x80] sm:$0xff] %v1879
        %2109 = vst [vmem:[%s2091 + $0x88] sm:$0xff] %v1880
        %2110 = vst [vmem:[%s2091 + $0x90] sm:$0xff] %v1881
        %2111 = vst [vmem:[%s2091 + $0x98] sm:$0xff] %v1882
        %2112 = vst [vmem:[%s2091 + $0xa0] sm:$0xff] %v1883
        %2113 = vst [vmem:[%s2091 + $0xa8] sm:$0xff] %v1884
        %2114 = vst [vmem:[%s2091 + $0xb0] sm:$0xff] %v1885
        %2115 = vst [vmem:[%s2091 + $0xb8] sm:$0xff] %v1886
        %2116 = vst [vmem:[%s2091 + $0xc0] sm:$0xff] %v1887
        %2117 = vst [vmem:[%s2091 + $0xc8] sm:$0xff] %v1888
        %2118 = vst [vmem:[%s2091 + $0xd0] sm:$0xff] %v1889
        %2119 = vst [vmem:[%s2091 + $0xd8] sm:$0xff] %v1890
        %2120 = vst [vmem:[%s2091 + $0xe0] sm:$0xff] %v1891
        %2121 = vst [vmem:[%s2091 + $0xe8] sm:$0xff] %v1892
        %2122 = vst [vmem:[%s2091 + $0xf0] sm:$0xff] %v1893
        %2123 = vst [vmem:[%s2091 + $0xf8] sm:$0xff] %v1894
        %s2124 = scalar_lea.vmem %s189, 2816 [#allocation6]
        %2125 = vst [vmem:[%s2124] sm:$0xff] %v1895
        %2126 = vst [vmem:[%s2124 + $0x8] sm:$0xff] %v1896
        %2127 = vst [vmem:[%s2124 + $0x10] sm:$0xff] %v1897
        %2128 = vst [vmem:[%s2124 + $0x18] sm:$0xff] %v1898
        %2129 = vst [vmem:[%s2124 + $0x20] sm:$0xff] %v1899
        %2130 = vst [vmem:[%s2124 + $0x28] sm:$0xff] %v1900
        %2131 = vst [vmem:[%s2124 + $0x30] sm:$0xff] %v1901
        %2132 = vst [vmem:[%s2124 + $0x38] sm:$0xff] %v1902
        %2133 = vst [vmem:[%s2124 + $0x40] sm:$0xff] %v1903
        %2134 = vst [vmem:[%s2124 + $0x48] sm:$0xff] %v1904
        %2135 = vst [vmem:[%s2124 + $0x50] sm:$0xff] %v1905
        %2136 = vst [vmem:[%s2124 + $0x58] sm:$0xff] %v1906
        %2137 = vst [vmem:[%s2124 + $0x60] sm:$0xff] %v1907
        %2138 = vst [vmem:[%s2124 + $0x68] sm:$0xff] %v1908
        %2139 = vst [vmem:[%s2124 + $0x70] sm:$0xff] %v1909
        %2140 = vst [vmem:[%s2124 + $0x78] sm:$0xff] %v1910
        %2141 = vst [vmem:[%s2124 + $0x80] sm:$0xff] %v1911
        %2142 = vst [vmem:[%s2124 + $0x88] sm:$0xff] %v1912
        %2143 = vst [vmem:[%s2124 + $0x90] sm:$0xff] %v1913
        %2144 = vst [vmem:[%s2124 + $0x98] sm:$0xff] %v1914
        %2145 = vst [vmem:[%s2124 + $0xa0] sm:$0xff] %v1915
        %2146 = vst [vmem:[%s2124 + $0xa8] sm:$0xff] %v1916
        %2147 = vst [vmem:[%s2124 + $0xb0] sm:$0xff] %v1917
        %2148 = vst [vmem:[%s2124 + $0xb8] sm:$0xff] %v1918
        %2149 = vst [vmem:[%s2124 + $0xc0] sm:$0xff] %v1919
        %2150 = vst [vmem:[%s2124 + $0xc8] sm:$0xff] %v1920
        %2151 = vst [vmem:[%s2124 + $0xd0] sm:$0xff] %v1921
        %2152 = vst [vmem:[%s2124 + $0xd8] sm:$0xff] %v1922
        %2153 = vst [vmem:[%s2124 + $0xe0] sm:$0xff] %v1923
        %2154 = vst [vmem:[%s2124 + $0xe8] sm:$0xff] %v1924
        %2155 = vst [vmem:[%s2124 + $0xf0] sm:$0xff] %v1925
        %2156 = vst [vmem:[%s2124 + $0xf8] sm:$0xff] %v1926
        %s2157 = scalar_lea.vmem %s189, 3072 [#allocation6]
        %2158 = vst [vmem:[%s2157] sm:$0xff] %v1927
        %2159 = vst [vmem:[%s2157 + $0x8] sm:$0xff] %v1928
        %2160 = vst [vmem:[%s2157 + $0x10] sm:$0xff] %v1929
        %2161 = vst [vmem:[%s2157 + $0x18] sm:$0xff] %v1930
        %2162 = vst [vmem:[%s2157 + $0x20] sm:$0xff] %v1931
        %2163 = vst [vmem:[%s2157 + $0x28] sm:$0xff] %v1932
        %2164 = vst [vmem:[%s2157 + $0x30] sm:$0xff] %v1933
        %2165 = vst [vmem:[%s2157 + $0x38] sm:$0xff] %v1934
        %2166 = vst [vmem:[%s2157 + $0x40] sm:$0xff] %v1935
        %2167 = vst [vmem:[%s2157 + $0x48] sm:$0xff] %v1936
        %2168 = vst [vmem:[%s2157 + $0x50] sm:$0xff] %v1937
        %2169 = vst [vmem:[%s2157 + $0x58] sm:$0xff] %v1938
        %2170 = vst [vmem:[%s2157 + $0x60] sm:$0xff] %v1939
        %2171 = vst [vmem:[%s2157 + $0x68] sm:$0xff] %v1940
        %2172 = vst [vmem:[%s2157 + $0x70] sm:$0xff] %v1941
        %2173 = vst [vmem:[%s2157 + $0x78] sm:$0xff] %v1942
        %2174 = vst [vmem:[%s2157 + $0x80] sm:$0xff] %v1943
        %2175 = vst [vmem:[%s2157 + $0x88] sm:$0xff] %v1944
        %2176 = vst [vmem:[%s2157 + $0x90] sm:$0xff] %v1945
        %2177 = vst [vmem:[%s2157 + $0x98] sm:$0xff] %v1946
        %2178 = vst [vmem:[%s2157 + $0xa0] sm:$0xff] %v1947
        %2179 = vst [vmem:[%s2157 + $0xa8] sm:$0xff] %v1948
        %2180 = vst [vmem:[%s2157 + $0xb0] sm:$0xff] %v1949
        %2181 = vst [vmem:[%s2157 + $0xb8] sm:$0xff] %v1950
        %2182 = vst [vmem:[%s2157 + $0xc0] sm:$0xff] %v1951
        %2183 = vst [vmem:[%s2157 + $0xc8] sm:$0xff] %v1952
        %2184 = vst [vmem:[%s2157 + $0xd0] sm:$0xff] %v1953
        %2185 = vst [vmem:[%s2157 + $0xd8] sm:$0xff] %v1954
        %2186 = vst [vmem:[%s2157 + $0xe0] sm:$0xff] %v1955
        %2187 = vst [vmem:[%s2157 + $0xe8] sm:$0xff] %v1956
        %2188 = vst [vmem:[%s2157 + $0xf0] sm:$0xff] %v1957
        %2189 = vst [vmem:[%s2157 + $0xf8] sm:$0xff] %v1958
        %s2190 = scalar_lea.vmem %s189, 3328 [#allocation6]
        %2191 = vst [vmem:[%s2190] sm:$0xff] %v789
        %2192 = vst [vmem:[%s2190 + $0x8] sm:$0xff] %v804
        %2193 = vst [vmem:[%s2190 + $0x10] sm:$0xff] %v819
        %2194 = vst [vmem:[%s2190 + $0x18] sm:$0xff] %v834
        %2195 = vst [vmem:[%s2190 + $0x20] sm:$0xff] %v849
        %2196 = vst [vmem:[%s2190 + $0x28] sm:$0xff] %v864
        %2197 = vst [vmem:[%s2190 + $0x30] sm:$0xff] %v879
        %2198 = vst [vmem:[%s2190 + $0x38] sm:$0xff] %v894
        %2199 = vst [vmem:[%s2190 + $0x40] sm:$0xff] %v909
        %2200 = vst [vmem:[%s2190 + $0x48] sm:$0xff] %v924
        %2201 = vst [vmem:[%s2190 + $0x50] sm:$0xff] %v939
        %2202 = vst [vmem:[%s2190 + $0x58] sm:$0xff] %v954
        %2203 = vst [vmem:[%s2190 + $0x60] sm:$0xff] %v969
        %2204 = vst [vmem:[%s2190 + $0x68] sm:$0xff] %v984
        %2205 = vst [vmem:[%s2190 + $0x70] sm:$0xff] %v999
        %2206 = vst [vmem:[%s2190 + $0x78] sm:$0xff] %v1014
        %2207 = vst [vmem:[%s2190 + $0x80] sm:$0xff] %v1029
        %2208 = vst [vmem:[%s2190 + $0x88] sm:$0xff] %v1044
        %2209 = vst [vmem:[%s2190 + $0x90] sm:$0xff] %v1059
        %2210 = vst [vmem:[%s2190 + $0x98] sm:$0xff] %v1074
        %2211 = vst [vmem:[%s2190 + $0xa0] sm:$0xff] %v1089
        %2212 = vst [vmem:[%s2190 + $0xa8] sm:$0xff] %v1104
        %2213 = vst [vmem:[%s2190 + $0xb0] sm:$0xff] %v1119
        %2214 = vst [vmem:[%s2190 + $0xb8] sm:$0xff] %v1134
        %2215 = vst [vmem:[%s2190 + $0xc0] sm:$0xff] %v1149
        %2216 = vst [vmem:[%s2190 + $0xc8] sm:$0xff] %v1164
        %2217 = vst [vmem:[%s2190 + $0xd0] sm:$0xff] %v1179
        %2218 = vst [vmem:[%s2190 + $0xd8] sm:$0xff] %v1194
        %2219 = vst [vmem:[%s2190 + $0xe0] sm:$0xff] %v1209
        %2220 = vst [vmem:[%s2190 + $0xe8] sm:$0xff] %v1224
        %2221 = vst [vmem:[%s2190 + $0xf0] sm:$0xff] %v1239
        %2222 = vst [vmem:[%s2190 + $0xf8] sm:$0xff] %v1254
        %v2223 = vmul.f32 %v1895, %v1895
        %v2224 = vmul.f32 %v1896, %v1896
        %v2225 = vmul.f32 %v1897, %v1897
        %v2226 = vmul.f32 %v1898, %v1898
        %v2227 = vmul.f32 %v1899, %v1899
        %v2228 = vmul.f32 %v1900, %v1900
        %v2229 = vmul.f32 %v1901, %v1901
        %v2230 = vmul.f32 %v1902, %v1902
        %v2231 = vmul.f32 %v1903, %v1903
        %v2232 = vmul.f32 %v1904, %v1904
        %v2233 = vmul.f32 %v1905, %v1905
        %v2234 = vmul.f32 %v1906, %v1906
        %v2235 = vmul.f32 %v1907, %v1907
        %v2236 = vmul.f32 %v1908, %v1908
        %v2237 = vmul.f32 %v1909, %v1909
        %v2238 = vmul.f32 %v1910, %v1910
        %v2239 = vmul.f32 %v1911, %v1911
        %v2240 = vmul.f32 %v1912, %v1912
        %v2241 = vmul.f32 %v1913, %v1913
        %v2242 = vmul.f32 %v1914, %v1914
        %v2243 = vmul.f32 %v1915, %v1915
        %v2244 = vmul.f32 %v1916, %v1916
        %v2245 = vmul.f32 %v1917, %v1917
        %v2246 = vmul.f32 %v1918, %v1918
        %v2247 = vmul.f32 %v1919, %v1919
        %v2248 = vmul.f32 %v1920, %v1920
        %v2249 = vmul.f32 %v1921, %v1921
        %v2250 = vmul.f32 %v1922, %v1922
        %v2251 = vmul.f32 %v1923, %v1923
        %v2252 = vmul.f32 %v1924, %v1924
        %v2253 = vmul.f32 %v1925, %v1925
        %v2254 = vmul.f32 %v1926, %v1926
        %v2255 = vmul.f32 %v1927, %v1927
        %v2256 = vmul.f32 %v1928, %v1928
        %v2257 = vmul.f32 %v1929, %v1929
        %v2258 = vmul.f32 %v1930, %v1930
        %v2259 = vmul.f32 %v1931, %v1931
        %v2260 = vmul.f32 %v1932, %v1932
        %v2261 = vmul.f32 %v1933, %v1933
        %v2262 = vmul.f32 %v1934, %v1934
        %v2263 = vmul.f32 %v1935, %v1935
        %v2264 = vmul.f32 %v1936, %v1936
        %v2265 = vmul.f32 %v1937, %v1937
        %v2266 = vmul.f32 %v1938, %v1938
        %v2267 = vmul.f32 %v1939, %v1939
        %v2268 = vmul.f32 %v1940, %v1940
        %v2269 = vmul.f32 %v1941, %v1941
        %v2270 = vmul.f32 %v1942, %v1942
        %v2271 = vmul.f32 %v1943, %v1943
        %v2272 = vmul.f32 %v1944, %v1944
        %v2273 = vmul.f32 %v1945, %v1945
        %v2274 = vmul.f32 %v1946, %v1946
        %v2275 = vmul.f32 %v1947, %v1947
        %v2276 = vmul.f32 %v1948, %v1948
        %v2277 = vmul.f32 %v1949, %v1949
        %v2278 = vmul.f32 %v1950, %v1950
        %v2279 = vmul.f32 %v1951, %v1951
        %v2280 = vmul.f32 %v1952, %v1952
        %v2281 = vmul.f32 %v1953, %v1953
        %v2282 = vmul.f32 %v1954, %v1954
        %v2283 = vmul.f32 %v1955, %v1955
        %v2284 = vmul.f32 %v1956, %v1956
        %v2285 = vmul.f32 %v1957, %v1957
        %v2286 = vmul.f32 %v1958, %v1958
        %v2287 = vadd.f32 %v2223, %v2255
        %v2288 = vadd.f32 %v2224, %v2256
        %v2289 = vadd.f32 %v2225, %v2257
        %v2290 = vadd.f32 %v2226, %v2258
        %v2291 = vadd.f32 %v2227, %v2259
        %v2292 = vadd.f32 %v2228, %v2260
        %v2293 = vadd.f32 %v2229, %v2261
        %v2294 = vadd.f32 %v2230, %v2262
        %v2295 = vadd.f32 %v2231, %v2263
        %v2296 = vadd.f32 %v2232, %v2264
        %v2297 = vadd.f32 %v2233, %v2265
        %v2298 = vadd.f32 %v2234, %v2266
        %v2299 = vadd.f32 %v2235, %v2267
        %v2300 = vadd.f32 %v2236, %v2268
        %v2301 = vadd.f32 %v2237, %v2269
        %v2302 = vadd.f32 %v2238, %v2270
        %v2303 = vadd.f32 %v2239, %v2271
        %v2304 = vadd.f32 %v2240, %v2272
        %v2305 = vadd.f32 %v2241, %v2273
        %v2306 = vadd.f32 %v2242, %v2274
        %v2307 = vadd.f32 %v2243, %v2275
        %v2308 = vadd.f32 %v2244, %v2276
        %v2309 = vadd.f32 %v2245, %v2277
        %v2310 = vadd.f32 %v2246, %v2278
        %v2311 = vadd.f32 %v2247, %v2279
        %v2312 = vadd.f32 %v2248, %v2280
        %v2313 = vadd.f32 %v2249, %v2281
        %v2314 = vadd.f32 %v2250, %v2282
        %v2315 = vadd.f32 %v2251, %v2283
        %v2316 = vadd.f32 %v2252, %v2284
        %v2317 = vadd.f32 %v2253, %v2285
        %v2318 = vadd.f32 %v2254, %v2286
        %v2319 = vmul.f32 %v2287, 2.0
        %v2320 = vmul.f32 %v2288, 2.0
        %v2321 = vmul.f32 %v2289, 2.0
        %v2322 = vmul.f32 %v2290, 2.0
        %v2323 = vmul.f32 %v2291, 2.0
        %v2324 = vmul.f32 %v2292, 2.0
        %v2325 = vmul.f32 %v2293, 2.0
        %v2326 = vmul.f32 %v2294, 2.0
        %v2327 = vmul.f32 %v2295, 2.0
        %v2328 = vmul.f32 %v2296, 2.0
        %v2329 = vmul.f32 %v2297, 2.0
        %v2330 = vmul.f32 %v2298, 2.0
        %v2331 = vmul.f32 %v2299, 2.0
        %v2332 = vmul.f32 %v2300, 2.0
        %v2333 = vmul.f32 %v2301, 2.0
        %v2334 = vmul.f32 %v2302, 2.0
        %v2335 = vmul.f32 %v2303, 2.0
        %v2336 = vmul.f32 %v2304, 2.0
        %v2337 = vmul.f32 %v2305, 2.0
        %v2338 = vmul.f32 %v2306, 2.0
        %v2339 = vmul.f32 %v2307, 2.0
        %v2340 = vmul.f32 %v2308, 2.0
        %v2341 = vmul.f32 %v2309, 2.0
        %v2342 = vmul.f32 %v2310, 2.0
        %v2343 = vmul.f32 %v2311, 2.0
        %v2344 = vmul.f32 %v2312, 2.0
        %v2345 = vmul.f32 %v2313, 2.0
        %v2346 = vmul.f32 %v2314, 2.0
        %v2347 = vmul.f32 %v2315, 2.0
        %v2348 = vmul.f32 %v2316, 2.0
        %v2349 = vmul.f32 %v2317, 2.0
        %v2350 = vmul.f32 %v2318, 2.0
        %v2351 = vsub.f32 1.0, %v2319
        %v2352 = vsub.f32 1.0, %v2320
        %v2353 = vsub.f32 1.0, %v2321
        %v2354 = vsub.f32 1.0, %v2322
        %v2355 = vsub.f32 1.0, %v2323
        %v2356 = vsub.f32 1.0, %v2324
        %v2357 = vsub.f32 1.0, %v2325
        %v2358 = vsub.f32 1.0, %v2326
        %v2359 = vsub.f32 1.0, %v2327
        %v2360 = vsub.f32 1.0, %v2328
        %v2361 = vsub.f32 1.0, %v2329
        %v2362 = vsub.f32 1.0, %v2330
        %v2363 = vsub.f32 1.0, %v2331
        %v2364 = vsub.f32 1.0, %v2332
        %v2365 = vsub.f32 1.0, %v2333
        %v2366 = vsub.f32 1.0, %v2334
        %v2367 = vsub.f32 1.0, %v2335
        %v2368 = vsub.f32 1.0, %v2336
        %v2369 = vsub.f32 1.0, %v2337
        %v2370 = vsub.f32 1.0, %v2338
        %v2371 = vsub.f32 1.0, %v2339
        %v2372 = vsub.f32 1.0, %v2340
        %v2373 = vsub.f32 1.0, %v2341
        %v2374 = vsub.f32 1.0, %v2342
        %v2375 = vsub.f32 1.0, %v2343
        %v2376 = vsub.f32 1.0, %v2344
        %v2377 = vsub.f32 1.0, %v2345
        %v2378 = vsub.f32 1.0, %v2346
        %v2379 = vsub.f32 1.0, %v2347
        %v2380 = vsub.f32 1.0, %v2348
        %v2381 = vsub.f32 1.0, %v2349
        %v2382 = vsub.f32 1.0, %v2350
        %v2383 = vmul.f32 %v1863, %v1895
        %v2384 = vmul.f32 %v1864, %v1896
        %v2385 = vmul.f32 %v1865, %v1897
        %v2386 = vmul.f32 %v1866, %v1898
        %v2387 = vmul.f32 %v1867, %v1899
        %v2388 = vmul.f32 %v1868, %v1900
        %v2389 = vmul.f32 %v1869, %v1901
        %v2390 = vmul.f32 %v1870, %v1902
        %v2391 = vmul.f32 %v1871, %v1903
        %v2392 = vmul.f32 %v1872, %v1904
        %v2393 = vmul.f32 %v1873, %v1905
        %v2394 = vmul.f32 %v1874, %v1906
        %v2395 = vmul.f32 %v1875, %v1907
        %v2396 = vmul.f32 %v1876, %v1908
        %v2397 = vmul.f32 %v1877, %v1909
        %v2398 = vmul.f32 %v1878, %v1910
        %v2399 = vmul.f32 %v1879, %v1911
        %v2400 = vmul.f32 %v1880, %v1912
        %v2401 = vmul.f32 %v1881, %v1913
        %v2402 = vmul.f32 %v1882, %v1914
        %v2403 = vmul.f32 %v1883, %v1915
        %v2404 = vmul.f32 %v1884, %v1916
        %v2405 = vmul.f32 %v1885, %v1917
        %v2406 = vmul.f32 %v1886, %v1918
        %v2407 = vmul.f32 %v1887, %v1919
        %v2408 = vmul.f32 %v1888, %v1920
        %v2409 = vmul.f32 %v1889, %v1921
        %v2410 = vmul.f32 %v1890, %v1922
        %v2411 = vmul.f32 %v1891, %v1923
        %v2412 = vmul.f32 %v1892, %v1924
        %v2413 = vmul.f32 %v1893, %v1925
        %v2414 = vmul.f32 %v1894, %v1926
        %v2415 = vmul.f32 %v1831, %v1927
        %v2416 = vmul.f32 %v1832, %v1928
        %v2417 = vmul.f32 %v1833, %v1929
        %v2418 = vmul.f32 %v1834, %v1930
        %v2419 = vmul.f32 %v1835, %v1931
        %v2420 = vmul.f32 %v1836, %v1932
        %v2421 = vmul.f32 %v1837, %v1933
        %v2422 = vmul.f32 %v1838, %v1934
        %v2423 = vmul.f32 %v1839, %v1935
        %v2424 = vmul.f32 %v1840, %v1936
        %v2425 = vmul.f32 %v1841, %v1937
        %v2426 = vmul.f32 %v1842, %v1938
        %v2427 = vmul.f32 %v1843, %v1939
        %v2428 = vmul.f32 %v1844, %v1940
        %v2429 = vmul.f32 %v1845, %v1941
        %v2430 = vmul.f32 %v1846, %v1942
        %v2431 = vmul.f32 %v1847, %v1943
        %v2432 = vmul.f32 %v1848, %v1944
        %v2433 = vmul.f32 %v1849, %v1945
        %v2434 = vmul.f32 %v1850, %v1946
        %v2435 = vmul.f32 %v1851, %v1947
        %v2436 = vmul.f32 %v1852, %v1948
        %v2437 = vmul.f32 %v1853, %v1949
        %v2438 = vmul.f32 %v1854, %v1950
        %v2439 = vmul.f32 %v1855, %v1951
        %v2440 = vmul.f32 %v1856, %v1952
        %v2441 = vmul.f32 %v1857, %v1953
        %v2442 = vmul.f32 %v1858, %v1954
        %v2443 = vmul.f32 %v1859, %v1955
        %v2444 = vmul.f32 %v1860, %v1956
        %v2445 = vmul.f32 %v1861, %v1957
        %v2446 = vmul.f32 %v1862, %v1958
        %v2447 = vsub.f32 %v2383, %v2415
        %v2448 = vsub.f32 %v2384, %v2416
        %v2449 = vsub.f32 %v2385, %v2417
        %v2450 = vsub.f32 %v2386, %v2418
        %v2451 = vsub.f32 %v2387, %v2419
        %v2452 = vsub.f32 %v2388, %v2420
        %v2453 = vsub.f32 %v2389, %v2421
        %v2454 = vsub.f32 %v2390, %v2422
        %v2455 = vsub.f32 %v2391, %v2423
        %v2456 = vsub.f32 %v2392, %v2424
        %v2457 = vsub.f32 %v2393, %v2425
        %v2458 = vsub.f32 %v2394, %v2426
        %v2459 = vsub.f32 %v2395, %v2427
        %v2460 = vsub.f32 %v2396, %v2428
        %v2461 = vsub.f32 %v2397, %v2429
        %v2462 = vsub.f32 %v2398, %v2430
        %v2463 = vsub.f32 %v2399, %v2431
        %v2464 = vsub.f32 %v2400, %v2432
        %v2465 = vsub.f32 %v2401, %v2433
        %v2466 = vsub.f32 %v2402, %v2434
        %v2467 = vsub.f32 %v2403, %v2435
        %v2468 = vsub.f32 %v2404, %v2436
        %v2469 = vsub.f32 %v2405, %v2437
        %v2470 = vsub.f32 %v2406, %v2438
        %v2471 = vsub.f32 %v2407, %v2439
        %v2472 = vsub.f32 %v2408, %v2440
        %v2473 = vsub.f32 %v2409, %v2441
        %v2474 = vsub.f32 %v2410, %v2442
        %v2475 = vsub.f32 %v2411, %v2443
        %v2476 = vsub.f32 %v2412, %v2444
        %v2477 = vsub.f32 %v2413, %v2445
        %v2478 = vsub.f32 %v2414, %v2446
        %v2479 = vmul.f32 %v2447, 2.0
        %v2480 = vmul.f32 %v2448, 2.0
        %v2481 = vmul.f32 %v2449, 2.0
        %v2482 = vmul.f32 %v2450, 2.0
        %v2483 = vmul.f32 %v2451, 2.0
        %v2484 = vmul.f32 %v2452, 2.0
        %v2485 = vmul.f32 %v2453, 2.0
        %v2486 = vmul.f32 %v2454, 2.0
        %v2487 = vmul.f32 %v2455, 2.0
        %v2488 = vmul.f32 %v2456, 2.0
        %v2489 = vmul.f32 %v2457, 2.0
        %v2490 = vmul.f32 %v2458, 2.0
        %v2491 = vmul.f32 %v2459, 2.0
        %v2492 = vmul.f32 %v2460, 2.0
        %v2493 = vmul.f32 %v2461, 2.0
        %v2494 = vmul.f32 %v2462, 2.0
        %v2495 = vmul.f32 %v2463, 2.0
        %v2496 = vmul.f32 %v2464, 2.0
        %v2497 = vmul.f32 %v2465, 2.0
        %v2498 = vmul.f32 %v2466, 2.0
        %v2499 = vmul.f32 %v2467, 2.0
        %v2500 = vmul.f32 %v2468, 2.0
        %v2501 = vmul.f32 %v2469, 2.0
        %v2502 = vmul.f32 %v2470, 2.0
        %v2503 = vmul.f32 %v2471, 2.0
        %v2504 = vmul.f32 %v2472, 2.0
        %v2505 = vmul.f32 %v2473, 2.0
        %v2506 = vmul.f32 %v2474, 2.0
        %v2507 = vmul.f32 %v2475, 2.0
        %v2508 = vmul.f32 %v2476, 2.0
        %v2509 = vmul.f32 %v2477, 2.0
        %v2510 = vmul.f32 %v2478, 2.0
        %v2511 = vmul.f32 %v1863, %v1927
        %v2512 = vmul.f32 %v1864, %v1928
        %v2513 = vmul.f32 %v1865, %v1929
        %v2514 = vmul.f32 %v1866, %v1930
        %v2515 = vmul.f32 %v1867, %v1931
        %v2516 = vmul.f32 %v1868, %v1932
        %v2517 = vmul.f32 %v1869, %v1933
        %v2518 = vmul.f32 %v1870, %v1934
        %v2519 = vmul.f32 %v1871, %v1935
        %v2520 = vmul.f32 %v1872, %v1936
        %v2521 = vmul.f32 %v1873, %v1937
        %v2522 = vmul.f32 %v1874, %v1938
        %v2523 = vmul.f32 %v1875, %v1939
        %v2524 = vmul.f32 %v1876, %v1940
        %v2525 = vmul.f32 %v1877, %v1941
        %v2526 = vmul.f32 %v1878, %v1942
        %v2527 = vmul.f32 %v1879, %v1943
        %v2528 = vmul.f32 %v1880, %v1944
        %v2529 = vmul.f32 %v1881, %v1945
        %v2530 = vmul.f32 %v1882, %v1946
        %v2531 = vmul.f32 %v1883, %v1947
        %v2532 = vmul.f32 %v1884, %v1948
        %v2533 = vmul.f32 %v1885, %v1949
        %v2534 = vmul.f32 %v1886, %v1950
        %v2535 = vmul.f32 %v1887, %v1951
        %v2536 = vmul.f32 %v1888, %v1952
        %v2537 = vmul.f32 %v1889, %v1953
        %v2538 = vmul.f32 %v1890, %v1954
        %v2539 = vmul.f32 %v1891, %v1955
        %v2540 = vmul.f32 %v1892, %v1956
        %v2541 = vmul.f32 %v1893, %v1957
        %v2542 = vmul.f32 %v1894, %v1958
        %v2543 = vmul.f32 %v1831, %v1895
        %v2544 = vmul.f32 %v1832, %v1896
        %v2545 = vmul.f32 %v1833, %v1897
        %v2546 = vmul.f32 %v1834, %v1898
        %v2547 = vmul.f32 %v1835, %v1899
        %v2548 = vmul.f32 %v1836, %v1900
        %v2549 = vmul.f32 %v1837, %v1901
        %v2550 = vmul.f32 %v1838, %v1902
        %v2551 = vmul.f32 %v1839, %v1903
        %v2552 = vmul.f32 %v1840, %v1904
        %v2553 = vmul.f32 %v1841, %v1905
        %v2554 = vmul.f32 %v1842, %v1906
        %v2555 = vmul.f32 %v1843, %v1907
        %v2556 = vmul.f32 %v1844, %v1908
        %v2557 = vmul.f32 %v1845, %v1909
        %v2558 = vmul.f32 %v1846, %v1910
        %v2559 = vmul.f32 %v1847, %v1911
        %v2560 = vmul.f32 %v1848, %v1912
        %v2561 = vmul.f32 %v1849, %v1913
        %v2562 = vmul.f32 %v1850, %v1914
        %v2563 = vmul.f32 %v1851, %v1915
        %v2564 = vmul.f32 %v1852, %v1916
        %v2565 = vmul.f32 %v1853, %v1917
        %v2566 = vmul.f32 %v1854, %v1918
        %v2567 = vmul.f32 %v1855, %v1919
        %v2568 = vmul.f32 %v1856, %v1920
        %v2569 = vmul.f32 %v1857, %v1921
        %v2570 = vmul.f32 %v1858, %v1922
        %v2571 = vmul.f32 %v1859, %v1923
        %v2572 = vmul.f32 %v1860, %v1924
        %v2573 = vmul.f32 %v1861, %v1925
        %v2574 = vmul.f32 %v1862, %v1926
        %v2575 = vadd.f32 %v2511, %v2543
        %v2576 = vadd.f32 %v2512, %v2544
        %v2577 = vadd.f32 %v2513, %v2545
        %v2578 = vadd.f32 %v2514, %v2546
        %v2579 = vadd.f32 %v2515, %v2547
        %v2580 = vadd.f32 %v2516, %v2548
        %v2581 = vadd.f32 %v2517, %v2549
        %v2582 = vadd.f32 %v2518, %v2550
        %v2583 = vadd.f32 %v2519, %v2551
        %v2584 = vadd.f32 %v2520, %v2552
        %v2585 = vadd.f32 %v2521, %v2553
        %v2586 = vadd.f32 %v2522, %v2554
        %v2587 = vadd.f32 %v2523, %v2555
        %v2588 = vadd.f32 %v2524, %v2556
        %v2589 = vadd.f32 %v2525, %v2557
        %v2590 = vadd.f32 %v2526, %v2558
        %v2591 = vadd.f32 %v2527, %v2559
        %v2592 = vadd.f32 %v2528, %v2560
        %v2593 = vadd.f32 %v2529, %v2561
        %v2594 = vadd.f32 %v2530, %v2562
        %v2595 = vadd.f32 %v2531, %v2563
        %v2596 = vadd.f32 %v2532, %v2564
        %v2597 = vadd.f32 %v2533, %v2565
        %v2598 = vadd.f32 %v2534, %v2566
        %v2599 = vadd.f32 %v2535, %v2567
        %v2600 = vadd.f32 %v2536, %v2568
        %v2601 = vadd.f32 %v2537, %v2569
        %v2602 = vadd.f32 %v2538, %v2570
        %v2603 = vadd.f32 %v2539, %v2571
        %v2604 = vadd.f32 %v2540, %v2572
        %v2605 = vadd.f32 %v2541, %v2573
        %v2606 = vadd.f32 %v2542, %v2574
        %v2607 = vmul.f32 %v2575, 2.0
        %v2608 = vmul.f32 %v2576, 2.0
        %v2609 = vmul.f32 %v2577, 2.0
        %v2610 = vmul.f32 %v2578, 2.0
        %v2611 = vmul.f32 %v2579, 2.0
        %v2612 = vmul.f32 %v2580, 2.0
        %v2613 = vmul.f32 %v2581, 2.0
        %v2614 = vmul.f32 %v2582, 2.0
        %v2615 = vmul.f32 %v2583, 2.0
        %v2616 = vmul.f32 %v2584, 2.0
        %v2617 = vmul.f32 %v2585, 2.0
        %v2618 = vmul.f32 %v2586, 2.0
        %v2619 = vmul.f32 %v2587, 2.0
        %v2620 = vmul.f32 %v2588, 2.0
        %v2621 = vmul.f32 %v2589, 2.0
        %v2622 = vmul.f32 %v2590, 2.0
        %v2623 = vmul.f32 %v2591, 2.0
        %v2624 = vmul.f32 %v2592, 2.0
        %v2625 = vmul.f32 %v2593, 2.0
        %v2626 = vmul.f32 %v2594, 2.0
        %v2627 = vmul.f32 %v2595, 2.0
        %v2628 = vmul.f32 %v2596, 2.0
        %v2629 = vmul.f32 %v2597, 2.0
        %v2630 = vmul.f32 %v2598, 2.0
        %v2631 = vmul.f32 %v2599, 2.0
        %v2632 = vmul.f32 %v2600, 2.0
        %v2633 = vmul.f32 %v2601, 2.0
        %v2634 = vmul.f32 %v2602, 2.0
        %v2635 = vmul.f32 %v2603, 2.0
        %v2636 = vmul.f32 %v2604, 2.0
        %v2637 = vmul.f32 %v2605, 2.0
        %v2638 = vmul.f32 %v2606, 2.0
        %v2639 = vadd.f32 %v2383, %v2415
        %v2640 = vadd.f32 %v2384, %v2416
        %v2641 = vadd.f32 %v2385, %v2417
        %v2642 = vadd.f32 %v2386, %v2418
        %v2643 = vadd.f32 %v2387, %v2419
        %v2644 = vadd.f32 %v2388, %v2420
        %v2645 = vadd.f32 %v2389, %v2421
        %v2646 = vadd.f32 %v2390, %v2422
        %v2647 = vadd.f32 %v2391, %v2423
        %v2648 = vadd.f32 %v2392, %v2424
        %v2649 = vadd.f32 %v2393, %v2425
        %v2650 = vadd.f32 %v2394, %v2426
        %v2651 = vadd.f32 %v2395, %v2427
        %v2652 = vadd.f32 %v2396, %v2428
        %v2653 = vadd.f32 %v2397, %v2429
        %v2654 = vadd.f32 %v2398, %v2430
        %v2655 = vadd.f32 %v2399, %v2431
        %v2656 = vadd.f32 %v2400, %v2432
        %v2657 = vadd.f32 %v2401, %v2433
        %v2658 = vadd.f32 %v2402, %v2434
        %v2659 = vadd.f32 %v2403, %v2435
        %v2660 = vadd.f32 %v2404, %v2436
        %v2661 = vadd.f32 %v2405, %v2437
        %v2662 = vadd.f32 %v2406, %v2438
        %v2663 = vadd.f32 %v2407, %v2439
        %v2664 = vadd.f32 %v2408, %v2440
        %v2665 = vadd.f32 %v2409, %v2441
        %v2666 = vadd.f32 %v2410, %v2442
        %v2667 = vadd.f32 %v2411, %v2443
        %v2668 = vadd.f32 %v2412, %v2444
        %v2669 = vadd.f32 %v2413, %v2445
        %v2670 = vadd.f32 %v2414, %v2446
        %v2671 = vmul.f32 %v2639, 2.0
        %v2672 = vmul.f32 %v2640, 2.0
        %v2673 = vmul.f32 %v2641, 2.0
        %v2674 = vmul.f32 %v2642, 2.0
        %v2675 = vmul.f32 %v2643, 2.0
        %v2676 = vmul.f32 %v2644, 2.0
        %v2677 = vmul.f32 %v2645, 2.0
        %v2678 = vmul.f32 %v2646, 2.0
        %v2679 = vmul.f32 %v2647, 2.0
        %v2680 = vmul.f32 %v2648, 2.0
        %v2681 = vmul.f32 %v2649, 2.0
        %v2682 = vmul.f32 %v2650, 2.0
        %v2683 = vmul.f32 %v2651, 2.0
        %v2684 = vmul.f32 %v2652, 2.0
        %v2685 = vmul.f32 %v2653, 2.0
        %v2686 = vmul.f32 %v2654, 2.0
        %v2687 = vmul.f32 %v2655, 2.0
        %v2688 = vmul.f32 %v2656, 2.0
        %v2689 = vmul.f32 %v2657, 2.0
        %v2690 = vmul.f32 %v2658, 2.0
        %v2691 = vmul.f32 %v2659, 2.0
        %v2692 = vmul.f32 %v2660, 2.0
        %v2693 = vmul.f32 %v2661, 2.0
        %v2694 = vmul.f32 %v2662, 2.0
        %v2695 = vmul.f32 %v2663, 2.0
        %v2696 = vmul.f32 %v2664, 2.0
        %v2697 = vmul.f32 %v2665, 2.0
        %v2698 = vmul.f32 %v2666, 2.0
        %v2699 = vmul.f32 %v2667, 2.0
        %v2700 = vmul.f32 %v2668, 2.0
        %v2701 = vmul.f32 %v2669, 2.0
        %v2702 = vmul.f32 %v2670, 2.0
        %v2703 = vmul.f32 %v1863, %v1863
        %v2704 = vmul.f32 %v1864, %v1864
        %v2705 = vmul.f32 %v1865, %v1865
        %v2706 = vmul.f32 %v1866, %v1866
        %v2707 = vmul.f32 %v1867, %v1867
        %v2708 = vmul.f32 %v1868, %v1868
        %v2709 = vmul.f32 %v1869, %v1869
        %v2710 = vmul.f32 %v1870, %v1870
        %v2711 = vmul.f32 %v1871, %v1871
        %v2712 = vmul.f32 %v1872, %v1872
        %v2713 = vmul.f32 %v1873, %v1873
        %v2714 = vmul.f32 %v1874, %v1874
        %v2715 = vmul.f32 %v1875, %v1875
        %v2716 = vmul.f32 %v1876, %v1876
        %v2717 = vmul.f32 %v1877, %v1877
        %v2718 = vmul.f32 %v1878, %v1878
        %v2719 = vmul.f32 %v1879, %v1879
        %v2720 = vmul.f32 %v1880, %v1880
        %v2721 = vmul.f32 %v1881, %v1881
        %v2722 = vmul.f32 %v1882, %v1882
        %v2723 = vmul.f32 %v1883, %v1883
        %v2724 = vmul.f32 %v1884, %v1884
        %v2725 = vmul.f32 %v1885, %v1885
        %v2726 = vmul.f32 %v1886, %v1886
        %v2727 = vmul.f32 %v1887, %v1887
        %v2728 = vmul.f32 %v1888, %v1888
        %v2729 = vmul.f32 %v1889, %v1889
        %v2730 = vmul.f32 %v1890, %v1890
        %v2731 = vmul.f32 %v1891, %v1891
        %v2732 = vmul.f32 %v1892, %v1892
        %v2733 = vmul.f32 %v1893, %v1893
        %v2734 = vmul.f32 %v1894, %v1894
        %v2735 = vadd.f32 %v2703, %v2255
        %v2736 = vadd.f32 %v2704, %v2256
        %v2737 = vadd.f32 %v2705, %v2257
        %v2738 = vadd.f32 %v2706, %v2258
        %v2739 = vadd.f32 %v2707, %v2259
        %v2740 = vadd.f32 %v2708, %v2260
        %v2741 = vadd.f32 %v2709, %v2261
        %v2742 = vadd.f32 %v2710, %v2262
        %v2743 = vadd.f32 %v2711, %v2263
        %v2744 = vadd.f32 %v2712, %v2264
        %v2745 = vadd.f32 %v2713, %v2265
        %v2746 = vadd.f32 %v2714, %v2266
        %v2747 = vadd.f32 %v2715, %v2267
        %v2748 = vadd.f32 %v2716, %v2268
        %v2749 = vadd.f32 %v2717, %v2269
        %v2750 = vadd.f32 %v2718, %v2270
        %v2751 = vadd.f32 %v2719, %v2271
        %v2752 = vadd.f32 %v2720, %v2272
        %v2753 = vadd.f32 %v2721, %v2273
        %v2754 = vadd.f32 %v2722, %v2274
        %v2755 = vadd.f32 %v2723, %v2275
        %v2756 = vadd.f32 %v2724, %v2276
        %v2757 = vadd.f32 %v2725, %v2277
        %v2758 = vadd.f32 %v2726, %v2278
        %v2759 = vadd.f32 %v2727, %v2279
        %v2760 = vadd.f32 %v2728, %v2280
        %v2761 = vadd.f32 %v2729, %v2281
        %v2762 = vadd.f32 %v2730, %v2282
        %v2763 = vadd.f32 %v2731, %v2283
        %v2764 = vadd.f32 %v2732, %v2284
        %v2765 = vadd.f32 %v2733, %v2285
        %v2766 = vadd.f32 %v2734, %v2286
        %v2767 = vmul.f32 %v2735, 2.0
        %v2768 = vmul.f32 %v2736, 2.0
        %v2769 = vmul.f32 %v2737, 2.0
        %v2770 = vmul.f32 %v2738, 2.0
        %v2771 = vmul.f32 %v2739, 2.0
        %v2772 = vmul.f32 %v2740, 2.0
        %v2773 = vmul.f32 %v2741, 2.0
        %v2774 = vmul.f32 %v2742, 2.0
        %v2775 = vmul.f32 %v2743, 2.0
        %v2776 = vmul.f32 %v2744, 2.0
        %v2777 = vmul.f32 %v2745, 2.0
        %v2778 = vmul.f32 %v2746, 2.0
        %v2779 = vmul.f32 %v2747, 2.0
        %v2780 = vmul.f32 %v2748, 2.0
        %v2781 = vmul.f32 %v2749, 2.0
        %v2782 = vmul.f32 %v2750, 2.0
        %v2783 = vmul.f32 %v2751, 2.0
        %v2784 = vmul.f32 %v2752, 2.0
        %v2785 = vmul.f32 %v2753, 2.0
        %v2786 = vmul.f32 %v2754, 2.0
        %v2787 = vmul.f32 %v2755, 2.0
        %v2788 = vmul.f32 %v2756, 2.0
        %v2789 = vmul.f32 %v2757, 2.0
        %v2790 = vmul.f32 %v2758, 2.0
        %v2791 = vmul.f32 %v2759, 2.0
        %v2792 = vmul.f32 %v2760, 2.0
        %v2793 = vmul.f32 %v2761, 2.0
        %v2794 = vmul.f32 %v2762, 2.0
        %v2795 = vmul.f32 %v2763, 2.0
        %v2796 = vmul.f32 %v2764, 2.0
        %v2797 = vmul.f32 %v2765, 2.0
        %v2798 = vmul.f32 %v2766, 2.0
        %v2799 = vsub.f32 1.0, %v2767
        %v2800 = vsub.f32 1.0, %v2768
        %v2801 = vsub.f32 1.0, %v2769
        %v2802 = vsub.f32 1.0, %v2770
        %v2803 = vsub.f32 1.0, %v2771
        %v2804 = vsub.f32 1.0, %v2772
        %v2805 = vsub.f32 1.0, %v2773
        %v2806 = vsub.f32 1.0, %v2774
        %v2807 = vsub.f32 1.0, %v2775
        %v2808 = vsub.f32 1.0, %v2776
        %v2809 = vsub.f32 1.0, %v2777
        %v2810 = vsub.f32 1.0, %v2778
        %v2811 = vsub.f32 1.0, %v2779
        %v2812 = vsub.f32 1.0, %v2780
        %v2813 = vsub.f32 1.0, %v2781
        %v2814 = vsub.f32 1.0, %v2782
        %v2815 = vsub.f32 1.0, %v2783
        %v2816 = vsub.f32 1.0, %v2784
        %v2817 = vsub.f32 1.0, %v2785
        %v2818 = vsub.f32 1.0, %v2786
        %v2819 = vsub.f32 1.0, %v2787
        %v2820 = vsub.f32 1.0, %v2788
        %v2821 = vsub.f32 1.0, %v2789
        %v2822 = vsub.f32 1.0, %v2790
        %v2823 = vsub.f32 1.0, %v2791
        %v2824 = vsub.f32 1.0, %v2792
        %v2825 = vsub.f32 1.0, %v2793
        %v2826 = vsub.f32 1.0, %v2794
        %v2827 = vsub.f32 1.0, %v2795
        %v2828 = vsub.f32 1.0, %v2796
        %v2829 = vsub.f32 1.0, %v2797
        %v2830 = vsub.f32 1.0, %v2798
        %v2831 = vmul.f32 %v1895, %v1927
        %v2832 = vmul.f32 %v1896, %v1928
        %v2833 = vmul.f32 %v1897, %v1929
        %v2834 = vmul.f32 %v1898, %v1930
        %v2835 = vmul.f32 %v1899, %v1931
        %v2836 = vmul.f32 %v1900, %v1932
        %v2837 = vmul.f32 %v1901, %v1933
        %v2838 = vmul.f32 %v1902, %v1934
        %v2839 = vmul.f32 %v1903, %v1935
        %v2840 = vmul.f32 %v1904, %v1936
        %v2841 = vmul.f32 %v1905, %v1937
        %v2842 = vmul.f32 %v1906, %v1938
        %v2843 = vmul.f32 %v1907, %v1939
        %v2844 = vmul.f32 %v1908, %v1940
        %v2845 = vmul.f32 %v1909, %v1941
        %v2846 = vmul.f32 %v1910, %v1942
        %v2847 = vmul.f32 %v1911, %v1943
        %v2848 = vmul.f32 %v1912, %v1944
        %v2849 = vmul.f32 %v1913, %v1945
        %v2850 = vmul.f32 %v1914, %v1946
        %v2851 = vmul.f32 %v1915, %v1947
        %v2852 = vmul.f32 %v1916, %v1948
        %v2853 = vmul.f32 %v1917, %v1949
        %v2854 = vmul.f32 %v1918, %v1950
        %v2855 = vmul.f32 %v1919, %v1951
        %v2856 = vmul.f32 %v1920, %v1952
        %v2857 = vmul.f32 %v1921, %v1953
        %v2858 = vmul.f32 %v1922, %v1954
        %v2859 = vmul.f32 %v1923, %v1955
        %v2860 = vmul.f32 %v1924, %v1956
        %v2861 = vmul.f32 %v1925, %v1957
        %v2862 = vmul.f32 %v1926, %v1958
        %v2863 = vmul.f32 %v1831, %v1863
        %v2864 = vmul.f32 %v1832, %v1864
        %v2865 = vmul.f32 %v1833, %v1865
        %v2866 = vmul.f32 %v1834, %v1866
        %v2867 = vmul.f32 %v1835, %v1867
        %v2868 = vmul.f32 %v1836, %v1868
        %v2869 = vmul.f32 %v1837, %v1869
        %v2870 = vmul.f32 %v1838, %v1870
        %v2871 = vmul.f32 %v1839, %v1871
        %v2872 = vmul.f32 %v1840, %v1872
        %v2873 = vmul.f32 %v1841, %v1873
        %v2874 = vmul.f32 %v1842, %v1874
        %v2875 = vmul.f32 %v1843, %v1875
        %v2876 = vmul.f32 %v1844, %v1876
        %v2877 = vmul.f32 %v1845, %v1877
        %v2878 = vmul.f32 %v1846, %v1878
        %v2879 = vmul.f32 %v1847, %v1879
        %v2880 = vmul.f32 %v1848, %v1880
        %v2881 = vmul.f32 %v1849, %v1881
        %v2882 = vmul.f32 %v1850, %v1882
        %v2883 = vmul.f32 %v1851, %v1883
        %v2884 = vmul.f32 %v1852, %v1884
        %v2885 = vmul.f32 %v1853, %v1885
        %v2886 = vmul.f32 %v1854, %v1886
        %v2887 = vmul.f32 %v1855, %v1887
        %v2888 = vmul.f32 %v1856, %v1888
        %v2889 = vmul.f32 %v1857, %v1889
        %v2890 = vmul.f32 %v1858, %v1890
        %v2891 = vmul.f32 %v1859, %v1891
        %v2892 = vmul.f32 %v1860, %v1892
        %v2893 = vmul.f32 %v1861, %v1893
        %v2894 = vmul.f32 %v1862, %v1894
        %v2895 = vsub.f32 %v2831, %v2863
        %v2896 = vsub.f32 %v2832, %v2864
        %v2897 = vsub.f32 %v2833, %v2865
        %v2898 = vsub.f32 %v2834, %v2866
        %v2899 = vsub.f32 %v2835, %v2867
        %v2900 = vsub.f32 %v2836, %v2868
        %v2901 = vsub.f32 %v2837, %v2869
        %v2902 = vsub.f32 %v2838, %v2870
        %v2903 = vsub.f32 %v2839, %v2871
        %v2904 = vsub.f32 %v2840, %v2872
        %v2905 = vsub.f32 %v2841, %v2873
        %v2906 = vsub.f32 %v2842, %v2874
        %v2907 = vsub.f32 %v2843, %v2875
        %v2908 = vsub.f32 %v2844, %v2876
        %v2909 = vsub.f32 %v2845, %v2877
        %v2910 = vsub.f32 %v2846, %v2878
        %v2911 = vsub.f32 %v2847, %v2879
        %v2912 = vsub.f32 %v2848, %v2880
        %v2913 = vsub.f32 %v2849, %v2881
        %v2914 = vsub.f32 %v2850, %v2882
        %v2915 = vsub.f32 %v2851, %v2883
        %v2916 = vsub.f32 %v2852, %v2884
        %v2917 = vsub.f32 %v2853, %v2885
        %v2918 = vsub.f32 %v2854, %v2886
        %v2919 = vsub.f32 %v2855, %v2887
        %v2920 = vsub.f32 %v2856, %v2888
        %v2921 = vsub.f32 %v2857, %v2889
        %v2922 = vsub.f32 %v2858, %v2890
        %v2923 = vsub.f32 %v2859, %v2891
        %v2924 = vsub.f32 %v2860, %v2892
        %v2925 = vsub.f32 %v2861, %v2893
        %v2926 = vsub.f32 %v2862, %v2894
        %v2927 = vmul.f32 %v2895, 2.0
        %v2928 = vmul.f32 %v2896, 2.0
        %v2929 = vmul.f32 %v2897, 2.0
        %v2930 = vmul.f32 %v2898, 2.0
        %v2931 = vmul.f32 %v2899, 2.0
        %v2932 = vmul.f32 %v2900, 2.0
        %v2933 = vmul.f32 %v2901, 2.0
        %v2934 = vmul.f32 %v2902, 2.0
        %v2935 = vmul.f32 %v2903, 2.0
        %v2936 = vmul.f32 %v2904, 2.0
        %v2937 = vmul.f32 %v2905, 2.0
        %v2938 = vmul.f32 %v2906, 2.0
        %v2939 = vmul.f32 %v2907, 2.0
        %v2940 = vmul.f32 %v2908, 2.0
        %v2941 = vmul.f32 %v2909, 2.0
        %v2942 = vmul.f32 %v2910, 2.0
        %v2943 = vmul.f32 %v2911, 2.0
        %v2944 = vmul.f32 %v2912, 2.0
        %v2945 = vmul.f32 %v2913, 2.0
        %v2946 = vmul.f32 %v2914, 2.0
        %v2947 = vmul.f32 %v2915, 2.0
        %v2948 = vmul.f32 %v2916, 2.0
        %v2949 = vmul.f32 %v2917, 2.0
        %v2950 = vmul.f32 %v2918, 2.0
        %v2951 = vmul.f32 %v2919, 2.0
        %v2952 = vmul.f32 %v2920, 2.0
        %v2953 = vmul.f32 %v2921, 2.0
        %v2954 = vmul.f32 %v2922, 2.0
        %v2955 = vmul.f32 %v2923, 2.0
        %v2956 = vmul.f32 %v2924, 2.0
        %v2957 = vmul.f32 %v2925, 2.0
        %v2958 = vmul.f32 %v2926, 2.0
        %v2959 = vsub.f32 %v2511, %v2543
        %v2960 = vsub.f32 %v2512, %v2544
        %v2961 = vsub.f32 %v2513, %v2545
        %v2962 = vsub.f32 %v2514, %v2546
        %v2963 = vsub.f32 %v2515, %v2547
        %v2964 = vsub.f32 %v2516, %v2548
        %v2965 = vsub.f32 %v2517, %v2549
        %v2966 = vsub.f32 %v2518, %v2550
        %v2967 = vsub.f32 %v2519, %v2551
        %v2968 = vsub.f32 %v2520, %v2552
        %v2969 = vsub.f32 %v2521, %v2553
        %v2970 = vsub.f32 %v2522, %v2554
        %v2971 = vsub.f32 %v2523, %v2555
        %v2972 = vsub.f32 %v2524, %v2556
        %v2973 = vsub.f32 %v2525, %v2557
        %v2974 = vsub.f32 %v2526, %v2558
        %v2975 = vsub.f32 %v2527, %v2559
        %v2976 = vsub.f32 %v2528, %v2560
        %v2977 = vsub.f32 %v2529, %v2561
        %v2978 = vsub.f32 %v2530, %v2562
        %v2979 = vsub.f32 %v2531, %v2563
        %v2980 = vsub.f32 %v2532, %v2564
        %v2981 = vsub.f32 %v2533, %v2565
        %v2982 = vsub.f32 %v2534, %v2566
        %v2983 = vsub.f32 %v2535, %v2567
        %v2984 = vsub.f32 %v2536, %v2568
        %v2985 = vsub.f32 %v2537, %v2569
        %v2986 = vsub.f32 %v2538, %v2570
        %v2987 = vsub.f32 %v2539, %v2571
        %v2988 = vsub.f32 %v2540, %v2572
        %v2989 = vsub.f32 %v2541, %v2573
        %v2990 = vsub.f32 %v2542, %v2574
        %v2991 = vmul.f32 %v2959, 2.0
        %v2992 = vmul.f32 %v2960, 2.0
        %v2993 = vmul.f32 %v2961, 2.0
        %v2994 = vmul.f32 %v2962, 2.0
        %v2995 = vmul.f32 %v2963, 2.0
        %v2996 = vmul.f32 %v2964, 2.0
        %v2997 = vmul.f32 %v2965, 2.0
        %v2998 = vmul.f32 %v2966, 2.0
        %v2999 = vmul.f32 %v2967, 2.0
        %v3000 = vmul.f32 %v2968, 2.0
        %v3001 = vmul.f32 %v2969, 2.0
        %v3002 = vmul.f32 %v2970, 2.0
        %v3003 = vmul.f32 %v2971, 2.0
        %v3004 = vmul.f32 %v2972, 2.0
        %v3005 = vmul.f32 %v2973, 2.0
        %v3006 = vmul.f32 %v2974, 2.0
        %v3007 = vmul.f32 %v2975, 2.0
        %v3008 = vmul.f32 %v2976, 2.0
        %v3009 = vmul.f32 %v2977, 2.0
        %v3010 = vmul.f32 %v2978, 2.0
        %v3011 = vmul.f32 %v2979, 2.0
        %v3012 = vmul.f32 %v2980, 2.0
        %v3013 = vmul.f32 %v2981, 2.0
        %v3014 = vmul.f32 %v2982, 2.0
        %v3015 = vmul.f32 %v2983, 2.0
        %v3016 = vmul.f32 %v2984, 2.0
        %v3017 = vmul.f32 %v2985, 2.0
        %v3018 = vmul.f32 %v2986, 2.0
        %v3019 = vmul.f32 %v2987, 2.0
        %v3020 = vmul.f32 %v2988, 2.0
        %v3021 = vmul.f32 %v2989, 2.0
        %v3022 = vmul.f32 %v2990, 2.0
        %v3023 = vadd.f32 %v2831, %v2863
        %v3024 = vadd.f32 %v2832, %v2864
        %v3025 = vadd.f32 %v2833, %v2865
        %v3026 = vadd.f32 %v2834, %v2866
        %v3027 = vadd.f32 %v2835, %v2867
        %v3028 = vadd.f32 %v2836, %v2868
        %v3029 = vadd.f32 %v2837, %v2869
        %v3030 = vadd.f32 %v2838, %v2870
        %v3031 = vadd.f32 %v2839, %v2871
        %v3032 = vadd.f32 %v2840, %v2872
        %v3033 = vadd.f32 %v2841, %v2873
        %v3034 = vadd.f32 %v2842, %v2874
        %v3035 = vadd.f32 %v2843, %v2875
        %v3036 = vadd.f32 %v2844, %v2876
        %v3037 = vadd.f32 %v2845, %v2877
        %v3038 = vadd.f32 %v2846, %v2878
        %v3039 = vadd.f32 %v2847, %v2879
        %v3040 = vadd.f32 %v2848, %v2880
        %v3041 = vadd.f32 %v2849, %v2881
        %v3042 = vadd.f32 %v2850, %v2882
        %v3043 = vadd.f32 %v2851, %v2883
        %v3044 = vadd.f32 %v2852, %v2884
        %v3045 = vadd.f32 %v2853, %v2885
        %v3046 = vadd.f32 %v2854, %v2886
        %v3047 = vadd.f32 %v2855, %v2887
        %v3048 = vadd.f32 %v2856, %v2888
        %v3049 = vadd.f32 %v2857, %v2889
        %v3050 = vadd.f32 %v2858, %v2890
        %v3051 = vadd.f32 %v2859, %v2891
        %v3052 = vadd.f32 %v2860, %v2892
        %v3053 = vadd.f32 %v2861, %v2893
        %v3054 = vadd.f32 %v2862, %v2894
        %v3055 = vmul.f32 %v3023, 2.0
        %v3056 = vmul.f32 %v3024, 2.0
        %v3057 = vmul.f32 %v3025, 2.0
        %v3058 = vmul.f32 %v3026, 2.0
        %v3059 = vmul.f32 %v3027, 2.0
        %v3060 = vmul.f32 %v3028, 2.0
        %v3061 = vmul.f32 %v3029, 2.0
        %v3062 = vmul.f32 %v3030, 2.0
        %v3063 = vmul.f32 %v3031, 2.0
        %v3064 = vmul.f32 %v3032, 2.0
        %v3065 = vmul.f32 %v3033, 2.0
        %v3066 = vmul.f32 %v3034, 2.0
        %v3067 = vmul.f32 %v3035, 2.0
        %v3068 = vmul.f32 %v3036, 2.0
        %v3069 = vmul.f32 %v3037, 2.0
        %v3070 = vmul.f32 %v3038, 2.0
        %v3071 = vmul.f32 %v3039, 2.0
        %v3072 = vmul.f32 %v3040, 2.0
        %v3073 = vmul.f32 %v3041, 2.0
        %v3074 = vmul.f32 %v3042, 2.0
        %v3075 = vmul.f32 %v3043, 2.0
        %v3076 = vmul.f32 %v3044, 2.0
        %v3077 = vmul.f32 %v3045, 2.0
        %v3078 = vmul.f32 %v3046, 2.0
        %v3079 = vmul.f32 %v3047, 2.0
        %v3080 = vmul.f32 %v3048, 2.0
        %v3081 = vmul.f32 %v3049, 2.0
        %v3082 = vmul.f32 %v3050, 2.0
        %v3083 = vmul.f32 %v3051, 2.0
        %v3084 = vmul.f32 %v3052, 2.0
        %v3085 = vmul.f32 %v3053, 2.0
        %v3086 = vmul.f32 %v3054, 2.0
        %v3087 = vadd.f32 %v2703, %v2223
        %v3088 = vadd.f32 %v2704, %v2224
        %v3089 = vadd.f32 %v2705, %v2225
        %v3090 = vadd.f32 %v2706, %v2226
        %v3091 = vadd.f32 %v2707, %v2227
        %v3092 = vadd.f32 %v2708, %v2228
        %v3093 = vadd.f32 %v2709, %v2229
        %v3094 = vadd.f32 %v2710, %v2230
        %v3095 = vadd.f32 %v2711, %v2231
        %v3096 = vadd.f32 %v2712, %v2232
        %v3097 = vadd.f32 %v2713, %v2233
        %v3098 = vadd.f32 %v2714, %v2234
        %v3099 = vadd.f32 %v2715, %v2235
        %v3100 = vadd.f32 %v2716, %v2236
        %v3101 = vadd.f32 %v2717, %v2237
        %v3102 = vadd.f32 %v2718, %v2238
        %v3103 = vadd.f32 %v2719, %v2239
        %v3104 = vadd.f32 %v2720, %v2240
        %v3105 = vadd.f32 %v2721, %v2241
        %v3106 = vadd.f32 %v2722, %v2242
        %v3107 = vadd.f32 %v2723, %v2243
        %v3108 = vadd.f32 %v2724, %v2244
        %v3109 = vadd.f32 %v2725, %v2245
        %v3110 = vadd.f32 %v2726, %v2246
        %v3111 = vadd.f32 %v2727, %v2247
        %v3112 = vadd.f32 %v2728, %v2248
        %v3113 = vadd.f32 %v2729, %v2249
        %v3114 = vadd.f32 %v2730, %v2250
        %v3115 = vadd.f32 %v2731, %v2251
        %v3116 = vadd.f32 %v2732, %v2252
        %v3117 = vadd.f32 %v2733, %v2253
        %v3118 = vadd.f32 %v2734, %v2254
        %v3119 = vmul.f32 %v3087, 2.0
        %v3120 = vmul.f32 %v3088, 2.0
        %v3121 = vmul.f32 %v3089, 2.0
        %v3122 = vmul.f32 %v3090, 2.0
        %v3123 = vmul.f32 %v3091, 2.0
        %v3124 = vmul.f32 %v3092, 2.0
        %v3125 = vmul.f32 %v3093, 2.0
        %v3126 = vmul.f32 %v3094, 2.0
        %v3127 = vmul.f32 %v3095, 2.0
        %v3128 = vmul.f32 %v3096, 2.0
        %v3129 = vmul.f32 %v3097, 2.0
        %v3130 = vmul.f32 %v3098, 2.0
        %v3131 = vmul.f32 %v3099, 2.0
        %v3132 = vmul.f32 %v3100, 2.0
        %v3133 = vmul.f32 %v3101, 2.0
        %v3134 = vmul.f32 %v3102, 2.0
        %v3135 = vmul.f32 %v3103, 2.0
        %v3136 = vmul.f32 %v3104, 2.0
        %v3137 = vmul.f32 %v3105, 2.0
        %v3138 = vmul.f32 %v3106, 2.0
        %v3139 = vmul.f32 %v3107, 2.0
        %v3140 = vmul.f32 %v3108, 2.0
        %v3141 = vmul.f32 %v3109, 2.0
        %v3142 = vmul.f32 %v3110, 2.0
        %v3143 = vmul.f32 %v3111, 2.0
        %v3144 = vmul.f32 %v3112, 2.0
        %v3145 = vmul.f32 %v3113, 2.0
        %v3146 = vmul.f32 %v3114, 2.0
        %v3147 = vmul.f32 %v3115, 2.0
        %v3148 = vmul.f32 %v3116, 2.0
        %v3149 = vmul.f32 %v3117, 2.0
        %v3150 = vmul.f32 %v3118, 2.0
        %v3151 = vsub.f32 1.0, %v3119
        %v3152 = vsub.f32 1.0, %v3120
        %v3153 = vsub.f32 1.0, %v3121
        %v3154 = vsub.f32 1.0, %v3122
        %v3155 = vsub.f32 1.0, %v3123
        %v3156 = vsub.f32 1.0, %v3124
        %v3157 = vsub.f32 1.0, %v3125
        %v3158 = vsub.f32 1.0, %v3126
        %v3159 = vsub.f32 1.0, %v3127
        %v3160 = vsub.f32 1.0, %v3128
        %v3161 = vsub.f32 1.0, %v3129
        %v3162 = vsub.f32 1.0, %v3130
        %v3163 = vsub.f32 1.0, %v3131
        %v3164 = vsub.f32 1.0, %v3132
        %v3165 = vsub.f32 1.0, %v3133
        %v3166 = vsub.f32 1.0, %v3134
        %v3167 = vsub.f32 1.0, %v3135
        %v3168 = vsub.f32 1.0, %v3136
        %v3169 = vsub.f32 1.0, %v3137
        %v3170 = vsub.f32 1.0, %v3138
        %v3171 = vsub.f32 1.0, %v3139
        %v3172 = vsub.f32 1.0, %v3140
        %v3173 = vsub.f32 1.0, %v3141
        %v3174 = vsub.f32 1.0, %v3142
        %v3175 = vsub.f32 1.0, %v3143
        %v3176 = vsub.f32 1.0, %v3144
        %v3177 = vsub.f32 1.0, %v3145
        %v3178 = vsub.f32 1.0, %v3146
        %v3179 = vsub.f32 1.0, %v3147
        %v3180 = vsub.f32 1.0, %v3148
        %v3181 = vsub.f32 1.0, %v3149
        %v3182 = vsub.f32 1.0, %v3150
        %s3183 = sld [smem:[#allocation2]]
        %v3184 = vstv %s3183
        %v3185 = vmul.f32 %v456, %v3184
        %v3186 = vmul.f32 %v458, %v3184
        %v3187 = vmul.f32 %v460, %v3184
        %v3188 = vmul.f32 %v462, %v3184
        %v3189 = vmul.f32 %v464, %v3184
        %v3190 = vmul.f32 %v466, %v3184
        %v3191 = vmul.f32 %v468, %v3184
        %v3192 = vmul.f32 %v470, %v3184
        %v3193 = vmul.f32 %v472, %v3184
        %v3194 = vmul.f32 %v474, %v3184
        %v3195 = vmul.f32 %v476, %v3184
        %v3196 = vmul.f32 %v478, %v3184
        %v3197 = vmul.f32 %v480, %v3184
        %v3198 = vmul.f32 %v482, %v3184
        %v3199 = vmul.f32 %v484, %v3184
        %v3200 = vmul.f32 %v486, %v3184
        %v3201 = vmul.f32 %v488, %v3184
        %v3202 = vmul.f32 %v490, %v3184
        %v3203 = vmul.f32 %v492, %v3184
        %v3204 = vmul.f32 %v494, %v3184
        %v3205 = vmul.f32 %v496, %v3184
        %v3206 = vmul.f32 %v498, %v3184
        %v3207 = vmul.f32 %v500, %v3184
        %v3208 = vmul.f32 %v502, %v3184
        %v3209 = vmul.f32 %v504, %v3184
        %v3210 = vmul.f32 %v506, %v3184
        %v3211 = vmul.f32 %v508, %v3184
        %v3212 = vmul.f32 %v510, %v3184
        %v3213 = vmul.f32 %v512, %v3184
        %v3214 = vmul.f32 %v514, %v3184
        %v3215 = vmul.f32 %v516, %v3184
        %v3216 = vmul.f32 %v518, %v3184
        %v3217 = vmul.f32 %v520, %v3184
        %v3218 = vmul.f32 %v522, %v3184
        %v3219 = vmul.f32 %v524, %v3184
        %v3220 = vmul.f32 %v526, %v3184
        %v3221 = vmul.f32 %v528, %v3184
        %v3222 = vmul.f32 %v530, %v3184
        %v3223 = vmul.f32 %v532, %v3184
        %v3224 = vmul.f32 %v534, %v3184
        %v3225 = vmul.f32 %v536, %v3184
        %v3226 = vmul.f32 %v538, %v3184
        %v3227 = vmul.f32 %v540, %v3184
        %v3228 = vmul.f32 %v542, %v3184
        %v3229 = vmul.f32 %v544, %v3184
        %v3230 = vmul.f32 %v546, %v3184
        %v3231 = vmul.f32 %v548, %v3184
        %v3232 = vmul.f32 %v550, %v3184
        %v3233 = vmul.f32 %v552, %v3184
        %v3234 = vmul.f32 %v554, %v3184
        %v3235 = vmul.f32 %v556, %v3184
        %v3236 = vmul.f32 %v558, %v3184
        %v3237 = vmul.f32 %v560, %v3184
        %v3238 = vmul.f32 %v562, %v3184
        %v3239 = vmul.f32 %v564, %v3184
        %v3240 = vmul.f32 %v566, %v3184
        %v3241 = vmul.f32 %v568, %v3184
        %v3242 = vmul.f32 %v570, %v3184
        %v3243 = vmul.f32 %v572, %v3184
        %v3244 = vmul.f32 %v574, %v3184
        %v3245 = vmul.f32 %v576, %v3184
        %v3246 = vmul.f32 %v578, %v3184
        %v3247 = vmul.f32 %v580, %v3184
        %v3248 = vmul.f32 %v582, %v3184
        %v3249 = vmul.f32 %v584, %v3184
        %v3250 = vmul.f32 %v586, %v3184
        %v3251 = vmul.f32 %v588, %v3184
        %v3252 = vmul.f32 %v590, %v3184
        %v3253 = vmul.f32 %v592, %v3184
        %v3254 = vmul.f32 %v594, %v3184
        %v3255 = vmul.f32 %v596, %v3184
        %v3256 = vmul.f32 %v598, %v3184
        %v3257 = vmul.f32 %v600, %v3184
        %v3258 = vmul.f32 %v602, %v3184
        %v3259 = vmul.f32 %v604, %v3184
        %v3260 = vmul.f32 %v606, %v3184
        %v3261 = vmul.f32 %v608, %v3184
        %v3262 = vmul.f32 %v610, %v3184
        %v3263 = vmul.f32 %v612, %v3184
        %v3264 = vmul.f32 %v614, %v3184
        %v3265 = vmul.f32 %v616, %v3184
        %v3266 = vmul.f32 %v618, %v3184
        %v3267 = vmul.f32 %v620, %v3184
        %v3268 = vmul.f32 %v622, %v3184
        %v3269 = vmul.f32 %v624, %v3184
        %v3270 = vmul.f32 %v626, %v3184
        %v3271 = vmul.f32 %v628, %v3184
        %v3272 = vmul.f32 %v630, %v3184
        %v3273 = vmul.f32 %v632, %v3184
        %v3274 = vmul.f32 %v634, %v3184
        %v3275 = vmul.f32 %v636, %v3184
        %v3276 = vmul.f32 %v638, %v3184
        %v3277 = vmul.f32 %v640, %v3184
        %v3278 = vmul.f32 %v642, %v3184
        %v3279 = vmul.f32 %v644, %v3184
        %v3280 = vmul.f32 %v646, %v3184
        %v3281 = vmul.f32 %v2351, %v3185
        %v3282 = vmul.f32 %v2352, %v3186
        %v3283 = vmul.f32 %v2353, %v3187
        %v3284 = vmul.f32 %v2354, %v3188
        %v3285 = vmul.f32 %v2355, %v3189
        %v3286 = vmul.f32 %v2356, %v3190
        %v3287 = vmul.f32 %v2357, %v3191
        %v3288 = vmul.f32 %v2358, %v3192
        %v3289 = vmul.f32 %v2359, %v3193
        %v3290 = vmul.f32 %v2360, %v3194
        %v3291 = vmul.f32 %v2361, %v3195
        %v3292 = vmul.f32 %v2362, %v3196
        %v3293 = vmul.f32 %v2363, %v3197
        %v3294 = vmul.f32 %v2364, %v3198
        %v3295 = vmul.f32 %v2365, %v3199
        %v3296 = vmul.f32 %v2366, %v3200
        %v3297 = vmul.f32 %v2367, %v3201
        %v3298 = vmul.f32 %v2368, %v3202
        %v3299 = vmul.f32 %v2369, %v3203
        %v3300 = vmul.f32 %v2370, %v3204
        %v3301 = vmul.f32 %v2371, %v3205
        %v3302 = vmul.f32 %v2372, %v3206
        %v3303 = vmul.f32 %v2373, %v3207
        %v3304 = vmul.f32 %v2374, %v3208
        %v3305 = vmul.f32 %v2375, %v3209
        %v3306 = vmul.f32 %v2376, %v3210
        %v3307 = vmul.f32 %v2377, %v3211
        %v3308 = vmul.f32 %v2378, %v3212
        %v3309 = vmul.f32 %v2379, %v3213
        %v3310 = vmul.f32 %v2380, %v3214
        %v3311 = vmul.f32 %v2381, %v3215
        %v3312 = vmul.f32 %v2382, %v3216
        %v3313 = vmul.f32 %v2479, %v3217
        %v3314 = vmul.f32 %v2480, %v3218
        %v3315 = vmul.f32 %v2481, %v3219
        %v3316 = vmul.f32 %v2482, %v3220
        %v3317 = vmul.f32 %v2483, %v3221
        %v3318 = vmul.f32 %v2484, %v3222
        %v3319 = vmul.f32 %v2485, %v3223
        %v3320 = vmul.f32 %v2486, %v3224
        %v3321 = vmul.f32 %v2487, %v3225
        %v3322 = vmul.f32 %v2488, %v3226
        %v3323 = vmul.f32 %v2489, %v3227
        %v3324 = vmul.f32 %v2490, %v3228
        %v3325 = vmul.f32 %v2491, %v3229
        %v3326 = vmul.f32 %v2492, %v3230
        %v3327 = vmul.f32 %v2493, %v3231
        %v3328 = vmul.f32 %v2494, %v3232
        %v3329 = vmul.f32 %v2495, %v3233
        %v3330 = vmul.f32 %v2496, %v3234
        %v3331 = vmul.f32 %v2497, %v3235
        %v3332 = vmul.f32 %v2498, %v3236
        %v3333 = vmul.f32 %v2499, %v3237
        %v3334 = vmul.f32 %v2500, %v3238
        %v3335 = vmul.f32 %v2501, %v3239
        %v3336 = vmul.f32 %v2502, %v3240
        %v3337 = vmul.f32 %v2503, %v3241
        %v3338 = vmul.f32 %v2504, %v3242
        %v3339 = vmul.f32 %v2505, %v3243
        %v3340 = vmul.f32 %v2506, %v3244
        %v3341 = vmul.f32 %v2507, %v3245
        %v3342 = vmul.f32 %v2508, %v3246
        %v3343 = vmul.f32 %v2509, %v3247
        %v3344 = vmul.f32 %v2510, %v3248
        %v3345 = vmul.f32 %v2607, %v3249
        %v3346 = vmul.f32 %v2608, %v3250
        %v3347 = vmul.f32 %v2609, %v3251
        %v3348 = vmul.f32 %v2610, %v3252
        %v3349 = vmul.f32 %v2611, %v3253
        %v3350 = vmul.f32 %v2612, %v3254
        %v3351 = vmul.f32 %v2613, %v3255
        %v3352 = vmul.f32 %v2614, %v3256
        %v3353 = vmul.f32 %v2615, %v3257
        %v3354 = vmul.f32 %v2616, %v3258
        %v3355 = vmul.f32 %v2617, %v3259
        %v3356 = vmul.f32 %v2618, %v3260
        %v3357 = vmul.f32 %v2619, %v3261
        %v3358 = vmul.f32 %v2620, %v3262
        %v3359 = vmul.f32 %v2621, %v3263
        %v3360 = vmul.f32 %v2622, %v3264
        %v3361 = vmul.f32 %v2623, %v3265
        %v3362 = vmul.f32 %v2624, %v3266
        %v3363 = vmul.f32 %v2625, %v3267
        %v3364 = vmul.f32 %v2626, %v3268
        %v3365 = vmul.f32 %v2627, %v3269
        %v3366 = vmul.f32 %v2628, %v3270
        %v3367 = vmul.f32 %v2629, %v3271
        %v3368 = vmul.f32 %v2630, %v3272
        %v3369 = vmul.f32 %v2631, %v3273
        %v3370 = vmul.f32 %v2632, %v3274
        %v3371 = vmul.f32 %v2633, %v3275
        %v3372 = vmul.f32 %v2634, %v3276
        %v3373 = vmul.f32 %v2635, %v3277
        %v3374 = vmul.f32 %v2636, %v3278
        %v3375 = vmul.f32 %v2637, %v3279
        %v3376 = vmul.f32 %v2638, %v3280
        %v3377 = vmul.f32 %v2671, %v3185
        %v3378 = vmul.f32 %v2672, %v3186
        %v3379 = vmul.f32 %v2673, %v3187
        %v3380 = vmul.f32 %v2674, %v3188
        %v3381 = vmul.f32 %v2675, %v3189
        %v3382 = vmul.f32 %v2676, %v3190
        %v3383 = vmul.f32 %v2677, %v3191
        %v3384 = vmul.f32 %v2678, %v3192
        %v3385 = vmul.f32 %v2679, %v3193
        %v3386 = vmul.f32 %v2680, %v3194
        %v3387 = vmul.f32 %v2681, %v3195
        %v3388 = vmul.f32 %v2682, %v3196
        %v3389 = vmul.f32 %v2683, %v3197
        %v3390 = vmul.f32 %v2684, %v3198
        %v3391 = vmul.f32 %v2685, %v3199
        %v3392 = vmul.f32 %v2686, %v3200
        %v3393 = vmul.f32 %v2687, %v3201
        %v3394 = vmul.f32 %v2688, %v3202
        %v3395 = vmul.f32 %v2689, %v3203
        %v3396 = vmul.f32 %v2690, %v3204
        %v3397 = vmul.f32 %v2691, %v3205
        %v3398 = vmul.f32 %v2692, %v3206
        %v3399 = vmul.f32 %v2693, %v3207
        %v3400 = vmul.f32 %v2694, %v3208
        %v3401 = vmul.f32 %v2695, %v3209
        %v3402 = vmul.f32 %v2696, %v3210
        %v3403 = vmul.f32 %v2697, %v3211
        %v3404 = vmul.f32 %v2698, %v3212
        %v3405 = vmul.f32 %v2699, %v3213
        %v3406 = vmul.f32 %v2700, %v3214
        %v3407 = vmul.f32 %v2701, %v3215
        %v3408 = vmul.f32 %v2702, %v3216
        %v3409 = vmul.f32 %v2799, %v3217
        %v3410 = vmul.f32 %v2800, %v3218
        %v3411 = vmul.f32 %v2801, %v3219
        %v3412 = vmul.f32 %v2802, %v3220
        %v3413 = vmul.f32 %v2803, %v3221
        %v3414 = vmul.f32 %v2804, %v3222
        %v3415 = vmul.f32 %v2805, %v3223
        %v3416 = vmul.f32 %v2806, %v3224
        %v3417 = vmul.f32 %v2807, %v3225
        %v3418 = vmul.f32 %v2808, %v3226
        %v3419 = vmul.f32 %v2809, %v3227
        %v3420 = vmul.f32 %v2810, %v3228
        %v3421 = vmul.f32 %v2811, %v3229
        %v3422 = vmul.f32 %v2812, %v3230
        %v3423 = vmul.f32 %v2813, %v3231
        %v3424 = vmul.f32 %v2814, %v3232
        %v3425 = vmul.f32 %v2815, %v3233
        %v3426 = vmul.f32 %v2816, %v3234
        %v3427 = vmul.f32 %v2817, %v3235
        %v3428 = vmul.f32 %v2818, %v3236
        %v3429 = vmul.f32 %v2819, %v3237
        %v3430 = vmul.f32 %v2820, %v3238
        %v3431 = vmul.f32 %v2821, %v3239
        %v3432 = vmul.f32 %v2822, %v3240
        %v3433 = vmul.f32 %v2823, %v3241
        %v3434 = vmul.f32 %v2824, %v3242
        %v3435 = vmul.f32 %v2825, %v3243
        %v3436 = vmul.f32 %v2826, %v3244
        %v3437 = vmul.f32 %v2827, %v3245
        %v3438 = vmul.f32 %v2828, %v3246
        %v3439 = vmul.f32 %v2829, %v3247
        %v3440 = vmul.f32 %v2830, %v3248
        %v3441 = vmul.f32 %v2927, %v3249
        %v3442 = vmul.f32 %v2928, %v3250
        %v3443 = vmul.f32 %v2929, %v3251
        %v3444 = vmul.f32 %v2930, %v3252
        %v3445 = vmul.f32 %v2931, %v3253
        %v3446 = vmul.f32 %v2932, %v3254
        %v3447 = vmul.f32 %v2933, %v3255
        %v3448 = vmul.f32 %v2934, %v3256
        %v3449 = vmul.f32 %v2935, %v3257
        %v3450 = vmul.f32 %v2936, %v3258
        %v3451 = vmul.f32 %v2937, %v3259
        %v3452 = vmul.f32 %v2938, %v3260
        %v3453 = vmul.f32 %v2939, %v3261
        %v3454 = vmul.f32 %v2940, %v3262
        %v3455 = vmul.f32 %v2941, %v3263
        %v3456 = vmul.f32 %v2942, %v3264
        %v3457 = vmul.f32 %v2943, %v3265
        %v3458 = vmul.f32 %v2944, %v3266
        %v3459 = vmul.f32 %v2945, %v3267
        %v3460 = vmul.f32 %v2946, %v3268
        %v3461 = vmul.f32 %v2947, %v3269
        %v3462 = vmul.f32 %v2948, %v3270
        %v3463 = vmul.f32 %v2949, %v3271
        %v3464 = vmul.f32 %v2950, %v3272
        %v3465 = vmul.f32 %v2951, %v3273
        %v3466 = vmul.f32 %v2952, %v3274
        %v3467 = vmul.f32 %v2953, %v3275
        %v3468 = vmul.f32 %v2954, %v3276
        %v3469 = vmul.f32 %v2955, %v3277
        %v3470 = vmul.f32 %v2956, %v3278
        %v3471 = vmul.f32 %v2957, %v3279
        %v3472 = vmul.f32 %v2958, %v3280
        %v3473 = vmul.f32 %v2991, %v3185
        %v3474 = vmul.f32 %v2992, %v3186
        %v3475 = vmul.f32 %v2993, %v3187
        %v3476 = vmul.f32 %v2994, %v3188
        %v3477 = vmul.f32 %v2995, %v3189
        %v3478 = vmul.f32 %v2996, %v3190
        %v3479 = vmul.f32 %v2997, %v3191
        %v3480 = vmul.f32 %v2998, %v3192
        %v3481 = vmul.f32 %v2999, %v3193
        %v3482 = vmul.f32 %v3000, %v3194
        %v3483 = vmul.f32 %v3001, %v3195
        %v3484 = vmul.f32 %v3002, %v3196
        %v3485 = vmul.f32 %v3003, %v3197
        %v3486 = vmul.f32 %v3004, %v3198
        %v3487 = vmul.f32 %v3005, %v3199
        %v3488 = vmul.f32 %v3006, %v3200
        %v3489 = vmul.f32 %v3007, %v3201
        %v3490 = vmul.f32 %v3008, %v3202
        %v3491 = vmul.f32 %v3009, %v3203
        %v3492 = vmul.f32 %v3010, %v3204
        %v3493 = vmul.f32 %v3011, %v3205
        %v3494 = vmul.f32 %v3012, %v3206
        %v3495 = vmul.f32 %v3013, %v3207
        %v3496 = vmul.f32 %v3014, %v3208
        %v3497 = vmul.f32 %v3015, %v3209
        %v3498 = vmul.f32 %v3016, %v3210
        %v3499 = vmul.f32 %v3017, %v3211
        %v3500 = vmul.f32 %v3018, %v3212
        %v3501 = vmul.f32 %v3019, %v3213
        %v3502 = vmul.f32 %v3020, %v3214
        %v3503 = vmul.f32 %v3021, %v3215
        %v3504 = vmul.f32 %v3022, %v3216
        %v3505 = vmul.f32 %v3055, %v3217
        %v3506 = vmul.f32 %v3056, %v3218
        %v3507 = vmul.f32 %v3057, %v3219
        %v3508 = vmul.f32 %v3058, %v3220
        %v3509 = vmul.f32 %v3059, %v3221
        %v3510 = vmul.f32 %v3060, %v3222
        %v3511 = vmul.f32 %v3061, %v3223
        %v3512 = vmul.f32 %v3062, %v3224
        %v3513 = vmul.f32 %v3063, %v3225
        %v3514 = vmul.f32 %v3064, %v3226
        %v3515 = vmul.f32 %v3065, %v3227
        %v3516 = vmul.f32 %v3066, %v3228
        %v3517 = vmul.f32 %v3067, %v3229
        %v3518 = vmul.f32 %v3068, %v3230
        %v3519 = vmul.f32 %v3069, %v3231
        %v3520 = vmul.f32 %v3070, %v3232
        %v3521 = vmul.f32 %v3071, %v3233
        %v3522 = vmul.f32 %v3072, %v3234
        %v3523 = vmul.f32 %v3073, %v3235
        %v3524 = vmul.f32 %v3074, %v3236
        %v3525 = vmul.f32 %v3075, %v3237
        %v3526 = vmul.f32 %v3076, %v3238
        %v3527 = vmul.f32 %v3077, %v3239
        %v3528 = vmul.f32 %v3078, %v3240
        %v3529 = vmul.f32 %v3079, %v3241
        %v3530 = vmul.f32 %v3080, %v3242
        %v3531 = vmul.f32 %v3081, %v3243
        %v3532 = vmul.f32 %v3082, %v3244
        %v3533 = vmul.f32 %v3083, %v3245
        %v3534 = vmul.f32 %v3084, %v3246
        %v3535 = vmul.f32 %v3085, %v3247
        %v3536 = vmul.f32 %v3086, %v3248
        %v3537 = vmul.f32 %v3151, %v3249
        %v3538 = vmul.f32 %v3152, %v3250
        %v3539 = vmul.f32 %v3153, %v3251
        %v3540 = vmul.f32 %v3154, %v3252
        %v3541 = vmul.f32 %v3155, %v3253
        %v3542 = vmul.f32 %v3156, %v3254
        %v3543 = vmul.f32 %v3157, %v3255
        %v3544 = vmul.f32 %v3158, %v3256
        %v3545 = vmul.f32 %v3159, %v3257
        %v3546 = vmul.f32 %v3160, %v3258
        %v3547 = vmul.f32 %v3161, %v3259
        %v3548 = vmul.f32 %v3162, %v3260
        %v3549 = vmul.f32 %v3163, %v3261
        %v3550 = vmul.f32 %v3164, %v3262
        %v3551 = vmul.f32 %v3165, %v3263
        %v3552 = vmul.f32 %v3166, %v3264
        %v3553 = vmul.f32 %v3167, %v3265
        %v3554 = vmul.f32 %v3168, %v3266
        %v3555 = vmul.f32 %v3169, %v3267
        %v3556 = vmul.f32 %v3170, %v3268
        %v3557 = vmul.f32 %v3171, %v3269
        %v3558 = vmul.f32 %v3172, %v3270
        %v3559 = vmul.f32 %v3173, %v3271
        %v3560 = vmul.f32 %v3174, %v3272
        %v3561 = vmul.f32 %v3175, %v3273
        %v3562 = vmul.f32 %v3176, %v3274
        %v3563 = vmul.f32 %v3177, %v3275
        %v3564 = vmul.f32 %v3178, %v3276
        %v3565 = vmul.f32 %v3179, %v3277
        %v3566 = vmul.f32 %v3180, %v3278
        %v3567 = vmul.f32 %v3181, %v3279
        %v3568 = vmul.f32 %v3182, %v3280
        %v3569 = vmul.f32 %v3281, %v3281
        %v3570 = vmul.f32 %v3282, %v3282
        %v3571 = vmul.f32 %v3283, %v3283
        %v3572 = vmul.f32 %v3284, %v3284
        %v3573 = vmul.f32 %v3285, %v3285
        %v3574 = vmul.f32 %v3286, %v3286
        %v3575 = vmul.f32 %v3287, %v3287
        %v3576 = vmul.f32 %v3288, %v3288
        %v3577 = vmul.f32 %v3289, %v3289
        %v3578 = vmul.f32 %v3290, %v3290
        %v3579 = vmul.f32 %v3291, %v3291
        %v3580 = vmul.f32 %v3292, %v3292
        %v3581 = vmul.f32 %v3293, %v3293
        %v3582 = vmul.f32 %v3294, %v3294
        %v3583 = vmul.f32 %v3295, %v3295
        %v3584 = vmul.f32 %v3296, %v3296
        %v3585 = vmul.f32 %v3297, %v3297
        %v3586 = vmul.f32 %v3298, %v3298
        %v3587 = vmul.f32 %v3299, %v3299
        %v3588 = vmul.f32 %v3300, %v3300
        %v3589 = vmul.f32 %v3301, %v3301
        %v3590 = vmul.f32 %v3302, %v3302
        %v3591 = vmul.f32 %v3303, %v3303
        %v3592 = vmul.f32 %v3304, %v3304
        %v3593 = vmul.f32 %v3305, %v3305
        %v3594 = vmul.f32 %v3306, %v3306
        %v3595 = vmul.f32 %v3307, %v3307
        %v3596 = vmul.f32 %v3308, %v3308
        %v3597 = vmul.f32 %v3309, %v3309
        %v3598 = vmul.f32 %v3310, %v3310
        %v3599 = vmul.f32 %v3311, %v3311
        %v3600 = vmul.f32 %v3312, %v3312
        %v3601 = vmul.f32 %v3313, %v3313
        %v3602 = vmul.f32 %v3314, %v3314
        %v3603 = vmul.f32 %v3315, %v3315
        %v3604 = vmul.f32 %v3316, %v3316
        %v3605 = vmul.f32 %v3317, %v3317
        %v3606 = vmul.f32 %v3318, %v3318
        %v3607 = vmul.f32 %v3319, %v3319
        %v3608 = vmul.f32 %v3320, %v3320
        %v3609 = vmul.f32 %v3321, %v3321
        %v3610 = vmul.f32 %v3322, %v3322
        %v3611 = vmul.f32 %v3323, %v3323
        %v3612 = vmul.f32 %v3324, %v3324
        %v3613 = vmul.f32 %v3325, %v3325
        %v3614 = vmul.f32 %v3326, %v3326
        %v3615 = vmul.f32 %v3327, %v3327
        %v3616 = vmul.f32 %v3328, %v3328
        %v3617 = vmul.f32 %v3329, %v3329
        %v3618 = vmul.f32 %v3330, %v3330
        %v3619 = vmul.f32 %v3331, %v3331
        %v3620 = vmul.f32 %v3332, %v3332
        %v3621 = vmul.f32 %v3333, %v3333
        %v3622 = vmul.f32 %v3334, %v3334
        %v3623 = vmul.f32 %v3335, %v3335
        %v3624 = vmul.f32 %v3336, %v3336
        %v3625 = vmul.f32 %v3337, %v3337
        %v3626 = vmul.f32 %v3338, %v3338
        %v3627 = vmul.f32 %v3339, %v3339
        %v3628 = vmul.f32 %v3340, %v3340
        %v3629 = vmul.f32 %v3341, %v3341
        %v3630 = vmul.f32 %v3342, %v3342
        %v3631 = vmul.f32 %v3343, %v3343
        %v3632 = vmul.f32 %v3344, %v3344
        %v3633 = vadd.f32 %v3569, %v3601
        %v3634 = vadd.f32 %v3570, %v3602
        %v3635 = vadd.f32 %v3571, %v3603
        %v3636 = vadd.f32 %v3572, %v3604
        %v3637 = vadd.f32 %v3573, %v3605
        %v3638 = vadd.f32 %v3574, %v3606
        %v3639 = vadd.f32 %v3575, %v3607
        %v3640 = vadd.f32 %v3576, %v3608
        %v3641 = vadd.f32 %v3577, %v3609
        %v3642 = vadd.f32 %v3578, %v3610
        %v3643 = vadd.f32 %v3579, %v3611
        %v3644 = vadd.f32 %v3580, %v3612
        %v3645 = vadd.f32 %v3581, %v3613
        %v3646 = vadd.f32 %v3582, %v3614
        %v3647 = vadd.f32 %v3583, %v3615
        %v3648 = vadd.f32 %v3584, %v3616
        %v3649 = vadd.f32 %v3585, %v3617
        %v3650 = vadd.f32 %v3586, %v3618
        %v3651 = vadd.f32 %v3587, %v3619
        %v3652 = vadd.f32 %v3588, %v3620
        %v3653 = vadd.f32 %v3589, %v3621
        %v3654 = vadd.f32 %v3590, %v3622
        %v3655 = vadd.f32 %v3591, %v3623
        %v3656 = vadd.f32 %v3592, %v3624
        %v3657 = vadd.f32 %v3593, %v3625
        %v3658 = vadd.f32 %v3594, %v3626
        %v3659 = vadd.f32 %v3595, %v3627
        %v3660 = vadd.f32 %v3596, %v3628
        %v3661 = vadd.f32 %v3597, %v3629
        %v3662 = vadd.f32 %v3598, %v3630
        %v3663 = vadd.f32 %v3599, %v3631
        %v3664 = vadd.f32 %v3600, %v3632
        %v3665 = vmul.f32 %v3345, %v3345
        %v3666 = vmul.f32 %v3346, %v3346
        %v3667 = vmul.f32 %v3347, %v3347
        %v3668 = vmul.f32 %v3348, %v3348
        %v3669 = vmul.f32 %v3349, %v3349
        %v3670 = vmul.f32 %v3350, %v3350
        %v3671 = vmul.f32 %v3351, %v3351
        %v3672 = vmul.f32 %v3352, %v3352
        %v3673 = vmul.f32 %v3353, %v3353
        %v3674 = vmul.f32 %v3354, %v3354
        %v3675 = vmul.f32 %v3355, %v3355
        %v3676 = vmul.f32 %v3356, %v3356
        %v3677 = vmul.f32 %v3357, %v3357
        %v3678 = vmul.f32 %v3358, %v3358
        %v3679 = vmul.f32 %v3359, %v3359
        %v3680 = vmul.f32 %v3360, %v3360
        %v3681 = vmul.f32 %v3361, %v3361
        %v3682 = vmul.f32 %v3362, %v3362
        %v3683 = vmul.f32 %v3363, %v3363
        %v3684 = vmul.f32 %v3364, %v3364
        %v3685 = vmul.f32 %v3365, %v3365
        %v3686 = vmul.f32 %v3366, %v3366
        %v3687 = vmul.f32 %v3367, %v3367
        %v3688 = vmul.f32 %v3368, %v3368
        %v3689 = vmul.f32 %v3369, %v3369
        %v3690 = vmul.f32 %v3370, %v3370
        %v3691 = vmul.f32 %v3371, %v3371
        %v3692 = vmul.f32 %v3372, %v3372
        %v3693 = vmul.f32 %v3373, %v3373
        %v3694 = vmul.f32 %v3374, %v3374
        %v3695 = vmul.f32 %v3375, %v3375
        %v3696 = vmul.f32 %v3376, %v3376
        %v3697 = vadd.f32 %v3633, %v3665
        %v3698 = vadd.f32 %v3634, %v3666
        %v3699 = vadd.f32 %v3635, %v3667
        %v3700 = vadd.f32 %v3636, %v3668
        %v3701 = vadd.f32 %v3637, %v3669
        %v3702 = vadd.f32 %v3638, %v3670
        %v3703 = vadd.f32 %v3639, %v3671
        %v3704 = vadd.f32 %v3640, %v3672
        %v3705 = vadd.f32 %v3641, %v3673
        %v3706 = vadd.f32 %v3642, %v3674
        %v3707 = vadd.f32 %v3643, %v3675
        %v3708 = vadd.f32 %v3644, %v3676
        %v3709 = vadd.f32 %v3645, %v3677
        %v3710 = vadd.f32 %v3646, %v3678
        %v3711 = vadd.f32 %v3647, %v3679
        %v3712 = vadd.f32 %v3648, %v3680
        %v3713 = vadd.f32 %v3649, %v3681
        %v3714 = vadd.f32 %v3650, %v3682
        %v3715 = vadd.f32 %v3651, %v3683
        %v3716 = vadd.f32 %v3652, %v3684
        %v3717 = vadd.f32 %v3653, %v3685
        %v3718 = vadd.f32 %v3654, %v3686
        %v3719 = vadd.f32 %v3655, %v3687
        %v3720 = vadd.f32 %v3656, %v3688
        %v3721 = vadd.f32 %v3657, %v3689
        %v3722 = vadd.f32 %v3658, %v3690
        %v3723 = vadd.f32 %v3659, %v3691
        %v3724 = vadd.f32 %v3660, %v3692
        %v3725 = vadd.f32 %v3661, %v3693
        %v3726 = vadd.f32 %v3662, %v3694
        %v3727 = vadd.f32 %v3663, %v3695
        %v3728 = vadd.f32 %v3664, %v3696
        %3729 = vst [vmem:[%s189] sm:$0xff] %v3697
        %3730 = vst [vmem:[%s189 + $0x8] sm:$0xff] %v3698
        %3731 = vst [vmem:[%s189 + $0x10] sm:$0xff] %v3699
        %3732 = vst [vmem:[%s189 + $0x18] sm:$0xff] %v3700
        %3733 = vst [vmem:[%s189 + $0x20] sm:$0xff] %v3701
        %3734 = vst [vmem:[%s189 + $0x28] sm:$0xff] %v3702
        %3735 = vst [vmem:[%s189 + $0x30] sm:$0xff] %v3703
        %3736 = vst [vmem:[%s189 + $0x38] sm:$0xff] %v3704
        %3737 = vst [vmem:[%s189 + $0x40] sm:$0xff] %v3705
        %3738 = vst [vmem:[%s189 + $0x48] sm:$0xff] %v3706
        %3739 = vst [vmem:[%s189 + $0x50] sm:$0xff] %v3707
        %3740 = vst [vmem:[%s189 + $0x58] sm:$0xff] %v3708
        %3741 = vst [vmem:[%s189 + $0x60] sm:$0xff] %v3709
        %3742 = vst [vmem:[%s189 + $0x68] sm:$0xff] %v3710
        %3743 = vst [vmem:[%s189 + $0x70] sm:$0xff] %v3711
        %3744 = vst [vmem:[%s189 + $0x78] sm:$0xff] %v3712
        %3745 = vst [vmem:[%s189 + $0x80] sm:$0xff] %v3713
        %3746 = vst [vmem:[%s189 + $0x88] sm:$0xff] %v3714
        %3747 = vst [vmem:[%s189 + $0x90] sm:$0xff] %v3715
        %3748 = vst [vmem:[%s189 + $0x98] sm:$0xff] %v3716
        %3749 = vst [vmem:[%s189 + $0xa0] sm:$0xff] %v3717
        %3750 = vst [vmem:[%s189 + $0xa8] sm:$0xff] %v3718
        %3751 = vst [vmem:[%s189 + $0xb0] sm:$0xff] %v3719
        %3752 = vst [vmem:[%s189 + $0xb8] sm:$0xff] %v3720
        %3753 = vst [vmem:[%s189 + $0xc0] sm:$0xff] %v3721
        %3754 = vst [vmem:[%s189 + $0xc8] sm:$0xff] %v3722
        %3755 = vst [vmem:[%s189 + $0xd0] sm:$0xff] %v3723
        %3756 = vst [vmem:[%s189 + $0xd8] sm:$0xff] %v3724
        %3757 = vst [vmem:[%s189 + $0xe0] sm:$0xff] %v3725
        %3758 = vst [vmem:[%s189 + $0xe8] sm:$0xff] %v3726
        %3759 = vst [vmem:[%s189 + $0xf0] sm:$0xff] %v3727
        %3760 = vst [vmem:[%s189 + $0xf8] sm:$0xff] %v3728
        %v3761 = vmul.f32 %v3281, %v3377
        %v3762 = vmul.f32 %v3282, %v3378
        %v3763 = vmul.f32 %v3283, %v3379
        %v3764 = vmul.f32 %v3284, %v3380
        %v3765 = vmul.f32 %v3285, %v3381
        %v3766 = vmul.f32 %v3286, %v3382
        %v3767 = vmul.f32 %v3287, %v3383
        %v3768 = vmul.f32 %v3288, %v3384
        %v3769 = vmul.f32 %v3289, %v3385
        %v3770 = vmul.f32 %v3290, %v3386
        %v3771 = vmul.f32 %v3291, %v3387
        %v3772 = vmul.f32 %v3292, %v3388
        %v3773 = vmul.f32 %v3293, %v3389
        %v3774 = vmul.f32 %v3294, %v3390
        %v3775 = vmul.f32 %v3295, %v3391
        %v3776 = vmul.f32 %v3296, %v3392
        %v3777 = vmul.f32 %v3297, %v3393
        %v3778 = vmul.f32 %v3298, %v3394
        %v3779 = vmul.f32 %v3299, %v3395
        %v3780 = vmul.f32 %v3300, %v3396
        %v3781 = vmul.f32 %v3301, %v3397
        %v3782 = vmul.f32 %v3302, %v3398
        %v3783 = vmul.f32 %v3303, %v3399
        %v3784 = vmul.f32 %v3304, %v3400
        %v3785 = vmul.f32 %v3305, %v3401
        %v3786 = vmul.f32 %v3306, %v3402
        %v3787 = vmul.f32 %v3307, %v3403
        %v3788 = vmul.f32 %v3308, %v3404
        %v3789 = vmul.f32 %v3309, %v3405
        %v3790 = vmul.f32 %v3310, %v3406
        %v3791 = vmul.f32 %v3311, %v3407
        %v3792 = vmul.f32 %v3312, %v3408
        %v3793 = vmul.f32 %v3313, %v3409
        %v3794 = vmul.f32 %v3314, %v3410
        %v3795 = vmul.f32 %v3315, %v3411
        %v3796 = vmul.f32 %v3316, %v3412
        %v3797 = vmul.f32 %v3317, %v3413
        %v3798 = vmul.f32 %v3318, %v3414
        %v3799 = vmul.f32 %v3319, %v3415
        %v3800 = vmul.f32 %v3320, %v3416
        %v3801 = vmul.f32 %v3321, %v3417
        %v3802 = vmul.f32 %v3322, %v3418
        %v3803 = vmul.f32 %v3323, %v3419
        %v3804 = vmul.f32 %v3324, %v3420
        %v3805 = vmul.f32 %v3325, %v3421
        %v3806 = vmul.f32 %v3326, %v3422
        %v3807 = vmul.f32 %v3327, %v3423
        %v3808 = vmul.f32 %v3328, %v3424
        %v3809 = vmul.f32 %v3329, %v3425
        %v3810 = vmul.f32 %v3330, %v3426
        %v3811 = vmul.f32 %v3331, %v3427
        %v3812 = vmul.f32 %v3332, %v3428
        %v3813 = vmul.f32 %v3333, %v3429
        %v3814 = vmul.f32 %v3334, %v3430
        %v3815 = vmul.f32 %v3335, %v3431
        %v3816 = vmul.f32 %v3336, %v3432
        %v3817 = vmul.f32 %v3337, %v3433
        %v3818 = vmul.f32 %v3338, %v3434
        %v3819 = vmul.f32 %v3339, %v3435
        %v3820 = vmul.f32 %v3340, %v3436
        %v3821 = vmul.f32 %v3341, %v3437
        %v3822 = vmul.f32 %v3342, %v3438
        %v3823 = vmul.f32 %v3343, %v3439
        %v3824 = vmul.f32 %v3344, %v3440
        %v3825 = vadd.f32 %v3761, %v3793
        %v3826 = vadd.f32 %v3762, %v3794
        %v3827 = vadd.f32 %v3763, %v3795
        %v3828 = vadd.f32 %v3764, %v3796
        %v3829 = vadd.f32 %v3765, %v3797
        %v3830 = vadd.f32 %v3766, %v3798
        %v3831 = vadd.f32 %v3767, %v3799
        %v3832 = vadd.f32 %v3768, %v3800
        %v3833 = vadd.f32 %v3769, %v3801
        %v3834 = vadd.f32 %v3770, %v3802
        %v3835 = vadd.f32 %v3771, %v3803
        %v3836 = vadd.f32 %v3772, %v3804
        %v3837 = vadd.f32 %v3773, %v3805
        %v3838 = vadd.f32 %v3774, %v3806
        %v3839 = vadd.f32 %v3775, %v3807
        %v3840 = vadd.f32 %v3776, %v3808
        %v3841 = vadd.f32 %v3777, %v3809
        %v3842 = vadd.f32 %v3778, %v3810
        %v3843 = vadd.f32 %v3779, %v3811
        %v3844 = vadd.f32 %v3780, %v3812
        %v3845 = vadd.f32 %v3781, %v3813
        %v3846 = vadd.f32 %v3782, %v3814
        %v3847 = vadd.f32 %v3783, %v3815
        %v3848 = vadd.f32 %v3784, %v3816
        %v3849 = vadd.f32 %v3785, %v3817
        %v3850 = vadd.f32 %v3786, %v3818
        %v3851 = vadd.f32 %v3787, %v3819
        %v3852 = vadd.f32 %v3788, %v3820
        %v3853 = vadd.f32 %v3789, %v3821
        %v3854 = vadd.f32 %v3790, %v3822
        %v3855 = vadd.f32 %v3791, %v3823
        %v3856 = vadd.f32 %v3792, %v3824
        %v3857 = vmul.f32 %v3345, %v3441
        %v3858 = vmul.f32 %v3346, %v3442
        %v3859 = vmul.f32 %v3347, %v3443
        %v3860 = vmul.f32 %v3348, %v3444
        %v3861 = vmul.f32 %v3349, %v3445
        %v3862 = vmul.f32 %v3350, %v3446
        %v3863 = vmul.f32 %v3351, %v3447
        %v3864 = vmul.f32 %v3352, %v3448
        %v3865 = vmul.f32 %v3353, %v3449
        %v3866 = vmul.f32 %v3354, %v3450
        %v3867 = vmul.f32 %v3355, %v3451
        %v3868 = vmul.f32 %v3356, %v3452
        %v3869 = vmul.f32 %v3357, %v3453
        %v3870 = vmul.f32 %v3358, %v3454
        %v3871 = vmul.f32 %v3359, %v3455
        %v3872 = vmul.f32 %v3360, %v3456
        %v3873 = vmul.f32 %v3361, %v3457
        %v3874 = vmul.f32 %v3362, %v3458
        %v3875 = vmul.f32 %v3363, %v3459
        %v3876 = vmul.f32 %v3364, %v3460
        %v3877 = vmul.f32 %v3365, %v3461
        %v3878 = vmul.f32 %v3366, %v3462
        %v3879 = vmul.f32 %v3367, %v3463
        %v3880 = vmul.f32 %v3368, %v3464
        %v3881 = vmul.f32 %v3369, %v3465
        %v3882 = vmul.f32 %v3370, %v3466
        %v3883 = vmul.f32 %v3371, %v3467
        %v3884 = vmul.f32 %v3372, %v3468
        %v3885 = vmul.f32 %v3373, %v3469
        %v3886 = vmul.f32 %v3374, %v3470
        %v3887 = vmul.f32 %v3375, %v3471
        %v3888 = vmul.f32 %v3376, %v3472
        %v3889 = vadd.f32 %v3825, %v3857
        %v3890 = vadd.f32 %v3826, %v3858
        %v3891 = vadd.f32 %v3827, %v3859
        %v3892 = vadd.f32 %v3828, %v3860
        %v3893 = vadd.f32 %v3829, %v3861
        %v3894 = vadd.f32 %v3830, %v3862
        %v3895 = vadd.f32 %v3831, %v3863
        %v3896 = vadd.f32 %v3832, %v3864
        %v3897 = vadd.f32 %v3833, %v3865
        %v3898 = vadd.f32 %v3834, %v3866
        %v3899 = vadd.f32 %v3835, %v3867
        %v3900 = vadd.f32 %v3836, %v3868
        %v3901 = vadd.f32 %v3837, %v3869
        %v3902 = vadd.f32 %v3838, %v3870
        %v3903 = vadd.f32 %v3839, %v3871
        %v3904 = vadd.f32 %v3840, %v3872
        %v3905 = vadd.f32 %v3841, %v3873
        %v3906 = vadd.f32 %v3842, %v3874
        %v3907 = vadd.f32 %v3843, %v3875
        %v3908 = vadd.f32 %v3844, %v3876
        %v3909 = vadd.f32 %v3845, %v3877
        %v3910 = vadd.f32 %v3846, %v3878
        %v3911 = vadd.f32 %v3847, %v3879
        %v3912 = vadd.f32 %v3848, %v3880
        %v3913 = vadd.f32 %v3849, %v3881
        %v3914 = vadd.f32 %v3850, %v3882
        %v3915 = vadd.f32 %v3851, %v3883
        %v3916 = vadd.f32 %v3852, %v3884
        %v3917 = vadd.f32 %v3853, %v3885
        %v3918 = vadd.f32 %v3854, %v3886
        %v3919 = vadd.f32 %v3855, %v3887
        %v3920 = vadd.f32 %v3856, %v3888
        %s3921 = scalar_lea.vmem %s189, 256 [#allocation6]
        %3922 = vst [vmem:[%s3921] sm:$0xff] %v3889
        %3923 = vst [vmem:[%s3921 + $0x8] sm:$0xff] %v3890
        %3924 = vst [vmem:[%s3921 + $0x10] sm:$0xff] %v3891
        %3925 = vst [vmem:[%s3921 + $0x18] sm:$0xff] %v3892
        %3926 = vst [vmem:[%s3921 + $0x20] sm:$0xff] %v3893
        %3927 = vst [vmem:[%s3921 + $0x28] sm:$0xff] %v3894
        %3928 = vst [vmem:[%s3921 + $0x30] sm:$0xff] %v3895
        %3929 = vst [vmem:[%s3921 + $0x38] sm:$0xff] %v3896
        %3930 = vst [vmem:[%s3921 + $0x40] sm:$0xff] %v3897
        %3931 = vst [vmem:[%s3921 + $0x48] sm:$0xff] %v3898
        %3932 = vst [vmem:[%s3921 + $0x50] sm:$0xff] %v3899
        %3933 = vst [vmem:[%s3921 + $0x58] sm:$0xff] %v3900
        %3934 = vst [vmem:[%s3921 + $0x60] sm:$0xff] %v3901
        %3935 = vst [vmem:[%s3921 + $0x68] sm:$0xff] %v3902
        %3936 = vst [vmem:[%s3921 + $0x70] sm:$0xff] %v3903
        %3937 = vst [vmem:[%s3921 + $0x78] sm:$0xff] %v3904
        %3938 = vst [vmem:[%s3921 + $0x80] sm:$0xff] %v3905
        %3939 = vst [vmem:[%s3921 + $0x88] sm:$0xff] %v3906
        %3940 = vst [vmem:[%s3921 + $0x90] sm:$0xff] %v3907
        %3941 = vst [vmem:[%s3921 + $0x98] sm:$0xff] %v3908
        %3942 = vst [vmem:[%s3921 + $0xa0] sm:$0xff] %v3909
        %3943 = vst [vmem:[%s3921 + $0xa8] sm:$0xff] %v3910
        %3944 = vst [vmem:[%s3921 + $0xb0] sm:$0xff] %v3911
        %3945 = vst [vmem:[%s3921 + $0xb8] sm:$0xff] %v3912
        %3946 = vst [vmem:[%s3921 + $0xc0] sm:$0xff] %v3913
        %3947 = vst [vmem:[%s3921 + $0xc8] sm:$0xff] %v3914
        %3948 = vst [vmem:[%s3921 + $0xd0] sm:$0xff] %v3915
        %3949 = vst [vmem:[%s3921 + $0xd8] sm:$0xff] %v3916
        %3950 = vst [vmem:[%s3921 + $0xe0] sm:$0xff] %v3917
        %3951 = vst [vmem:[%s3921 + $0xe8] sm:$0xff] %v3918
        %3952 = vst [vmem:[%s3921 + $0xf0] sm:$0xff] %v3919
        %3953 = vst [vmem:[%s3921 + $0xf8] sm:$0xff] %v3920
        %v3954 = vmul.f32 %v3281, %v3473
        %v3955 = vmul.f32 %v3282, %v3474
        %v3956 = vmul.f32 %v3283, %v3475
        %v3957 = vmul.f32 %v3284, %v3476
        %v3958 = vmul.f32 %v3285, %v3477
        %v3959 = vmul.f32 %v3286, %v3478
        %v3960 = vmul.f32 %v3287, %v3479
        %v3961 = vmul.f32 %v3288, %v3480
        %v3962 = vmul.f32 %v3289, %v3481
        %v3963 = vmul.f32 %v3290, %v3482
        %v3964 = vmul.f32 %v3291, %v3483
        %v3965 = vmul.f32 %v3292, %v3484
        %v3966 = vmul.f32 %v3293, %v3485
        %v3967 = vmul.f32 %v3294, %v3486
        %v3968 = vmul.f32 %v3295, %v3487
        %v3969 = vmul.f32 %v3296, %v3488
        %v3970 = vmul.f32 %v3297, %v3489
        %v3971 = vmul.f32 %v3298, %v3490
        %v3972 = vmul.f32 %v3299, %v3491
        %v3973 = vmul.f32 %v3300, %v3492
        %v3974 = vmul.f32 %v3301, %v3493
        %v3975 = vmul.f32 %v3302, %v3494
        %v3976 = vmul.f32 %v3303, %v3495
        %v3977 = vmul.f32 %v3304, %v3496
        %v3978 = vmul.f32 %v3305, %v3497
        %v3979 = vmul.f32 %v3306, %v3498
        %v3980 = vmul.f32 %v3307, %v3499
        %v3981 = vmul.f32 %v3308, %v3500
        %v3982 = vmul.f32 %v3309, %v3501
        %v3983 = vmul.f32 %v3310, %v3502
        %v3984 = vmul.f32 %v3311, %v3503
        %v3985 = vmul.f32 %v3312, %v3504
        %v3986 = vmul.f32 %v3313, %v3505
        %v3987 = vmul.f32 %v3314, %v3506
        %v3988 = vmul.f32 %v3315, %v3507
        %v3989 = vmul.f32 %v3316, %v3508
        %v3990 = vmul.f32 %v3317, %v3509
        %v3991 = vmul.f32 %v3318, %v3510
        %v3992 = vmul.f32 %v3319, %v3511
        %v3993 = vmul.f32 %v3320, %v3512
        %v3994 = vmul.f32 %v3321, %v3513
        %v3995 = vmul.f32 %v3322, %v3514
        %v3996 = vmul.f32 %v3323, %v3515
        %v3997 = vmul.f32 %v3324, %v3516
        %v3998 = vmul.f32 %v3325, %v3517
        %v3999 = vmul.f32 %v3326, %v3518
        %v4000 = vmul.f32 %v3327, %v3519
        %v4001 = vmul.f32 %v3328, %v3520
        %v4002 = vmul.f32 %v3329, %v3521
        %v4003 = vmul.f32 %v3330, %v3522
        %v4004 = vmul.f32 %v3331, %v3523
        %v4005 = vmul.f32 %v3332, %v3524
        %v4006 = vmul.f32 %v3333, %v3525
        %v4007 = vmul.f32 %v3334, %v3526
        %v4008 = vmul.f32 %v3335, %v3527
        %v4009 = vmul.f32 %v3336, %v3528
        %v4010 = vmul.f32 %v3337, %v3529
        %v4011 = vmul.f32 %v3338, %v3530
        %v4012 = vmul.f32 %v3339, %v3531
        %v4013 = vmul.f32 %v3340, %v3532
        %v4014 = vmul.f32 %v3341, %v3533
        %v4015 = vmul.f32 %v3342, %v3534
        %v4016 = vmul.f32 %v3343, %v3535
        %v4017 = vmul.f32 %v3344, %v3536
        %v4018 = vadd.f32 %v3954, %v3986
        %v4019 = vadd.f32 %v3955, %v3987
        %v4020 = vadd.f32 %v3956, %v3988
        %v4021 = vadd.f32 %v3957, %v3989
        %v4022 = vadd.f32 %v3958, %v3990
        %v4023 = vadd.f32 %v3959, %v3991
        %v4024 = vadd.f32 %v3960, %v3992
        %v4025 = vadd.f32 %v3961, %v3993
        %v4026 = vadd.f32 %v3962, %v3994
        %v4027 = vadd.f32 %v3963, %v3995
        %v4028 = vadd.f32 %v3964, %v3996
        %v4029 = vadd.f32 %v3965, %v3997
        %v4030 = vadd.f32 %v3966, %v3998
        %v4031 = vadd.f32 %v3967, %v3999
        %v4032 = vadd.f32 %v3968, %v4000
        %v4033 = vadd.f32 %v3969, %v4001
        %v4034 = vadd.f32 %v3970, %v4002
        %v4035 = vadd.f32 %v3971, %v4003
        %v4036 = vadd.f32 %v3972, %v4004
        %v4037 = vadd.f32 %v3973, %v4005
        %v4038 = vadd.f32 %v3974, %v4006
        %v4039 = vadd.f32 %v3975, %v4007
        %v4040 = vadd.f32 %v3976, %v4008
        %v4041 = vadd.f32 %v3977, %v4009
        %v4042 = vadd.f32 %v3978, %v4010
        %v4043 = vadd.f32 %v3979, %v4011
        %v4044 = vadd.f32 %v3980, %v4012
        %v4045 = vadd.f32 %v3981, %v4013
        %v4046 = vadd.f32 %v3982, %v4014
        %v4047 = vadd.f32 %v3983, %v4015
        %v4048 = vadd.f32 %v3984, %v4016
        %v4049 = vadd.f32 %v3985, %v4017
        %v4050 = vmul.f32 %v3345, %v3537
        %v4051 = vmul.f32 %v3346, %v3538
        %v4052 = vmul.f32 %v3347, %v3539
        %v4053 = vmul.f32 %v3348, %v3540
        %v4054 = vmul.f32 %v3349, %v3541
        %v4055 = vmul.f32 %v3350, %v3542
        %v4056 = vmul.f32 %v3351, %v3543
        %v4057 = vmul.f32 %v3352, %v3544
        %v4058 = vmul.f32 %v3353, %v3545
        %v4059 = vmul.f32 %v3354, %v3546
        %v4060 = vmul.f32 %v3355, %v3547
        %v4061 = vmul.f32 %v3356, %v3548
        %v4062 = vmul.f32 %v3357, %v3549
        %v4063 = vmul.f32 %v3358, %v3550
        %v4064 = vmul.f32 %v3359, %v3551
        %v4065 = vmul.f32 %v3360, %v3552
        %v4066 = vmul.f32 %v3361, %v3553
        %v4067 = vmul.f32 %v3362, %v3554
        %v4068 = vmul.f32 %v3363, %v3555
        %v4069 = vmul.f32 %v3364, %v3556
        %v4070 = vmul.f32 %v3365, %v3557
        %v4071 = vmul.f32 %v3366, %v3558
        %v4072 = vmul.f32 %v3367, %v3559
        %v4073 = vmul.f32 %v3368, %v3560
        %v4074 = vmul.f32 %v3369, %v3561
        %v4075 = vmul.f32 %v3370, %v3562
        %v4076 = vmul.f32 %v3371, %v3563
        %v4077 = vmul.f32 %v3372, %v3564
        %v4078 = vmul.f32 %v3373, %v3565
        %v4079 = vmul.f32 %v3374, %v3566
        %v4080 = vmul.f32 %v3375, %v3567
        %v4081 = vmul.f32 %v3376, %v3568
        %v4082 = vadd.f32 %v4018, %v4050
        %v4083 = vadd.f32 %v4019, %v4051
        %v4084 = vadd.f32 %v4020, %v4052
        %v4085 = vadd.f32 %v4021, %v4053
        %v4086 = vadd.f32 %v4022, %v4054
        %v4087 = vadd.f32 %v4023, %v4055
        %v4088 = vadd.f32 %v4024, %v4056
        %v4089 = vadd.f32 %v4025, %v4057
        %v4090 = vadd.f32 %v4026, %v4058
        %v4091 = vadd.f32 %v4027, %v4059
        %v4092 = vadd.f32 %v4028, %v4060
        %v4093 = vadd.f32 %v4029, %v4061
        %v4094 = vadd.f32 %v4030, %v4062
        %v4095 = vadd.f32 %v4031, %v4063
        %v4096 = vadd.f32 %v4032, %v4064
        %v4097 = vadd.f32 %v4033, %v4065
        %v4098 = vadd.f32 %v4034, %v4066
        %v4099 = vadd.f32 %v4035, %v4067
        %v4100 = vadd.f32 %v4036, %v4068
        %v4101 = vadd.f32 %v4037, %v4069
        %v4102 = vadd.f32 %v4038, %v4070
        %v4103 = vadd.f32 %v4039, %v4071
        %v4104 = vadd.f32 %v4040, %v4072
        %v4105 = vadd.f32 %v4041, %v4073
        %v4106 = vadd.f32 %v4042, %v4074
        %v4107 = vadd.f32 %v4043, %v4075
        %v4108 = vadd.f32 %v4044, %v4076
        %v4109 = vadd.f32 %v4045, %v4077
        %v4110 = vadd.f32 %v4046, %v4078
        %v4111 = vadd.f32 %v4047, %v4079
        %v4112 = vadd.f32 %v4048, %v4080
        %v4113 = vadd.f32 %v4049, %v4081
        %s4114 = scalar_lea.vmem %s189, 512 [#allocation6]
        %4115 = vst [vmem:[%s4114] sm:$0xff] %v4082
        %4116 = vst [vmem:[%s4114 + $0x8] sm:$0xff] %v4083
        %4117 = vst [vmem:[%s4114 + $0x10] sm:$0xff] %v4084
        %4118 = vst [vmem:[%s4114 + $0x18] sm:$0xff] %v4085
        %4119 = vst [vmem:[%s4114 + $0x20] sm:$0xff] %v4086
        %4120 = vst [vmem:[%s4114 + $0x28] sm:$0xff] %v4087
        %4121 = vst [vmem:[%s4114 + $0x30] sm:$0xff] %v4088
        %4122 = vst [vmem:[%s4114 + $0x38] sm:$0xff] %v4089
        %4123 = vst [vmem:[%s4114 + $0x40] sm:$0xff] %v4090
        %4124 = vst [vmem:[%s4114 + $0x48] sm:$0xff] %v4091
        %4125 = vst [vmem:[%s4114 + $0x50] sm:$0xff] %v4092
        %4126 = vst [vmem:[%s4114 + $0x58] sm:$0xff] %v4093
        %4127 = vst [vmem:[%s4114 + $0x60] sm:$0xff] %v4094
        %4128 = vst [vmem:[%s4114 + $0x68] sm:$0xff] %v4095
        %4129 = vst [vmem:[%s4114 + $0x70] sm:$0xff] %v4096
        %4130 = vst [vmem:[%s4114 + $0x78] sm:$0xff] %v4097
        %4131 = vst [vmem:[%s4114 + $0x80] sm:$0xff] %v4098
        %4132 = vst [vmem:[%s4114 + $0x88] sm:$0xff] %v4099
        %4133 = vst [vmem:[%s4114 + $0x90] sm:$0xff] %v4100
        %4134 = vst [vmem:[%s4114 + $0x98] sm:$0xff] %v4101
        %4135 = vst [vmem:[%s4114 + $0xa0] sm:$0xff] %v4102
        %4136 = vst [vmem:[%s4114 + $0xa8] sm:$0xff] %v4103
        %4137 = vst [vmem:[%s4114 + $0xb0] sm:$0xff] %v4104
        %4138 = vst [vmem:[%s4114 + $0xb8] sm:$0xff] %v4105
        %4139 = vst [vmem:[%s4114 + $0xc0] sm:$0xff] %v4106
        %4140 = vst [vmem:[%s4114 + $0xc8] sm:$0xff] %v4107
        %4141 = vst [vmem:[%s4114 + $0xd0] sm:$0xff] %v4108
        %4142 = vst [vmem:[%s4114 + $0xd8] sm:$0xff] %v4109
        %4143 = vst [vmem:[%s4114 + $0xe0] sm:$0xff] %v4110
        %4144 = vst [vmem:[%s4114 + $0xe8] sm:$0xff] %v4111
        %4145 = vst [vmem:[%s4114 + $0xf0] sm:$0xff] %v4112
        %4146 = vst [vmem:[%s4114 + $0xf8] sm:$0xff] %v4113
        %v4147 = vmul.f32 %v3377, %v3377
        %v4148 = vmul.f32 %v3378, %v3378
        %v4149 = vmul.f32 %v3379, %v3379
        %v4150 = vmul.f32 %v3380, %v3380
        %v4151 = vmul.f32 %v3381, %v3381
        %v4152 = vmul.f32 %v3382, %v3382
        %v4153 = vmul.f32 %v3383, %v3383
        %v4154 = vmul.f32 %v3384, %v3384
        %v4155 = vmul.f32 %v3385, %v3385
        %v4156 = vmul.f32 %v3386, %v3386
        %v4157 = vmul.f32 %v3387, %v3387
        %v4158 = vmul.f32 %v3388, %v3388
        %v4159 = vmul.f32 %v3389, %v3389
        %v4160 = vmul.f32 %v3390, %v3390
        %v4161 = vmul.f32 %v3391, %v3391
        %v4162 = vmul.f32 %v3392, %v3392
        %v4163 = vmul.f32 %v3393, %v3393
        %v4164 = vmul.f32 %v3394, %v3394
        %v4165 = vmul.f32 %v3395, %v3395
        %v4166 = vmul.f32 %v3396, %v3396
        %v4167 = vmul.f32 %v3397, %v3397
        %v4168 = vmul.f32 %v3398, %v3398
        %v4169 = vmul.f32 %v3399, %v3399
        %v4170 = vmul.f32 %v3400, %v3400
        %v4171 = vmul.f32 %v3401, %v3401
        %v4172 = vmul.f32 %v3402, %v3402
        %v4173 = vmul.f32 %v3403, %v3403
        %v4174 = vmul.f32 %v3404, %v3404
        %v4175 = vmul.f32 %v3405, %v3405
        %v4176 = vmul.f32 %v3406, %v3406
        %v4177 = vmul.f32 %v3407, %v3407
        %v4178 = vmul.f32 %v3408, %v3408
        %v4179 = vmul.f32 %v3409, %v3409
        %v4180 = vmul.f32 %v3410, %v3410
        %v4181 = vmul.f32 %v3411, %v3411
        %v4182 = vmul.f32 %v3412, %v3412
        %v4183 = vmul.f32 %v3413, %v3413
        %v4184 = vmul.f32 %v3414, %v3414
        %v4185 = vmul.f32 %v3415, %v3415
        %v4186 = vmul.f32 %v3416, %v3416
        %v4187 = vmul.f32 %v3417, %v3417
        %v4188 = vmul.f32 %v3418, %v3418
        %v4189 = vmul.f32 %v3419, %v3419
        %v4190 = vmul.f32 %v3420, %v3420
        %v4191 = vmul.f32 %v3421, %v3421
        %v4192 = vmul.f32 %v3422, %v3422
        %v4193 = vmul.f32 %v3423, %v3423
        %v4194 = vmul.f32 %v3424, %v3424
        %v4195 = vmul.f32 %v3425, %v3425
        %v4196 = vmul.f32 %v3426, %v3426
        %v4197 = vmul.f32 %v3427, %v3427
        %v4198 = vmul.f32 %v3428, %v3428
        %v4199 = vmul.f32 %v3429, %v3429
        %v4200 = vmul.f32 %v3430, %v3430
        %v4201 = vmul.f32 %v3431, %v3431
        %v4202 = vmul.f32 %v3432, %v3432
        %v4203 = vmul.f32 %v3433, %v3433
        %v4204 = vmul.f32 %v3434, %v3434
        %v4205 = vmul.f32 %v3435, %v3435
        %v4206 = vmul.f32 %v3436, %v3436
        %v4207 = vmul.f32 %v3437, %v3437
        %v4208 = vmul.f32 %v3438, %v3438
        %v4209 = vmul.f32 %v3439, %v3439
        %v4210 = vmul.f32 %v3440, %v3440
        %v4211 = vadd.f32 %v4147, %v4179
        %v4212 = vadd.f32 %v4148, %v4180
        %v4213 = vadd.f32 %v4149, %v4181
        %v4214 = vadd.f32 %v4150, %v4182
        %v4215 = vadd.f32 %v4151, %v4183
        %v4216 = vadd.f32 %v4152, %v4184
        %v4217 = vadd.f32 %v4153, %v4185
        %v4218 = vadd.f32 %v4154, %v4186
        %v4219 = vadd.f32 %v4155, %v4187
        %v4220 = vadd.f32 %v4156, %v4188
        %v4221 = vadd.f32 %v4157, %v4189
        %v4222 = vadd.f32 %v4158, %v4190
        %v4223 = vadd.f32 %v4159, %v4191
        %v4224 = vadd.f32 %v4160, %v4192
        %v4225 = vadd.f32 %v4161, %v4193
        %v4226 = vadd.f32 %v4162, %v4194
        %v4227 = vadd.f32 %v4163, %v4195
        %v4228 = vadd.f32 %v4164, %v4196
        %v4229 = vadd.f32 %v4165, %v4197
        %v4230 = vadd.f32 %v4166, %v4198
        %v4231 = vadd.f32 %v4167, %v4199
        %v4232 = vadd.f32 %v4168, %v4200
        %v4233 = vadd.f32 %v4169, %v4201
        %v4234 = vadd.f32 %v4170, %v4202
        %v4235 = vadd.f32 %v4171, %v4203
        %v4236 = vadd.f32 %v4172, %v4204
        %v4237 = vadd.f32 %v4173, %v4205
        %v4238 = vadd.f32 %v4174, %v4206
        %v4239 = vadd.f32 %v4175, %v4207
        %v4240 = vadd.f32 %v4176, %v4208
        %v4241 = vadd.f32 %v4177, %v4209
        %v4242 = vadd.f32 %v4178, %v4210
        %v4243 = vmul.f32 %v3441, %v3441
        %v4244 = vmul.f32 %v3442, %v3442
        %v4245 = vmul.f32 %v3443, %v3443
        %v4246 = vmul.f32 %v3444, %v3444
        %v4247 = vmul.f32 %v3445, %v3445
        %v4248 = vmul.f32 %v3446, %v3446
        %v4249 = vmul.f32 %v3447, %v3447
        %v4250 = vmul.f32 %v3448, %v3448
        %v4251 = vmul.f32 %v3449, %v3449
        %v4252 = vmul.f32 %v3450, %v3450
        %v4253 = vmul.f32 %v3451, %v3451
        %v4254 = vmul.f32 %v3452, %v3452
        %v4255 = vmul.f32 %v3453, %v3453
        %v4256 = vmul.f32 %v3454, %v3454
        %v4257 = vmul.f32 %v3455, %v3455
        %v4258 = vmul.f32 %v3456, %v3456
        %v4259 = vmul.f32 %v3457, %v3457
        %v4260 = vmul.f32 %v3458, %v3458
        %v4261 = vmul.f32 %v3459, %v3459
        %v4262 = vmul.f32 %v3460, %v3460
        %v4263 = vmul.f32 %v3461, %v3461
        %v4264 = vmul.f32 %v3462, %v3462
        %v4265 = vmul.f32 %v3463, %v3463
        %v4266 = vmul.f32 %v3464, %v3464
        %v4267 = vmul.f32 %v3465, %v3465
        %v4268 = vmul.f32 %v3466, %v3466
        %v4269 = vmul.f32 %v3467, %v3467
        %v4270 = vmul.f32 %v3468, %v3468
        %v4271 = vmul.f32 %v3469, %v3469
        %v4272 = vmul.f32 %v3470, %v3470
        %v4273 = vmul.f32 %v3471, %v3471
        %v4274 = vmul.f32 %v3472, %v3472
        %v4275 = vadd.f32 %v4211, %v4243
        %v4276 = vadd.f32 %v4212, %v4244
        %v4277 = vadd.f32 %v4213, %v4245
        %v4278 = vadd.f32 %v4214, %v4246
        %v4279 = vadd.f32 %v4215, %v4247
        %v4280 = vadd.f32 %v4216, %v4248
        %v4281 = vadd.f32 %v4217, %v4249
        %v4282 = vadd.f32 %v4218, %v4250
        %v4283 = vadd.f32 %v4219, %v4251
        %v4284 = vadd.f32 %v4220, %v4252
        %v4285 = vadd.f32 %v4221, %v4253
        %v4286 = vadd.f32 %v4222, %v4254
        %v4287 = vadd.f32 %v4223, %v4255
        %v4288 = vadd.f32 %v4224, %v4256
        %v4289 = vadd.f32 %v4225, %v4257
        %v4290 = vadd.f32 %v4226, %v4258
        %v4291 = vadd.f32 %v4227, %v4259
        %v4292 = vadd.f32 %v4228, %v4260
        %v4293 = vadd.f32 %v4229, %v4261
        %v4294 = vadd.f32 %v4230, %v4262
        %v4295 = vadd.f32 %v4231, %v4263
        %v4296 = vadd.f32 %v4232, %v4264
        %v4297 = vadd.f32 %v4233, %v4265
        %v4298 = vadd.f32 %v4234, %v4266
        %v4299 = vadd.f32 %v4235, %v4267
        %v4300 = vadd.f32 %v4236, %v4268
        %v4301 = vadd.f32 %v4237, %v4269
        %v4302 = vadd.f32 %v4238, %v4270
        %v4303 = vadd.f32 %v4239, %v4271
        %v4304 = vadd.f32 %v4240, %v4272
        %v4305 = vadd.f32 %v4241, %v4273
        %v4306 = vadd.f32 %v4242, %v4274
        %s4307 = scalar_lea.vmem %s189, 768 [#allocation6]
        %4308 = vst [vmem:[%s4307] sm:$0xff] %v4275
        %4309 = vst [vmem:[%s4307 + $0x8] sm:$0xff] %v4276
        %4310 = vst [vmem:[%s4307 + $0x10] sm:$0xff] %v4277
        %4311 = vst [vmem:[%s4307 + $0x18] sm:$0xff] %v4278
        %4312 = vst [vmem:[%s4307 + $0x20] sm:$0xff] %v4279
        %4313 = vst [vmem:[%s4307 + $0x28] sm:$0xff] %v4280
        %4314 = vst [vmem:[%s4307 + $0x30] sm:$0xff] %v4281
        %4315 = vst [vmem:[%s4307 + $0x38] sm:$0xff] %v4282
        %4316 = vst [vmem:[%s4307 + $0x40] sm:$0xff] %v4283
        %4317 = vst [vmem:[%s4307 + $0x48] sm:$0xff] %v4284
        %4318 = vst [vmem:[%s4307 + $0x50] sm:$0xff] %v4285
        %4319 = vst [vmem:[%s4307 + $0x58] sm:$0xff] %v4286
        %4320 = vst [vmem:[%s4307 + $0x60] sm:$0xff] %v4287
        %4321 = vst [vmem:[%s4307 + $0x68] sm:$0xff] %v4288
        %4322 = vst [vmem:[%s4307 + $0x70] sm:$0xff] %v4289
        %4323 = vst [vmem:[%s4307 + $0x78] sm:$0xff] %v4290
        %4324 = vst [vmem:[%s4307 + $0x80] sm:$0xff] %v4291
        %4325 = vst [vmem:[%s4307 + $0x88] sm:$0xff] %v4292
        %4326 = vst [vmem:[%s4307 + $0x90] sm:$0xff] %v4293
        %4327 = vst [vmem:[%s4307 + $0x98] sm:$0xff] %v4294
        %4328 = vst [vmem:[%s4307 + $0xa0] sm:$0xff] %v4295
        %4329 = vst [vmem:[%s4307 + $0xa8] sm:$0xff] %v4296
        %4330 = vst [vmem:[%s4307 + $0xb0] sm:$0xff] %v4297
        %4331 = vst [vmem:[%s4307 + $0xb8] sm:$0xff] %v4298
        %4332 = vst [vmem:[%s4307 + $0xc0] sm:$0xff] %v4299
        %4333 = vst [vmem:[%s4307 + $0xc8] sm:$0xff] %v4300
        %4334 = vst [vmem:[%s4307 + $0xd0] sm:$0xff] %v4301
        %4335 = vst [vmem:[%s4307 + $0xd8] sm:$0xff] %v4302
        %4336 = vst [vmem:[%s4307 + $0xe0] sm:$0xff] %v4303
        %4337 = vst [vmem:[%s4307 + $0xe8] sm:$0xff] %v4304
        %4338 = vst [vmem:[%s4307 + $0xf0] sm:$0xff] %v4305
        %4339 = vst [vmem:[%s4307 + $0xf8] sm:$0xff] %v4306
        %v4340 = vmul.f32 %v3377, %v3473
        %v4341 = vmul.f32 %v3378, %v3474
        %v4342 = vmul.f32 %v3379, %v3475
        %v4343 = vmul.f32 %v3380, %v3476
        %v4344 = vmul.f32 %v3381, %v3477
        %v4345 = vmul.f32 %v3382, %v3478
        %v4346 = vmul.f32 %v3383, %v3479
        %v4347 = vmul.f32 %v3384, %v3480
        %v4348 = vmul.f32 %v3385, %v3481
        %v4349 = vmul.f32 %v3386, %v3482
        %v4350 = vmul.f32 %v3387, %v3483
        %v4351 = vmul.f32 %v3388, %v3484
        %v4352 = vmul.f32 %v3389, %v3485
        %v4353 = vmul.f32 %v3390, %v3486
        %v4354 = vmul.f32 %v3391, %v3487
        %v4355 = vmul.f32 %v3392, %v3488
        %v4356 = vmul.f32 %v3393, %v3489
        %v4357 = vmul.f32 %v3394, %v3490
        %v4358 = vmul.f32 %v3395, %v3491
        %v4359 = vmul.f32 %v3396, %v3492
        %v4360 = vmul.f32 %v3397, %v3493
        %v4361 = vmul.f32 %v3398, %v3494
        %v4362 = vmul.f32 %v3399, %v3495
        %v4363 = vmul.f32 %v3400, %v3496
        %v4364 = vmul.f32 %v3401, %v3497
        %v4365 = vmul.f32 %v3402, %v3498
        %v4366 = vmul.f32 %v3403, %v3499
        %v4367 = vmul.f32 %v3404, %v3500
        %v4368 = vmul.f32 %v3405, %v3501
        %v4369 = vmul.f32 %v3406, %v3502
        %v4370 = vmul.f32 %v3407, %v3503
        %v4371 = vmul.f32 %v3408, %v3504
        %v4372 = vmul.f32 %v3409, %v3505
        %v4373 = vmul.f32 %v3410, %v3506
        %v4374 = vmul.f32 %v3411, %v3507
        %v4375 = vmul.f32 %v3412, %v3508
        %v4376 = vmul.f32 %v3413, %v3509
        %v4377 = vmul.f32 %v3414, %v3510
        %v4378 = vmul.f32 %v3415, %v3511
        %v4379 = vmul.f32 %v3416, %v3512
        %v4380 = vmul.f32 %v3417, %v3513
        %v4381 = vmul.f32 %v3418, %v3514
        %v4382 = vmul.f32 %v3419, %v3515
        %v4383 = vmul.f32 %v3420, %v3516
        %v4384 = vmul.f32 %v3421, %v3517
        %v4385 = vmul.f32 %v3422, %v3518
        %v4386 = vmul.f32 %v3423, %v3519
        %v4387 = vmul.f32 %v3424, %v3520
        %v4388 = vmul.f32 %v3425, %v3521
        %v4389 = vmul.f32 %v3426, %v3522
        %v4390 = vmul.f32 %v3427, %v3523
        %v4391 = vmul.f32 %v3428, %v3524
        %v4392 = vmul.f32 %v3429, %v3525
        %v4393 = vmul.f32 %v3430, %v3526
        %v4394 = vmul.f32 %v3431, %v3527
        %v4395 = vmul.f32 %v3432, %v3528
        %v4396 = vmul.f32 %v3433, %v3529
        %v4397 = vmul.f32 %v3434, %v3530
        %v4398 = vmul.f32 %v3435, %v3531
        %v4399 = vmul.f32 %v3436, %v3532
        %v4400 = vmul.f32 %v3437, %v3533
        %v4401 = vmul.f32 %v3438, %v3534
        %v4402 = vmul.f32 %v3439, %v3535
        %v4403 = vmul.f32 %v3440, %v3536
        %v4404 = vadd.f32 %v4340, %v4372
        %v4405 = vadd.f32 %v4341, %v4373
        %v4406 = vadd.f32 %v4342, %v4374
        %v4407 = vadd.f32 %v4343, %v4375
        %v4408 = vadd.f32 %v4344, %v4376
        %v4409 = vadd.f32 %v4345, %v4377
        %v4410 = vadd.f32 %v4346, %v4378
        %v4411 = vadd.f32 %v4347, %v4379
        %v4412 = vadd.f32 %v4348, %v4380
        %v4413 = vadd.f32 %v4349, %v4381
        %v4414 = vadd.f32 %v4350, %v4382
        %v4415 = vadd.f32 %v4351, %v4383
        %v4416 = vadd.f32 %v4352, %v4384
        %v4417 = vadd.f32 %v4353, %v4385
        %v4418 = vadd.f32 %v4354, %v4386
        %v4419 = vadd.f32 %v4355, %v4387
        %v4420 = vadd.f32 %v4356, %v4388
        %v4421 = vadd.f32 %v4357, %v4389
        %v4422 = vadd.f32 %v4358, %v4390
        %v4423 = vadd.f32 %v4359, %v4391
        %v4424 = vadd.f32 %v4360, %v4392
        %v4425 = vadd.f32 %v4361, %v4393
        %v4426 = vadd.f32 %v4362, %v4394
        %v4427 = vadd.f32 %v4363, %v4395
        %v4428 = vadd.f32 %v4364, %v4396
        %v4429 = vadd.f32 %v4365, %v4397
        %v4430 = vadd.f32 %v4366, %v4398
        %v4431 = vadd.f32 %v4367, %v4399
        %v4432 = vadd.f32 %v4368, %v4400
        %v4433 = vadd.f32 %v4369, %v4401
        %v4434 = vadd.f32 %v4370, %v4402
        %v4435 = vadd.f32 %v4371, %v4403
        %v4436 = vmul.f32 %v3441, %v3537
        %v4437 = vmul.f32 %v3442, %v3538
        %v4438 = vmul.f32 %v3443, %v3539
        %v4439 = vmul.f32 %v3444, %v3540
        %v4440 = vmul.f32 %v3445, %v3541
        %v4441 = vmul.f32 %v3446, %v3542
        %v4442 = vmul.f32 %v3447, %v3543
        %v4443 = vmul.f32 %v3448, %v3544
        %v4444 = vmul.f32 %v3449, %v3545
        %v4445 = vmul.f32 %v3450, %v3546
        %v4446 = vmul.f32 %v3451, %v3547
        %v4447 = vmul.f32 %v3452, %v3548
        %v4448 = vmul.f32 %v3453, %v3549
        %v4449 = vmul.f32 %v3454, %v3550
        %v4450 = vmul.f32 %v3455, %v3551
        %v4451 = vmul.f32 %v3456, %v3552
        %v4452 = vmul.f32 %v3457, %v3553
        %v4453 = vmul.f32 %v3458, %v3554
        %v4454 = vmul.f32 %v3459, %v3555
        %v4455 = vmul.f32 %v3460, %v3556
        %v4456 = vmul.f32 %v3461, %v3557
        %v4457 = vmul.f32 %v3462, %v3558
        %v4458 = vmul.f32 %v3463, %v3559
        %v4459 = vmul.f32 %v3464, %v3560
        %v4460 = vmul.f32 %v3465, %v3561
        %v4461 = vmul.f32 %v3466, %v3562
        %v4462 = vmul.f32 %v3467, %v3563
        %v4463 = vmul.f32 %v3468, %v3564
        %v4464 = vmul.f32 %v3469, %v3565
        %v4465 = vmul.f32 %v3470, %v3566
        %v4466 = vmul.f32 %v3471, %v3567
        %v4467 = vmul.f32 %v3472, %v3568
        %v4468 = vadd.f32 %v4404, %v4436
        %v4469 = vadd.f32 %v4405, %v4437
        %v4470 = vadd.f32 %v4406, %v4438
        %v4471 = vadd.f32 %v4407, %v4439
        %v4472 = vadd.f32 %v4408, %v4440
        %v4473 = vadd.f32 %v4409, %v4441
        %v4474 = vadd.f32 %v4410, %v4442
        %v4475 = vadd.f32 %v4411, %v4443
        %v4476 = vadd.f32 %v4412, %v4444
        %v4477 = vadd.f32 %v4413, %v4445
        %v4478 = vadd.f32 %v4414, %v4446
        %v4479 = vadd.f32 %v4415, %v4447
        %v4480 = vadd.f32 %v4416, %v4448
        %v4481 = vadd.f32 %v4417, %v4449
        %v4482 = vadd.f32 %v4418, %v4450
        %v4483 = vadd.f32 %v4419, %v4451
        %v4484 = vadd.f32 %v4420, %v4452
        %v4485 = vadd.f32 %v4421, %v4453
        %v4486 = vadd.f32 %v4422, %v4454
        %v4487 = vadd.f32 %v4423, %v4455
        %v4488 = vadd.f32 %v4424, %v4456
        %v4489 = vadd.f32 %v4425, %v4457
        %v4490 = vadd.f32 %v4426, %v4458
        %v4491 = vadd.f32 %v4427, %v4459
        %v4492 = vadd.f32 %v4428, %v4460
        %v4493 = vadd.f32 %v4429, %v4461
        %v4494 = vadd.f32 %v4430, %v4462
        %v4495 = vadd.f32 %v4431, %v4463
        %v4496 = vadd.f32 %v4432, %v4464
        %v4497 = vadd.f32 %v4433, %v4465
        %v4498 = vadd.f32 %v4434, %v4466
        %v4499 = vadd.f32 %v4435, %v4467
        %s4500 = scalar_lea.vmem %s189, 1024 [#allocation6]
        %4501 = vst [vmem:[%s4500] sm:$0xff] %v4468
        %4502 = vst [vmem:[%s4500 + $0x8] sm:$0xff] %v4469
        %4503 = vst [vmem:[%s4500 + $0x10] sm:$0xff] %v4470
        %4504 = vst [vmem:[%s4500 + $0x18] sm:$0xff] %v4471
        %4505 = vst [vmem:[%s4500 + $0x20] sm:$0xff] %v4472
        %4506 = vst [vmem:[%s4500 + $0x28] sm:$0xff] %v4473
        %4507 = vst [vmem:[%s4500 + $0x30] sm:$0xff] %v4474
        %4508 = vst [vmem:[%s4500 + $0x38] sm:$0xff] %v4475
        %4509 = vst [vmem:[%s4500 + $0x40] sm:$0xff] %v4476
        %4510 = vst [vmem:[%s4500 + $0x48] sm:$0xff] %v4477
        %4511 = vst [vmem:[%s4500 + $0x50] sm:$0xff] %v4478
        %4512 = vst [vmem:[%s4500 + $0x58] sm:$0xff] %v4479
        %4513 = vst [vmem:[%s4500 + $0x60] sm:$0xff] %v4480
        %4514 = vst [vmem:[%s4500 + $0x68] sm:$0xff] %v4481
        %4515 = vst [vmem:[%s4500 + $0x70] sm:$0xff] %v4482
        %4516 = vst [vmem:[%s4500 + $0x78] sm:$0xff] %v4483
        %4517 = vst [vmem:[%s4500 + $0x80] sm:$0xff] %v4484
        %4518 = vst [vmem:[%s4500 + $0x88] sm:$0xff] %v4485
        %4519 = vst [vmem:[%s4500 + $0x90] sm:$0xff] %v4486
        %4520 = vst [vmem:[%s4500 + $0x98] sm:$0xff] %v4487
        %4521 = vst [vmem:[%s4500 + $0xa0] sm:$0xff] %v4488
        %4522 = vst [vmem:[%s4500 + $0xa8] sm:$0xff] %v4489
        %4523 = vst [vmem:[%s4500 + $0xb0] sm:$0xff] %v4490
        %4524 = vst [vmem:[%s4500 + $0xb8] sm:$0xff] %v4491
        %4525 = vst [vmem:[%s4500 + $0xc0] sm:$0xff] %v4492
        %4526 = vst [vmem:[%s4500 + $0xc8] sm:$0xff] %v4493
        %4527 = vst [vmem:[%s4500 + $0xd0] sm:$0xff] %v4494
        %4528 = vst [vmem:[%s4500 + $0xd8] sm:$0xff] %v4495
        %4529 = vst [vmem:[%s4500 + $0xe0] sm:$0xff] %v4496
        %4530 = vst [vmem:[%s4500 + $0xe8] sm:$0xff] %v4497
        %4531 = vst [vmem:[%s4500 + $0xf0] sm:$0xff] %v4498
        %4532 = vst [vmem:[%s4500 + $0xf8] sm:$0xff] %v4499
        %v4533 = vmul.f32 %v3473, %v3473
        %v4534 = vmul.f32 %v3474, %v3474
        %v4535 = vmul.f32 %v3475, %v3475
        %v4536 = vmul.f32 %v3476, %v3476
        %v4537 = vmul.f32 %v3477, %v3477
        %v4538 = vmul.f32 %v3478, %v3478
        %v4539 = vmul.f32 %v3479, %v3479
        %v4540 = vmul.f32 %v3480, %v3480
        %v4541 = vmul.f32 %v3481, %v3481
        %v4542 = vmul.f32 %v3482, %v3482
        %v4543 = vmul.f32 %v3483, %v3483
        %v4544 = vmul.f32 %v3484, %v3484
        %v4545 = vmul.f32 %v3485, %v3485
        %v4546 = vmul.f32 %v3486, %v3486
        %v4547 = vmul.f32 %v3487, %v3487
        %v4548 = vmul.f32 %v3488, %v3488
        %v4549 = vmul.f32 %v3489, %v3489
        %v4550 = vmul.f32 %v3490, %v3490
        %v4551 = vmul.f32 %v3491, %v3491
        %v4552 = vmul.f32 %v3492, %v3492
        %v4553 = vmul.f32 %v3493, %v3493
        %v4554 = vmul.f32 %v3494, %v3494
        %v4555 = vmul.f32 %v3495, %v3495
        %v4556 = vmul.f32 %v3496, %v3496
        %v4557 = vmul.f32 %v3497, %v3497
        %v4558 = vmul.f32 %v3498, %v3498
        %v4559 = vmul.f32 %v3499, %v3499
        %v4560 = vmul.f32 %v3500, %v3500
        %v4561 = vmul.f32 %v3501, %v3501
        %v4562 = vmul.f32 %v3502, %v3502
        %v4563 = vmul.f32 %v3503, %v3503
        %v4564 = vmul.f32 %v3504, %v3504
        %v4565 = vmul.f32 %v3505, %v3505
        %v4566 = vmul.f32 %v3506, %v3506
        %v4567 = vmul.f32 %v3507, %v3507
        %v4568 = vmul.f32 %v3508, %v3508
        %v4569 = vmul.f32 %v3509, %v3509
        %v4570 = vmul.f32 %v3510, %v3510
        %v4571 = vmul.f32 %v3511, %v3511
        %v4572 = vmul.f32 %v3512, %v3512
        %v4573 = vmul.f32 %v3513, %v3513
        %v4574 = vmul.f32 %v3514, %v3514
        %v4575 = vmul.f32 %v3515, %v3515
        %v4576 = vmul.f32 %v3516, %v3516
        %v4577 = vmul.f32 %v3517, %v3517
        %v4578 = vmul.f32 %v3518, %v3518
        %v4579 = vmul.f32 %v3519, %v3519
        %v4580 = vmul.f32 %v3520, %v3520
        %v4581 = vmul.f32 %v3521, %v3521
        %v4582 = vmul.f32 %v3522, %v3522
        %v4583 = vmul.f32 %v3523, %v3523
        %v4584 = vmul.f32 %v3524, %v3524
        %v4585 = vmul.f32 %v3525, %v3525
        %v4586 = vmul.f32 %v3526, %v3526
        %v4587 = vmul.f32 %v3527, %v3527
        %v4588 = vmul.f32 %v3528, %v3528
        %v4589 = vmul.f32 %v3529, %v3529
        %v4590 = vmul.f32 %v3530, %v3530
        %v4591 = vmul.f32 %v3531, %v3531
        %v4592 = vmul.f32 %v3532, %v3532
        %v4593 = vmul.f32 %v3533, %v3533
        %v4594 = vmul.f32 %v3534, %v3534
        %v4595 = vmul.f32 %v3535, %v3535
        %v4596 = vmul.f32 %v3536, %v3536
        %v4597 = vadd.f32 %v4533, %v4565
        %v4598 = vadd.f32 %v4534, %v4566
        %v4599 = vadd.f32 %v4535, %v4567
        %v4600 = vadd.f32 %v4536, %v4568
        %v4601 = vadd.f32 %v4537, %v4569
        %v4602 = vadd.f32 %v4538, %v4570
        %v4603 = vadd.f32 %v4539, %v4571
        %v4604 = vadd.f32 %v4540, %v4572
        %v4605 = vadd.f32 %v4541, %v4573
        %v4606 = vadd.f32 %v4542, %v4574
        %v4607 = vadd.f32 %v4543, %v4575
        %v4608 = vadd.f32 %v4544, %v4576
        %v4609 = vadd.f32 %v4545, %v4577
        %v4610 = vadd.f32 %v4546, %v4578
        %v4611 = vadd.f32 %v4547, %v4579
        %v4612 = vadd.f32 %v4548, %v4580
        %v4613 = vadd.f32 %v4549, %v4581
        %v4614 = vadd.f32 %v4550, %v4582
        %v4615 = vadd.f32 %v4551, %v4583
        %v4616 = vadd.f32 %v4552, %v4584
        %v4617 = vadd.f32 %v4553, %v4585
        %v4618 = vadd.f32 %v4554, %v4586
        %v4619 = vadd.f32 %v4555, %v4587
        %v4620 = vadd.f32 %v4556, %v4588
        %v4621 = vadd.f32 %v4557, %v4589
        %v4622 = vadd.f32 %v4558, %v4590
        %v4623 = vadd.f32 %v4559, %v4591
        %v4624 = vadd.f32 %v4560, %v4592
        %v4625 = vadd.f32 %v4561, %v4593
        %v4626 = vadd.f32 %v4562, %v4594
        %v4627 = vadd.f32 %v4563, %v4595
        %v4628 = vadd.f32 %v4564, %v4596
        %v4629 = vmul.f32 %v3537, %v3537
        %v4630 = vmul.f32 %v3538, %v3538
        %v4631 = vmul.f32 %v3539, %v3539
        %v4632 = vmul.f32 %v3540, %v3540
        %v4633 = vmul.f32 %v3541, %v3541
        %v4634 = vmul.f32 %v3542, %v3542
        %v4635 = vmul.f32 %v3543, %v3543
        %v4636 = vmul.f32 %v3544, %v3544
        %v4637 = vmul.f32 %v3545, %v3545
        %v4638 = vmul.f32 %v3546, %v3546
        %v4639 = vmul.f32 %v3547, %v3547
        %v4640 = vmul.f32 %v3548, %v3548
        %v4641 = vmul.f32 %v3549, %v3549
        %v4642 = vmul.f32 %v3550, %v3550
        %v4643 = vmul.f32 %v3551, %v3551
        %v4644 = vmul.f32 %v3552, %v3552
        %v4645 = vmul.f32 %v3553, %v3553
        %v4646 = vmul.f32 %v3554, %v3554
        %v4647 = vmul.f32 %v3555, %v3555
        %v4648 = vmul.f32 %v3556, %v3556
        %v4649 = vmul.f32 %v3557, %v3557
        %v4650 = vmul.f32 %v3558, %v3558
        %v4651 = vmul.f32 %v3559, %v3559
        %v4652 = vmul.f32 %v3560, %v3560
        %v4653 = vmul.f32 %v3561, %v3561
        %v4654 = vmul.f32 %v3562, %v3562
        %v4655 = vmul.f32 %v3563, %v3563
        %v4656 = vmul.f32 %v3564, %v3564
        %v4657 = vmul.f32 %v3565, %v3565
        %v4658 = vmul.f32 %v3566, %v3566
        %v4659 = vmul.f32 %v3567, %v3567
        %v4660 = vmul.f32 %v3568, %v3568
        %v4661 = vadd.f32 %v4597, %v4629
        %v4662 = vadd.f32 %v4598, %v4630
        %v4663 = vadd.f32 %v4599, %v4631
        %v4664 = vadd.f32 %v4600, %v4632
        %v4665 = vadd.f32 %v4601, %v4633
        %v4666 = vadd.f32 %v4602, %v4634
        %v4667 = vadd.f32 %v4603, %v4635
        %v4668 = vadd.f32 %v4604, %v4636
        %v4669 = vadd.f32 %v4605, %v4637
        %v4670 = vadd.f32 %v4606, %v4638
        %v4671 = vadd.f32 %v4607, %v4639
        %v4672 = vadd.f32 %v4608, %v4640
        %v4673 = vadd.f32 %v4609, %v4641
        %v4674 = vadd.f32 %v4610, %v4642
        %v4675 = vadd.f32 %v4611, %v4643
        %v4676 = vadd.f32 %v4612, %v4644
        %v4677 = vadd.f32 %v4613, %v4645
        %v4678 = vadd.f32 %v4614, %v4646
        %v4679 = vadd.f32 %v4615, %v4647
        %v4680 = vadd.f32 %v4616, %v4648
        %v4681 = vadd.f32 %v4617, %v4649
        %v4682 = vadd.f32 %v4618, %v4650
        %v4683 = vadd.f32 %v4619, %v4651
        %v4684 = vadd.f32 %v4620, %v4652
        %v4685 = vadd.f32 %v4621, %v4653
        %v4686 = vadd.f32 %v4622, %v4654
        %v4687 = vadd.f32 %v4623, %v4655
        %v4688 = vadd.f32 %v4624, %v4656
        %v4689 = vadd.f32 %v4625, %v4657
        %v4690 = vadd.f32 %v4626, %v4658
        %v4691 = vadd.f32 %v4627, %v4659
        %v4692 = vadd.f32 %v4628, %v4660
        %s4693 = scalar_lea.vmem %s189, 1280 [#allocation6]
        %4694 = vst [vmem:[%s4693] sm:$0xff] %v4661
        %4695 = vst [vmem:[%s4693 + $0x8] sm:$0xff] %v4662
        %4696 = vst [vmem:[%s4693 + $0x10] sm:$0xff] %v4663
        %4697 = vst [vmem:[%s4693 + $0x18] sm:$0xff] %v4664
        %4698 = vst [vmem:[%s4693 + $0x20] sm:$0xff] %v4665
        %4699 = vst [vmem:[%s4693 + $0x28] sm:$0xff] %v4666
        %4700 = vst [vmem:[%s4693 + $0x30] sm:$0xff] %v4667
        %4701 = vst [vmem:[%s4693 + $0x38] sm:$0xff] %v4668
        %4702 = vst [vmem:[%s4693 + $0x40] sm:$0xff] %v4669
        %4703 = vst [vmem:[%s4693 + $0x48] sm:$0xff] %v4670
        %4704 = vst [vmem:[%s4693 + $0x50] sm:$0xff] %v4671
        %4705 = vst [vmem:[%s4693 + $0x58] sm:$0xff] %v4672
        %4706 = vst [vmem:[%s4693 + $0x60] sm:$0xff] %v4673
        %4707 = vst [vmem:[%s4693 + $0x68] sm:$0xff] %v4674
        %4708 = vst [vmem:[%s4693 + $0x70] sm:$0xff] %v4675
        %4709 = vst [vmem:[%s4693 + $0x78] sm:$0xff] %v4676
        %4710 = vst [vmem:[%s4693 + $0x80] sm:$0xff] %v4677
        %4711 = vst [vmem:[%s4693 + $0x88] sm:$0xff] %v4678
        %4712 = vst [vmem:[%s4693 + $0x90] sm:$0xff] %v4679
        %4713 = vst [vmem:[%s4693 + $0x98] sm:$0xff] %v4680
        %4714 = vst [vmem:[%s4693 + $0xa0] sm:$0xff] %v4681
        %4715 = vst [vmem:[%s4693 + $0xa8] sm:$0xff] %v4682
        %4716 = vst [vmem:[%s4693 + $0xb0] sm:$0xff] %v4683
        %4717 = vst [vmem:[%s4693 + $0xb8] sm:$0xff] %v4684
        %4718 = vst [vmem:[%s4693 + $0xc0] sm:$0xff] %v4685
        %4719 = vst [vmem:[%s4693 + $0xc8] sm:$0xff] %v4686
        %4720 = vst [vmem:[%s4693 + $0xd0] sm:$0xff] %v4687
        %4721 = vst [vmem:[%s4693 + $0xd8] sm:$0xff] %v4688
        %4722 = vst [vmem:[%s4693 + $0xe0] sm:$0xff] %v4689
        %4723 = vst [vmem:[%s4693 + $0xe8] sm:$0xff] %v4690
        %4724 = vst [vmem:[%s4693 + $0xf0] sm:$0xff] %v4691
        %4725 = vst [vmem:[%s4693 + $0xf8] sm:$0xff] %v4692
        %s4726 = sand.u32 %s75, 1
        %s4727 = scalar_lea.sflag [#allocation5], %s4726
        %s4728 = sand.u32 %s75, 1
        %s4729 = smul.addr %s4728, 3584
        %s4730 = scalar_lea.vmem [#allocation6], %s4729
        // Predicated region
        $region33: #{tpu_custom_call.1} parent=27 // pred_check
          %p4731 = pneg %p85
        $region34: #{tpu_custom_call.1} parent=27 // pred_check_branch
          %4733 = sbr.rel (%p4731) target = $region36
        $region35: #{tpu_custom_call.1} parent=27 // pred_region
          #allocation10 [shape = 'u32[6]{0}', space=smem, size = 0x18, scoped, tag = 'DMA stride descriptor']
          %s4734 = smul.u32 32, %s20
          %4736 = vsyncadd %s4727, 0
          %s4737 = smul.addr %s4734, 8
          %s4738 = scalar_lea.hbm %s2, %s4737
          %s4740 = sshll.u32 1, 14
          %s4741 = sxor.u32 4294967295, %s4740
          %s4744 = sshll.u32 7, 18
          %s4745 = sxor.u32 4294967295, %s4744
          %s4746 = sand.u32 0, %s4745
          %s4748 = sor.u32 %s4746, 0
          %s4749 = sshll.u32 %s4730, 4
          %s4750 = int_to_ptr.vmem [resolvable:$true] %s4749
          %s4751 = sshll.u32 %s4738, 4
          %s4752 = int_to_ptr.hbm [resolvable:$true] %s4751
          %4758 = sst [smem:[#allocation10]] 4096
          %s4759 = scalar_lea.smem [#allocation10], 1
          %4760 = sst [smem:[%s4759]] 8192
          %s4761 = scalar_lea.smem [#allocation10], 2
          %4762 = sst [smem:[%s4761]] 32
          %s4763 = scalar_lea.smem [#allocation10], 3
          %4764 = sst [smem:[%s4763]] 128
          %s4765 = scalar_lea.smem [#allocation10], 4
          %4766 = sst [smem:[%s4765]] 128
          %s4767 = scalar_lea.smem [#allocation10], 5
          %4768 = sst [smem:[%s4767]] 8
          %4770 = dma.general %s4750, 57344, %s4752, %s4727, [#allocation9], [#allocation10], %s4748, 0
        $region36: #{tpu_custom_call.1} parent=27 // pred_fallthru
          _
      $region28: #{tpu_custom_call.1} parent=5 // pred_fallthru
        _
      %p4771 = scmp.le.s32.totalorder 2, %s15
      // Predicated region
      $region37: #{tpu_custom_call.1} parent=5 // pred_check
        %p4772 = pneg %p4771
      $region38: #{tpu_custom_call.1} parent=5 // pred_check_branch
        %4774 = sbr.rel (%p4772) target = $region40
      $region39: #{tpu_custom_call.1} parent=5 // pred_region
        %s4775 = ssub.s32 %s15, 2
        // Predicated region
        $region41: #{tpu_custom_call.1} parent=39 // pred_check
          %p4776 = pneg %p91
        $region42: #{tpu_custom_call.1} parent=39 // pred_check_branch
          %4778 = sbr.rel (%p4776) target = $region44
        $region43: #{tpu_custom_call.1} parent=39 // pred_region
          %s4779 = sand.u32 %s76, 1
          %s4780 = scalar_lea.sflag [#allocation5], %s4779
          %s4781 = sand.u32 %s76, 1
          %s4782 = smul.addr %s4781, 3584
          %s4783 = scalar_lea.vmem [#allocation6], %s4782
          %4785 = dma.done %s4780, 57344
        $region44: #{tpu_custom_call.1} parent=39 // pred_fallthru
          _
      $region40: #{tpu_custom_call.1} parent=5 // pred_fallthru
        _
    $region6: #{tpu_custom_call.1} parent=1 // loop_footer
      %s19 = sadd.s32 1, %s15
    $region7: #{tpu_custom_call.1} parent=1 // loop_footer_branch
      %14 = sbr.rel target = $region3
    $region8: #{tpu_custom_call.1} parent=1 // loop_exit
      _
    %4786 = vsyncpa [#allocation4], 1
    %s4787 = scalar_lea.sflag [#allocation4], 1
    %4788 = vsyncpa %s4787, 1
    %4789 = vsyncpa [#allocation5], 1
    %s4790 = scalar_lea.sflag [#allocation5], 1
    %4791 = vsyncpa %s4790, 1

</llo_original>
